<compile_context>
chip_gen: v7x
topology: tpu7x:2x2x1
jax: 0.10.0
libtpu: 0.0.40
codegen_flags: <defaults>
</compile_context>

<pallas_src>
import math

import jax
import jax.numpy as jnp
from jax import lax
from jax.experimental import pallas as pl
from jax.experimental.pallas import tpu as pltpu


def _make_mha_kernel(B, T, Tp, num_heads, head_dim, compute_dtype):
    scale = 1.0 / math.sqrt(head_dim)
    cd = jnp.dtype(compute_dtype)
    approx_recip = cd != jnp.dtype(jnp.float32)
    needs_mask = Tp > T
    BTp = B * Tp

    def mha_kernel(q_ref, k_ref, v_ref,
                   wq_ref, wk_ref, wv_ref, wo_ref,
                   bq_ref, bk_ref, bv_ref, bo_ref,
                   o_ref, acc_ref):
        # Grid step = head h.  Activations: (B*Tp, D) in compute dtype
        # (constant block index -> DMA'd once); per-head weight slabs:
        # (1, D, hd) / (1, hd, D); biases: (1, 1, hd) / (1, D).
        h = pl.program_id(0)

        @pl.when(h == 0)
        def _init():
            acc_ref[...] = jnp.zeros_like(acc_ref)

        wq = wq_ref[0]                   # (D, hd) compute dtype
        wk = wk_ref[0]
        wv = wv_ref[0]
        wo = wo_ref[0]                   # (hd, D) compute dtype

        # Per-head projections over all (batch, time) rows at once:
        # (B*Tp, D) @ (D, hd) -> (B*Tp, hd), f32 accumulation on the MXU.
        qh = jnp.dot(q_ref[...], wq, preferred_element_type=jnp.float32) + bq_ref[0]
        kh = jnp.dot(k_ref[...], wk, preferred_element_type=jnp.float32) + bk_ref[0]
        vh = jnp.dot(v_ref[...], wv, preferred_element_type=jnp.float32) + bv_ref[0]

        # (B, Tp, hd) views; Tp is a multiple of 8 so the split is tile-aligned.
        qh3 = qh.reshape(B, Tp, head_dim).astype(cd)
        kh3 = kh.reshape(B, Tp, head_dim).astype(cd)
        vh3 = vh.reshape(B, Tp, head_dim).astype(cd)

        # Scores per batch: contract head_dim directly (no explicit transpose).
        s = jnp.einsum("bqd,bkd->bqk", qh3, kh3,
                       preferred_element_type=jnp.float32) * scale   # (B,Tp,Tp) f32

        if needs_mask:
            # Mask zero-padded key positions (t >= T).
            kidx = lax.broadcasted_iota(jnp.int32, s.shape, 2)
            s = jnp.where(kidx < T, s, jnp.float32(-1e30))

        # Softmax in f32.
        s = s - jnp.max(s, axis=-1, keepdims=True)
        p = jnp.exp(s)
        p = p * pl.reciprocal(jnp.sum(p, axis=-1, keepdims=True),
                              approx=approx_recip)

        # Attention output for this head, then fold its slice of the output
        # projection into the (B*Tp, D) accumulator (== concat(heads) @ Wo).
        oh = jnp.einsum("bqk,bkd->bqd", p.astype(cd), vh3,
                        preferred_element_type=jnp.float32)          # (B,Tp,hd) f32
        acc_ref[...] += jnp.dot(oh.reshape(BTp, head_dim).astype(cd), wo,
                                preferred_element_type=jnp.float32)  # (B*Tp, D) f32

        @pl.when(h == num_heads - 1)
        def _finalize():
            o_ref[...] = (acc_ref[...] + bo_ref[...]).astype(o_ref.dtype)

    return mha_kernel


def _vmem_limit_bytes(B, Tp, D, hd, act_itemsize, w_itemsize):
    BTp = B * Tp
    per_step = (
        2 * 3 * BTp * D * act_itemsize          # double-buffered q/k/v blocks
        + 2 * 4 * D * hd * w_itemsize           # double-buffered per-head weight slabs
        + 2 * (3 * hd + D) * 4                  # biases
        + 2 * BTp * D * 4                       # output block
        + BTp * D * 4                           # f32 accumulator scratch
        + (6 * BTp * hd + 3 * B * Tp * max(Tp, 128) + 2 * BTp * D) * 4  # intermediates
    )
    # 2x headroom for compiler-internal scratch; never exceed the smallest
    # physical VMEM across targeted generations (v7x: 64 MiB per TC).
    return int(min(max(2 * per_step, 16 * 1024 * 1024), 64 * 1024 * 1024))


def multihead_attention(query, key, value, params, *, num_heads,
                        compute_dtype=jnp.bfloat16):
    """query/key/value: (B, T, D) float32.  params: torch-Linear-style weights
    stored as (D_in, D_out) so y = x @ W + b."""
    B, T, D = query.shape
    hd = D // num_heads
    assert hd * num_heads == D

    cd = jnp.dtype(compute_dtype)
    Tp = ((T + 7) // 8) * 8          # pad time to a sublane-tile multiple
    pad = Tp - T

    def prep(x):
        xp = jnp.pad(x, ((0, 0), (0, pad), (0, 0)))
        return xp.reshape(B * Tp, D).astype(cd)

    q2, k2, v2 = prep(query), prep(key), prep(value)

    # Per-head weight slabs; MXU operands in compute dtype (bf16 by default).
    # NOTE: fusing wq|wk|wv into one matmul is not applicable here because the
    # projections act on three distinct input tensors (query/key/value).
    wq_h = params["wq"].reshape(D, num_heads, hd).transpose(1, 0, 2).astype(cd)  # (H, D, hd)
    wk_h = params["wk"].reshape(D, num_heads, hd).transpose(1, 0, 2).astype(cd)
    wv_h = params["wv"].reshape(D, num_heads, hd).transpose(1, 0, 2).astype(cd)
    wo_h = params["wo"].reshape(num_heads, hd, D).astype(cd)                     # (H, hd, D)
    bq_h = params["bq"].reshape(num_heads, 1, hd).astype(jnp.float32)
    bk_h = params["bk"].reshape(num_heads, 1, hd).astype(jnp.float32)
    bv_h = params["bv"].reshape(num_heads, 1, hd).astype(jnp.float32)
    bo_2 = params["bo"].reshape(1, D).astype(jnp.float32)

    kernel = _make_mha_kernel(B, T, Tp, num_heads, hd, cd)

    act_spec = pl.BlockSpec((B * Tp, D), lambda h: (0, 0))       # constant -> DMA once
    win_spec = pl.BlockSpec((1, D, hd), lambda h: (h, 0, 0))
    wout_spec = pl.BlockSpec((1, hd, D), lambda h: (h, 0, 0))
    bias_spec = pl.BlockSpec((1, 1, hd), lambda h: (h, 0, 0))
    bo_spec = pl.BlockSpec((1, D), lambda h: (0, 0))
    out_spec = pl.BlockSpec((B * Tp, D), lambda h: (0, 0))       # lane-dense flat output

    out_flat = pl.pallas_call(
        kernel,
        out_shape=jax.ShapeDtypeStruct((B * Tp, D), query.dtype),
        grid_spec=pltpu.PrefetchScalarGridSpec(
            num_scalar_prefetch=0,
            grid=(num_heads,),                      # heads = reduction axis
            in_specs=[act_spec, act_spec, act_spec,
                      win_spec, win_spec, win_spec, wout_spec,
                      bias_spec, bias_spec, bias_spec, bo_spec],
            out_specs=out_spec,
            scratch_shapes=[pltpu.VMEM((B * Tp, D), jnp.float32)],
        ),
        compiler_params=pltpu.CompilerParams(
            dimension_semantics=("arbitrary",),
            vmem_limit_bytes=_vmem_limit_bytes(
                B, Tp, D, hd, cd.itemsize, cd.itemsize)),
    )(q2, k2, v2, wq_h, wk_h, wv_h, wo_h, bq_h, bk_h, bv_h, bo_2)

    return out_flat.reshape(B, Tp, D)[:, :T, :]


def reference_mha(query, key, value, params, *, num_heads,
                  compute_dtype=jnp.float32):
    """Plain-JAX reference matching the PyTorch forward, mirroring the
    kernel's cast points (bf16 MXU operands, f32 accumulation/softmax)."""
    B, T, D = query.shape
    hd = D // num_heads
    cd = jnp.dtype(compute_dtype)
    hi = jax.lax.Precision.HIGHEST

    def proj(x, w, b):
        return jnp.dot(x.astype(cd), w.astype(cd),
                       preferred_element_type=jnp.float32, precision=hi) + b

    q = proj(query, params["wq"], params["bq"]).reshape(B, T, num_heads, hd).transpose(0, 2, 1, 3)
    k = proj(key, params["wk"], params["bk"]).reshape(B, T, num_heads, hd).transpose(0, 2, 1, 3)
    v = proj(value, params["wv"], params["bv"]).reshape(B, T, num_heads, hd).transpose(0, 2, 1, 3)

    s = jnp.einsum("bhqd,bhkd->bhqk", q.astype(cd), k.astype(cd),
                   preferred_element_type=jnp.float32, precision=hi) / math.sqrt(hd)
    p = jax.nn.softmax(s, axis=-1)
    o = jnp.einsum("bhqk,bhkd->bhqd", p.astype(cd), v.astype(cd),
                   preferred_element_type=jnp.float32, precision=hi)
    o = o.transpose(0, 2, 1, 3).reshape(B, T, D)
    return jnp.dot(o.astype(cd), params["wo"].astype(cd),
                   preferred_element_type=jnp.float32, precision=hi) + params["bo"]


if __name__ == "__main__":
    # Shapes implied by the module: batch=12, seq=10, d_model=512, heads=8.
    batch, seq, d_model, num_heads = 12, 10, 512, 8

    rng = jax.random.PRNGKey(0)
    keys = jax.random.split(rng, 11)

    query = jax.random.normal(keys[0], (batch, seq, d_model), jnp.float32)
    key_in = jax.random.normal(keys[1], (batch, seq, d_model), jnp.float32)
    value = jax.random.normal(keys[2], (batch, seq, d_model), jnp.float32)
    # mask is accepted by the PyTorch module but never used in forward().
    mask = jnp.ones((batch, seq, seq), jnp.float32)  # noqa: F841  (unused, by design)

    init_scale = 1.0 / math.sqrt(d_model)
    params = {
        "wq": jax.random.normal(keys[3], (d_model, d_model), jnp.float32) * init_scale,
        "bq": jax.random.normal(keys[4], (d_model,), jnp.float32) * init_scale,
        "wk": jax.random.normal(keys[5], (d_model, d_model), jnp.float32) * init_scale,
        "bk": jax.random.normal(keys[6], (d_model,), jnp.float32) * init_scale,
        "wv": jax.random.normal(keys[7], (d_model, d_model), jnp.float32) * init_scale,
        "bv": jax.random.normal(keys[8], (d_model,), jnp.float32) * init_scale,
        "wo": jax.random.normal(keys[9], (d_model, d_model), jnp.float32) * init_scale,
        "bo": jax.random.normal(keys[10], (d_model,), jnp.float32) * init_scale,
    }

    # Fast path: bf16 MXU operands, f32 accumulation/softmax, approx reciprocal.
    out_bf16 = multihead_attention(query, key_in, value, params,
                                   num_heads=num_heads, compute_dtype=jnp.bfloat16)
    out_bf16 = jax.block_until_ready(out_bf16)
    ref_bf16 = reference_mha(query, key_in, value, params,
                             num_heads=num_heads, compute_dtype=jnp.bfloat16)
    assert out_bf16.shape == (batch, seq, d_model)
    assert jnp.allclose(out_bf16, ref_bf16, atol=1e-2, rtol=1e-2), \
        "bf16 kernel mismatch vs bf16 JAX reference"

    # Exactness check: full f32 compute path vs f32 reference.
    out_f32 = multihead_attention(query, key_in, value, params,
                                  num_heads=num_heads, compute_dtype=jnp.float32)
    out_f32 = jax.block_until_ready(out_f32)
    ref_f32 = reference_mha(query, key_in, value, params,
                            num_heads=num_heads, compute_dtype=jnp.float32)
    assert jnp.allclose(out_f32, ref_f32, atol=2e-4, rtol=2e-4), \
        "f32 kernel mismatch vs f32 JAX reference"

    print("KERNEL_OK")
</pallas_src>

<mosaic_0001>
module attributes {stable_mosaic.version = 11 : i64} {
  func.func @mha_kernel(%arg0: i32, %arg1: memref<192x512xbf16, #tpu.memory_space<vmem>>, %arg2: memref<192x512xbf16, #tpu.memory_space<vmem>>, %arg3: memref<192x512xbf16, #tpu.memory_space<vmem>>, %arg4: memref<1x512x64xbf16, #tpu.memory_space<vmem>>, %arg5: memref<1x512x64xbf16, #tpu.memory_space<vmem>>, %arg6: memref<1x512x64xbf16, #tpu.memory_space<vmem>>, %arg7: memref<1x64x512xbf16, #tpu.memory_space<vmem>>, %arg8: memref<1x1x64xf32, #tpu.memory_space<vmem>>, %arg9: memref<1x1x64xf32, #tpu.memory_space<vmem>>, %arg10: memref<1x1x64xf32, #tpu.memory_space<vmem>>, %arg11: memref<1x512xf32, #tpu.memory_space<vmem>>, %arg12: memref<192x512xf32, #tpu.memory_space<vmem>>, %arg13: memref<192x512xf32, #tpu.memory_space<vmem>>) attributes {dimension_semantics = [#tpu.dimension_semantics<arbitrary>], iteration_bounds = array<i64: 8>, scalar_prefetch = 0 : i64, scratch_operands = 1 : i64, tpu.core_type = #tpu.core_type<tc>, window_params = [{pipeline_mode = #tpu.pipeline_mode<synchronous>, transform_indices = @transform_0, window_bounds = array<i64: 192, 512>}, {pipeline_mode = #tpu.pipeline_mode<synchronous>, transform_indices = @transform_1, window_bounds = array<i64: 192, 512>}, {pipeline_mode = #tpu.pipeline_mode<synchronous>, transform_indices = @transform_2, window_bounds = array<i64: 192, 512>}, {transform_indices = @transform_3, window_bounds = array<i64: 1, 512, 64>}, {transform_indices = @transform_4, window_bounds = array<i64: 1, 512, 64>}, {transform_indices = @transform_5, window_bounds = array<i64: 1, 512, 64>}, {transform_indices = @transform_6, window_bounds = array<i64: 1, 64, 512>}, {transform_indices = @transform_7, window_bounds = array<i64: 1, 1, 64>}, {transform_indices = @transform_8, window_bounds = array<i64: 1, 1, 64>}, {transform_indices = @transform_9, window_bounds = array<i64: 1, 1, 64>}, {pipeline_mode = #tpu.pipeline_mode<synchronous>, transform_indices = @transform_10, window_bounds = array<i64: 1, 512>}, {pipeline_mode = #tpu.pipeline_mode<synchronous>, transform_indices = @transform_11, window_bounds = array<i64: 192, 512>}]} {
    %c0_i32 = arith.constant 0 : i32
    %0 = arith.cmpi eq, %arg0, %c0_i32 : i32
    %1 = arith.extui %0 : i1 to i32
    %c0_i32_0 = arith.constant 0 : i32
    %2 = arith.cmpi ne, %1, %c0_i32_0 : i32
    scf.if %2 {
      %cst_41 = arith.constant 0.000000e+00 : f32
      %64 = vector.broadcast %cst_41 : f32 to vector<192x512xf32>
      %c0_42 = arith.constant 0 : index
      %c0_43 = arith.constant 0 : index
      %65 = vector.load %arg13[%c0_42, %c0_43] : memref<192x512xf32, #tpu.memory_space<vmem>>, vector<192x512xf32>
      tpu.vector_store %arg13[%c0_42, %c0_43], %64 {strides = array<i32>} : memref<192x512xf32, #tpu.memory_space<vmem>>, vector<192x512xf32>,
    } else {
    }
    %c0 = arith.constant 0 : index
    %c0_1 = arith.constant 0 : index
    %c0_2 = arith.constant 0 : index
    %3 = vector.load %arg4[%c0, %c0_1, %c0_2] : memref<1x512x64xbf16, #tpu.memory_space<vmem>>, vector<1x512x64xbf16>
    %4 = vector.shape_cast %3 : vector<1x512x64xbf16> to vector<512x64xbf16>
    %c0_3 = arith.constant 0 : index
    %c0_4 = arith.constant 0 : index
    %c0_5 = arith.constant 0 : index
    %5 = vector.load %arg5[%c0_3, %c0_4, %c0_5] : memref<1x512x64xbf16, #tpu.memory_space<vmem>>, vector<1x512x64xbf16>
    %6 = vector.shape_cast %5 : vector<1x512x64xbf16> to vector<512x64xbf16>
    %c0_6 = arith.constant 0 : index
    %c0_7 = arith.constant 0 : index
    %c0_8 = arith.constant 0 : index
    %7 = vector.load %arg6[%c0_6, %c0_7, %c0_8] : memref<1x512x64xbf16, #tpu.memory_space<vmem>>, vector<1x512x64xbf16>
    %8 = vector.shape_cast %7 : vector<1x512x64xbf16> to vector<512x64xbf16>
    %c0_9 = arith.constant 0 : index
    %c0_10 = arith.constant 0 : index
    %c0_11 = arith.constant 0 : index
    %9 = vector.load %arg7[%c0_9, %c0_10, %c0_11] : memref<1x64x512xbf16, #tpu.memory_space<vmem>>, vector<1x64x512xbf16>
    %10 = vector.shape_cast %9 : vector<1x64x512xbf16> to vector<64x512xbf16>
    %c0_12 = arith.constant 0 : index
    %c0_13 = arith.constant 0 : index
    %11 = vector.load %arg1[%c0_12, %c0_13] : memref<192x512xbf16, #tpu.memory_space<vmem>>, vector<192x512xbf16>
    %cst = arith.constant dense<0.000000e+00> : vector<192x64xf32>
    %12 = tpu.matmul %11, %4, %cst {dimension_numbers = #tpu.dot_dimension_numbers<[1], [0], [0], [1], [0, 0, 1, 1], [], []>} : vector<192x512xbf16>, vector<512x64xbf16>, vector<192x64xf32> -> vector<192x64xf32>
    %c0_14 = arith.constant 0 : index
    %c0_15 = arith.constant 0 : index
    %c0_16 = arith.constant 0 : index
    %13 = vector.load %arg8[%c0_14, %c0_15, %c0_16] : memref<1x1x64xf32, #tpu.memory_space<vmem>>, vector<1x1x64xf32>
    %14 = vector.shape_cast %13 : vector<1x1x64xf32> to vector<1x64xf32>
    %15 = vector.broadcast %14 : vector<1x64xf32> to vector<192x64xf32>
    %16 = arith.addf %12, %15 : vector<192x64xf32>
    %c0_17 = arith.constant 0 : index
    %c0_18 = arith.constant 0 : index
    %17 = vector.load %arg2[%c0_17, %c0_18] : memref<192x512xbf16, #tpu.memory_space<vmem>>, vector<192x512xbf16>
    %cst_19 = arith.constant dense<0.000000e+00> : vector<192x64xf32>
    %18 = tpu.matmul %17, %6, %cst_19 {dimension_numbers = #tpu.dot_dimension_numbers<[1], [0], [0], [1], [0, 0, 1, 1], [], []>} : vector<192x512xbf16>, vector<512x64xbf16>, vector<192x64xf32> -> vector<192x64xf32>
    %c0_20 = arith.constant 0 : index
    %c0_21 = arith.constant 0 : index
    %c0_22 = arith.constant 0 : index
    %19 = vector.load %arg9[%c0_20, %c0_21, %c0_22] : memref<1x1x64xf32, #tpu.memory_space<vmem>>, vector<1x1x64xf32>
    %20 = vector.shape_cast %19 : vector<1x1x64xf32> to vector<1x64xf32>
    %21 = vector.broadcast %20 : vector<1x64xf32> to vector<192x64xf32>
    %22 = arith.addf %18, %21 : vector<192x64xf32>
    %c0_23 = arith.constant 0 : index
    %c0_24 = arith.constant 0 : index
    %23 = vector.load %arg3[%c0_23, %c0_24] : memref<192x512xbf16, #tpu.memory_space<vmem>>, vector<192x512xbf16>
    %cst_25 = arith.constant dense<0.000000e+00> : vector<192x64xf32>
    %24 = tpu.matmul %23, %8, %cst_25 {dimension_numbers = #tpu.dot_dimension_numbers<[1], [0], [0], [1], [0, 0, 1, 1], [], []>} : vector<192x512xbf16>, vector<512x64xbf16>, vector<192x64xf32> -> vector<192x64xf32>
    %c0_26 = arith.constant 0 : index
    %c0_27 = arith.constant 0 : index
    %c0_28 = arith.constant 0 : index
    %25 = vector.load %arg10[%c0_26, %c0_27, %c0_28] : memref<1x1x64xf32, #tpu.memory_space<vmem>>, vector<1x1x64xf32>
    %26 = vector.shape_cast %25 : vector<1x1x64xf32> to vector<1x64xf32>
    %27 = vector.broadcast %26 : vector<1x64xf32> to vector<192x64xf32>
    %28 = arith.addf %24, %27 : vector<192x64xf32>
    %29 = vector.shape_cast %16 : vector<192x64xf32> to vector<12x16x64xf32>
    %30 = arith.truncf %29 : vector<12x16x64xf32> to vector<12x16x64xbf16>
    %31 = vector.shape_cast %22 : vector<192x64xf32> to vector<12x16x64xf32>
    %32 = arith.truncf %31 : vector<12x16x64xf32> to vector<12x16x64xbf16>
    %33 = vector.shape_cast %28 : vector<192x64xf32> to vector<12x16x64xf32>
    %34 = arith.truncf %33 : vector<12x16x64xf32> to vector<12x16x64xbf16>
    "tpu.trace_start"() <{level = 10 : i32, message = "bqd,bkd->bqk"}> : () -> ()
    %cst_29 = arith.constant dense<0.000000e+00> : vector<12x16x16xf32>
    %35 = tpu.matmul %30, %32, %cst_29 {dimension_numbers = #tpu.dot_dimension_numbers<[2], [2], [1], [1], [0, 0, 0, 1, 1, 1], [0], [0]>} : vector<12x16x64xbf16>, vector<12x16x64xbf16>, vector<12x16x16xf32> -> vector<12x16x16xf32>
    "tpu.trace_stop"() : () -> ()
    %cst_30 = arith.constant 1.250000e-01 : f32
    %36 = vector.broadcast %cst_30 : f32 to vector<12x16x16xf32>
    %37 = arith.mulf %35, %36 : vector<12x16x16xf32>
    %38 = tpu.iota {dimensions = array<i32: 2>} : vector<12x16x16xi32>
    %c10_i32 = arith.constant 10 : i32
    %39 = vector.broadcast %c10_i32 : i32 to vector<12x16x16xi32>
    %40 = arith.cmpi slt, %38, %39 : vector<12x16x16xi32>
    %cst_31 = arith.constant -1.000000e+30 : f32
    %41 = vector.broadcast %cst_31 : f32 to vector<12x16x16xf32>
    %42 = arith.select %40, %37, %41 : vector<12x16x16xi1>, vector<12x16x16xf32>
    %cst_32 = arith.constant dense<0xFF800000> : vector<12x16xf32>
    %43 = vector.multi_reduction <maximumf>, %42, %cst_32 [2] : vector<12x16x16xf32> to vector<12x16xf32>
    %44 = vector.shape_cast %43 : vector<12x16xf32> to vector<12x16x1xf32>
    %45 = vector.broadcast %44 : vector<12x16x1xf32> to vector<12x16x16xf32>
    %46 = arith.subf %42, %45 : vector<12x16x16xf32>
    %47 = math.exp %46 : vector<12x16x16xf32>
    %cst_33 = arith.constant dense<0.000000e+00> : vector<12x16xf32>
    %48 = vector.multi_reduction <add>, %47, %cst_33 [2] : vector<12x16x16xf32> to vector<12x16xf32>
    %49 = vector.shape_cast %48 : vector<12x16xf32> to vector<12x16x1xf32>
    %50 = tpu.reciprocal %49 {approx = true} : vector<12x16x1xf32> -> vector<12x16x1xf32>
    %51 = vector.broadcast %50 : vector<12x16x1xf32> to vector<12x16x16xf32>
    %52 = arith.mulf %47, %51 : vector<12x16x16xf32>
    %53 = arith.truncf %52 : vector<12x16x16xf32> to vector<12x16x16xbf16>
    "tpu.trace_start"() <{level = 10 : i32, message = "bqk,bkd->bqd"}> : () -> ()
    %cst_34 = arith.constant dense<0.000000e+00> : vector<12x16x64xf32>
    %54 = tpu.matmul %53, %34, %cst_34 {dimension_numbers = #tpu.dot_dimension_numbers<[2], [1], [1], [2], [0, 0, 0, 1, 1, 2], [0], [0]>} : vector<12x16x16xbf16>, vector<12x16x64xbf16>, vector<12x16x64xf32> -> vector<12x16x64xf32>
    "tpu.trace_stop"() : () -> ()
    %c0_35 = arith.constant 0 : index
    %c0_36 = arith.constant 0 : index
    %55 = vector.load %arg13[%c0_35, %c0_36] : memref<192x512xf32, #tpu.memory_space<vmem>>, vector<192x512xf32>
    %56 = vector.shape_cast %54 : vector<12x16x64xf32> to vector<192x64xf32>
    %57 = arith.truncf %56 : vector<192x64xf32> to vector<192x64xbf16>
    %cst_37 = arith.constant dense<0.000000e+00> : vector<192x512xf32>
    %58 = tpu.matmul %57, %10, %cst_37 {dimension_numbers = #tpu.dot_dimension_numbers<[1], [0], [0], [1], [0, 0, 1, 1], [], []>} : vector<192x64xbf16>, vector<64x512xbf16>, vector<192x512xf32> -> vector<192x512xf32>
    %59 = arith.addf %55, %58 : vector<192x512xf32>
    %c0_38 = arith.constant 0 : index
    %c0_39 = arith.constant 0 : index
    %60 = vector.load %arg13[%c0_38, %c0_39] : memref<192x512xf32, #tpu.memory_space<vmem>>, vector<192x512xf32>
    tpu.vector_store %arg13[%c0_38, %c0_39], %59 {strides = array<i32>} : memref<192x512xf32, #tpu.memory_space<vmem>>, vector<192x512xf32>,
    %c7_i32 = arith.constant 7 : i32
    %61 = arith.cmpi eq, %arg0, %c7_i32 : i32
    %62 = arith.extui %61 : i1 to i32
    %c0_i32_40 = arith.constant 0 : i32
    %63 = arith.cmpi ne, %62, %c0_i32_40 : i32
    scf.if %63 {
      %c0_41 = arith.constant 0 : index
      %c0_42 = arith.constant 0 : index
      %64 = vector.load %arg13[%c0_41, %c0_42] : memref<192x512xf32, #tpu.memory_space<vmem>>, vector<192x512xf32>
      %c0_43 = arith.constant 0 : index
      %c0_44 = arith.constant 0 : index
      %65 = vector.load %arg11[%c0_43, %c0_44] : memref<1x512xf32, #tpu.memory_space<vmem>>, vector<1x512xf32>
      %66 = vector.broadcast %65 : vector<1x512xf32> to vector<192x512xf32>
      %67 = arith.addf %64, %66 : vector<192x512xf32>
      %c0_45 = arith.constant 0 : index
      %c0_46 = arith.constant 0 : index
      %68 = vector.load %arg12[%c0_45, %c0_46] : memref<192x512xf32, #tpu.memory_space<vmem>>, vector<192x512xf32>
      tpu.vector_store %arg12[%c0_45, %c0_46], %67 {strides = array<i32>} : memref<192x512xf32, #tpu.memory_space<vmem>>, vector<192x512xf32>,
    } else {
    }
    return
  }
  func.func @transform_0(%arg0: i32) -> (i32, i32) {
    %c0_i32 = arith.constant 0 : i32
    %c0_i32_0 = arith.constant 0 : i32
    %c0_i32_1 = arith.constant 0 : i32
    return %c0_i32, %c0_i32_0 : i32, i32
  }
  func.func @transform_1(%arg0: i32) -> (i32, i32) {
    %c0_i32 = arith.constant 0 : i32
    %c0_i32_0 = arith.constant 0 : i32
    %c0_i32_1 = arith.constant 0 : i32
    return %c0_i32, %c0_i32_0 : i32, i32
  }
  func.func @transform_2(%arg0: i32) -> (i32, i32) {
    %c0_i32 = arith.constant 0 : i32
    %c0_i32_0 = arith.constant 0 : i32
    %c0_i32_1 = arith.constant 0 : i32
    return %c0_i32, %c0_i32_0 : i32, i32
  }
  func.func @transform_3(%arg0: i32) -> (i32, i32, i32) {
    %c0_i32 = arith.constant 0 : i32
    %c0_i32_0 = arith.constant 0 : i32
    %c0_i32_1 = arith.constant 0 : i32
    return %arg0, %c0_i32, %c0_i32_0 : i32, i32, i32
  }
  func.func @transform_4(%arg0: i32) -> (i32, i32, i32) {
    %c0_i32 = arith.constant 0 : i32
    %c0_i32_0 = arith.constant 0 : i32
    %c0_i32_1 = arith.constant 0 : i32
    return %arg0, %c0_i32, %c0_i32_0 : i32, i32, i32
  }
  func.func @transform_5(%arg0: i32) -> (i32, i32, i32) {
    %c0_i32 = arith.constant 0 : i32
    %c0_i32_0 = arith.constant 0 : i32
    %c0_i32_1 = arith.constant 0 : i32
    return %arg0, %c0_i32, %c0_i32_0 : i32, i32, i32
  }
  func.func @transform_6(%arg0: i32) -> (i32, i32, i32) {
    %c0_i32 = arith.constant 0 : i32
    %c0_i32_0 = arith.constant 0 : i32
    %c0_i32_1 = arith.constant 0 : i32
    return %arg0, %c0_i32, %c0_i32_0 : i32, i32, i32
  }
  func.func @transform_7(%arg0: i32) -> (i32, i32, i32) {
    %c0_i32 = arith.constant 0 : i32
    %c0_i32_0 = arith.constant 0 : i32
    %c0_i32_1 = arith.constant 0 : i32
    return %arg0, %c0_i32, %c0_i32_0 : i32, i32, i32
  }
  func.func @transform_8(%arg0: i32) -> (i32, i32, i32) {
    %c0_i32 = arith.constant 0 : i32
    %c0_i32_0 = arith.constant 0 : i32
    %c0_i32_1 = arith.constant 0 : i32
    return %arg0, %c0_i32, %c0_i32_0 : i32, i32, i32
  }
  func.func @transform_9(%arg0: i32) -> (i32, i32, i32) {
    %c0_i32 = arith.constant 0 : i32
    %c0_i32_0 = arith.constant 0 : i32
    %c0_i32_1 = arith.constant 0 : i32
    return %arg0, %c0_i32, %c0_i32_0 : i32, i32, i32
  }
  func.func @transform_10(%arg0: i32) -> (i32, i32) {
    %c0_i32 = arith.constant 0 : i32
    %c0_i32_0 = arith.constant 0 : i32
    %c0_i32_1 = arith.constant 0 : i32
    return %c0_i32, %c0_i32_0 : i32, i32
  }
  func.func @transform_11(%arg0: i32) -> (i32, i32) {
    %c0_i32 = arith.constant 0 : i32
    %c0_i32_0 = arith.constant 0 : i32
    %c0_i32_1 = arith.constant 0 : i32
    return %c0_i32, %c0_i32_0 : i32, i32
  }
}

</mosaic_0001>

<llo_original>
// kernel: tpu_custom_call.1
$region0: #{tpu_custom_call.1}
  #allocation0 [shape = 'u32[]', space=smem, size = 0x4, offset = 0x4, fixed_abs, tag = 'smem constant byte address 0x4 - core index']
  #allocation1 [shape = 'u32[144,128]{1,0:T(1,128)}', space=vmem, size = 0x12000, scoped, tag = 'internal scratch']
  #allocation2 [shape = 'f32[192,512]{1,0:T(8,128)}', space=vmem, size = 0x60000, scoped, tag = 'scratch operand']
  %s0 = inlined_call_operand.vmem [shape: bf16[192,512], index: 0, kind: input, shape index: {}]
  %s1 = inlined_call_operand.vmem [shape: bf16[192,512], index: 1, kind: input, shape index: {}]
  %s2 = inlined_call_operand.vmem [shape: bf16[192,512], index: 2, kind: input, shape index: {}]
  %s3 = inlined_call_operand.vmem [shape: bf16[8,512,64], index: 3, kind: input, shape index: {}]
  %s4 = inlined_call_operand.vmem [shape: bf16[8,512,64], index: 4, kind: input, shape index: {}]
  %s5 = inlined_call_operand.vmem [shape: bf16[8,512,64], index: 5, kind: input, shape index: {}]
  %s6 = inlined_call_operand.vmem [shape: bf16[8,64,512], index: 6, kind: input, shape index: {}]
  %s7 = inlined_call_operand.vmem [shape: f32[8,1,64], index: 7, kind: input, shape index: {}]
  %s8 = inlined_call_operand.vmem [shape: f32[8,1,64], index: 8, kind: input, shape index: {}]
  %s9 = inlined_call_operand.vmem [shape: f32[8,1,64], index: 9, kind: input, shape index: {}]
  %s10 = inlined_call_operand.vmem [shape: f32[1,512], index: 10, kind: input, shape index: {}]
  %s11 = inlined_call_operand.hbm [shape: f32[192,512], index: 11, kind: output, shape index: {}]
  %s12 = sld [smem:[#allocation0]]
  $region85: #{tpu_custom_call.1} parent=0
    _
  %s14 = ssub.s32 1, %s12
  %s15 = scalar_select 0, %s14, %s12
  $region1: #{tpu_custom_call.1} parent=0
    #allocation3 [shape = 'u8[393216]{0}', space=vmem, size = 0x60000, scoped, tag = 'output window, operand 0, single buffered']
    #allocation4 [shape = 's32[2]{0}', space=sflag, size = 0x8, scoped, tag = 'scoped memory for tpu_custom_call.1']
    %16 = vsyncpa [#allocation4], 0
    loop: start=0, step=1, limit=10
    $region2: #{tpu_custom_call.1} parent=1 // loop_pre_header
      _
    $region3: #{tpu_custom_call.1} parent=1 // loop_header
      %s18 = sphi 0, %s22
      %p19 = scmp.ge.s32.totalorder %s18, 10
      %s26 = sphi 0, %s26
      %s28 = sphi 0, %s26
      %s29 = sphi 0, %s28
      %s43 = sphi 0, %s29
      %s47 = sphi 0, %s47
      %s49 = sphi 0, %s47
      %s50 = sphi 0, %s49
      %s64 = sphi 0, %s50
      %s68 = sphi 0, %s68
      %s70 = sphi 0, %s68
      %s71 = sphi 0, %s70
      %s85 = sphi 0, %s71
      %s91 = sphi 0, %s93
      %s94 = sphi 0, %s91
      %s95 = sphi 0, %s94
      %s111 = sphi 0, %s95
      %s117 = sphi 0, %s119
      %s120 = sphi 0, %s117
      %s121 = sphi 0, %s120
      %s137 = sphi 0, %s121
      %s143 = sphi 0, %s145
      %s146 = sphi 0, %s143
      %s147 = sphi 0, %s146
      %s163 = sphi 0, %s147
      %s169 = sphi 0, %s171
      %s172 = sphi 0, %s169
      %s173 = sphi 0, %s172
      %s189 = sphi 0, %s173
      %s195 = sphi 0, %s197
      %s198 = sphi 0, %s195
      %s199 = sphi 0, %s198
      %s215 = sphi 0, %s199
      %s221 = sphi 0, %s223
      %s224 = sphi 0, %s221
      %s225 = sphi 0, %s224
      %s241 = sphi 0, %s225
      %s247 = sphi 0, %s249
      %s250 = sphi 0, %s247
      %s251 = sphi 0, %s250
      %s267 = sphi 0, %s251
      %s271 = sphi 0, %s271
      %s273 = sphi 0, %s271
      %s274 = sphi 0, %s273
      %s288 = sphi 0, %s274
      %s292 = sphi 0, %s292
      %s294 = sphi 0, %s292
      %s295 = sphi 0, %s294
      %s309 = sphi 0, %s295
    $region4: #{tpu_custom_call.1} parent=1 // loop_header_branch
      %21 = sbr.rel (%p19) target = $region8
    $region5: #{tpu_custom_call.1} parent=1 // loop_body
      %s23 = ssub.s32 %s18, 1
      %s24 = ssub.s32 %s18, 2
      %s25 = sadd.s32 %s18, 1
      %s27 = sadd.s32 %s26, 1
      %p30 = scmp.eq.s32.totalorder %s18, 7
      %p31 = scmp.ne.s32.totalorder %s26, %s28
      %p32 = scmp.eq.s32.totalorder %s18, 0
      %p33 = por %p31, %p32
      %p34 = scmp.ne.s32.totalorder %s26, %s28
      %p35 = scmp.eq.s32.totalorder %s23, 7
      %p36 = por %p34, %p35
      %p37 = scmp.ne.s32.totalorder %s28, %s29
      %p38 = scmp.eq.s32.totalorder %s23, 0
      %p39 = por %p37, %p38
      %p40 = scmp.ne.s32.totalorder %s28, %s29
      %p41 = scmp.eq.s32.totalorder %s24, 7
      %p42 = por %p40, %p41
      %p44 = scmp.ne.s32.totalorder %s29, %s43
      %p45 = scmp.eq.s32.totalorder %s24, 0
      %p46 = por %p44, %p45
      %s48 = sadd.s32 %s47, 1
      %p51 = scmp.eq.s32.totalorder %s18, 7
      %p52 = scmp.ne.s32.totalorder %s47, %s49
      %p53 = scmp.eq.s32.totalorder %s18, 0
      %p54 = por %p52, %p53
      %p55 = scmp.ne.s32.totalorder %s47, %s49
      %p56 = scmp.eq.s32.totalorder %s23, 7
      %p57 = por %p55, %p56
      %p58 = scmp.ne.s32.totalorder %s49, %s50
      %p59 = scmp.eq.s32.totalorder %s23, 0
      %p60 = por %p58, %p59
      %p61 = scmp.ne.s32.totalorder %s49, %s50
      %p62 = scmp.eq.s32.totalorder %s24, 7
      %p63 = por %p61, %p62
      %p65 = scmp.ne.s32.totalorder %s50, %s64
      %p66 = scmp.eq.s32.totalorder %s24, 0
      %p67 = por %p65, %p66
      %s69 = sadd.s32 %s68, 1
      %p72 = scmp.eq.s32.totalorder %s18, 7
      %p73 = scmp.ne.s32.totalorder %s68, %s70
      %p74 = scmp.eq.s32.totalorder %s18, 0
      %p75 = por %p73, %p74
      %p76 = scmp.ne.s32.totalorder %s68, %s70
      %p77 = scmp.eq.s32.totalorder %s23, 7
      %p78 = por %p76, %p77
      %p79 = scmp.ne.s32.totalorder %s70, %s71
      %p80 = scmp.eq.s32.totalorder %s23, 0
      %p81 = por %p79, %p80
      %p82 = scmp.ne.s32.totalorder %s70, %s71
      %p83 = scmp.eq.s32.totalorder %s24, 7
      %p84 = por %p82, %p83
      %p86 = scmp.ne.s32.totalorder %s71, %s85
      %p87 = scmp.eq.s32.totalorder %s24, 0
      %p88 = por %p86, %p87
      %s89 = ssub.s32 %s18, %s25
      %p90 = scmp.eq.s32.totalorder %s89, 0
      %s92 = sadd.s32 %s91, 1
      %s93 = scalar_select %p90, %s91, %s92
      %p96 = pneg %p90
      %p97 = scmp.eq.s32.totalorder %s18, 7
      %p98 = por %p96, %p97
      %p99 = scmp.ne.s32.totalorder %s91, %s94
      %p100 = scmp.eq.s32.totalorder %s18, 0
      %p101 = por %p99, %p100
      %p102 = scmp.ne.s32.totalorder %s91, %s94
      %p103 = scmp.eq.s32.totalorder %s23, 7
      %p104 = por %p102, %p103
      %p105 = scmp.ne.s32.totalorder %s94, %s95
      %p106 = scmp.eq.s32.totalorder %s23, 0
      %p107 = por %p105, %p106
      %p108 = scmp.ne.s32.totalorder %s94, %s95
      %p109 = scmp.eq.s32.totalorder %s24, 7
      %p110 = por %p108, %p109
      %p112 = scmp.ne.s32.totalorder %s95, %s111
      %p113 = scmp.eq.s32.totalorder %s24, 0
      %p114 = por %p112, %p113
      %s115 = ssub.s32 %s18, %s25
      %p116 = scmp.eq.s32.totalorder %s115, 0
      %s118 = sadd.s32 %s117, 1
      %s119 = scalar_select %p116, %s117, %s118
      %p122 = pneg %p116
      %p123 = scmp.eq.s32.totalorder %s18, 7
      %p124 = por %p122, %p123
      %p125 = scmp.ne.s32.totalorder %s117, %s120
      %p126 = scmp.eq.s32.totalorder %s18, 0
      %p127 = por %p125, %p126
      %p128 = scmp.ne.s32.totalorder %s117, %s120
      %p129 = scmp.eq.s32.totalorder %s23, 7
      %p130 = por %p128, %p129
      %p131 = scmp.ne.s32.totalorder %s120, %s121
      %p132 = scmp.eq.s32.totalorder %s23, 0
      %p133 = por %p131, %p132
      %p134 = scmp.ne.s32.totalorder %s120, %s121
      %p135 = scmp.eq.s32.totalorder %s24, 7
      %p136 = por %p134, %p135
      %p138 = scmp.ne.s32.totalorder %s121, %s137
      %p139 = scmp.eq.s32.totalorder %s24, 0
      %p140 = por %p138, %p139
      %s141 = ssub.s32 %s18, %s25
      %p142 = scmp.eq.s32.totalorder %s141, 0
      %s144 = sadd.s32 %s143, 1
      %s145 = scalar_select %p142, %s143, %s144
      %p148 = pneg %p142
      %p149 = scmp.eq.s32.totalorder %s18, 7
      %p150 = por %p148, %p149
      %p151 = scmp.ne.s32.totalorder %s143, %s146
      %p152 = scmp.eq.s32.totalorder %s18, 0
      %p153 = por %p151, %p152
      %p154 = scmp.ne.s32.totalorder %s143, %s146
      %p155 = scmp.eq.s32.totalorder %s23, 7
      %p156 = por %p154, %p155
      %p157 = scmp.ne.s32.totalorder %s146, %s147
      %p158 = scmp.eq.s32.totalorder %s23, 0
      %p159 = por %p157, %p158
      %p160 = scmp.ne.s32.totalorder %s146, %s147
      %p161 = scmp.eq.s32.totalorder %s24, 7
      %p162 = por %p160, %p161
      %p164 = scmp.ne.s32.totalorder %s147, %s163
      %p165 = scmp.eq.s32.totalorder %s24, 0
      %p166 = por %p164, %p165
      %s167 = ssub.s32 %s18, %s25
      %p168 = scmp.eq.s32.totalorder %s167, 0
      %s170 = sadd.s32 %s169, 1
      %s171 = scalar_select %p168, %s169, %s170
      %p174 = pneg %p168
      %p175 = scmp.eq.s32.totalorder %s18, 7
      %p176 = por %p174, %p175
      %p177 = scmp.ne.s32.totalorder %s169, %s172
      %p178 = scmp.eq.s32.totalorder %s18, 0
      %p179 = por %p177, %p178
      %p180 = scmp.ne.s32.totalorder %s169, %s172
      %p181 = scmp.eq.s32.totalorder %s23, 7
      %p182 = por %p180, %p181
      %p183 = scmp.ne.s32.totalorder %s172, %s173
      %p184 = scmp.eq.s32.totalorder %s23, 0
      %p185 = por %p183, %p184
      %p186 = scmp.ne.s32.totalorder %s172, %s173
      %p187 = scmp.eq.s32.totalorder %s24, 7
      %p188 = por %p186, %p187
      %p190 = scmp.ne.s32.totalorder %s173, %s189
      %p191 = scmp.eq.s32.totalorder %s24, 0
      %p192 = por %p190, %p191
      %s193 = ssub.s32 %s18, %s25
      %p194 = scmp.eq.s32.totalorder %s193, 0
      %s196 = sadd.s32 %s195, 1
      %s197 = scalar_select %p194, %s195, %s196
      %p200 = pneg %p194
      %p201 = scmp.eq.s32.totalorder %s18, 7
      %p202 = por %p200, %p201
      %p203 = scmp.ne.s32.totalorder %s195, %s198
      %p204 = scmp.eq.s32.totalorder %s18, 0
      %p205 = por %p203, %p204
      %p206 = scmp.ne.s32.totalorder %s195, %s198
      %p207 = scmp.eq.s32.totalorder %s23, 7
      %p208 = por %p206, %p207
      %p209 = scmp.ne.s32.totalorder %s198, %s199
      %p210 = scmp.eq.s32.totalorder %s23, 0
      %p211 = por %p209, %p210
      %p212 = scmp.ne.s32.totalorder %s198, %s199
      %p213 = scmp.eq.s32.totalorder %s24, 7
      %p214 = por %p212, %p213
      %p216 = scmp.ne.s32.totalorder %s199, %s215
      %p217 = scmp.eq.s32.totalorder %s24, 0
      %p218 = por %p216, %p217
      %s219 = ssub.s32 %s18, %s25
      %p220 = scmp.eq.s32.totalorder %s219, 0
      %s222 = sadd.s32 %s221, 1
      %s223 = scalar_select %p220, %s221, %s222
      %p226 = pneg %p220
      %p227 = scmp.eq.s32.totalorder %s18, 7
      %p228 = por %p226, %p227
      %p229 = scmp.ne.s32.totalorder %s221, %s224
      %p230 = scmp.eq.s32.totalorder %s18, 0
      %p231 = por %p229, %p230
      %p232 = scmp.ne.s32.totalorder %s221, %s224
      %p233 = scmp.eq.s32.totalorder %s23, 7
      %p234 = por %p232, %p233
      %p235 = scmp.ne.s32.totalorder %s224, %s225
      %p236 = scmp.eq.s32.totalorder %s23, 0
      %p237 = por %p235, %p236
      %p238 = scmp.ne.s32.totalorder %s224, %s225
      %p239 = scmp.eq.s32.totalorder %s24, 7
      %p240 = por %p238, %p239
      %p242 = scmp.ne.s32.totalorder %s225, %s241
      %p243 = scmp.eq.s32.totalorder %s24, 0
      %p244 = por %p242, %p243
      %s245 = ssub.s32 %s18, %s25
      %p246 = scmp.eq.s32.totalorder %s245, 0
      %s248 = sadd.s32 %s247, 1
      %s249 = scalar_select %p246, %s247, %s248
      %p252 = pneg %p246
      %p253 = scmp.eq.s32.totalorder %s18, 7
      %p254 = por %p252, %p253
      %p255 = scmp.ne.s32.totalorder %s247, %s250
      %p256 = scmp.eq.s32.totalorder %s18, 0
      %p257 = por %p255, %p256
      %p258 = scmp.ne.s32.totalorder %s247, %s250
      %p259 = scmp.eq.s32.totalorder %s23, 7
      %p260 = por %p258, %p259
      %p261 = scmp.ne.s32.totalorder %s250, %s251
      %p262 = scmp.eq.s32.totalorder %s23, 0
      %p263 = por %p261, %p262
      %p264 = scmp.ne.s32.totalorder %s250, %s251
      %p265 = scmp.eq.s32.totalorder %s24, 7
      %p266 = por %p264, %p265
      %p268 = scmp.ne.s32.totalorder %s251, %s267
      %p269 = scmp.eq.s32.totalorder %s24, 0
      %p270 = por %p268, %p269
      %s272 = sadd.s32 %s271, 1
      %p275 = scmp.eq.s32.totalorder %s18, 7
      %p276 = scmp.ne.s32.totalorder %s271, %s273
      %p277 = scmp.eq.s32.totalorder %s18, 0
      %p278 = por %p276, %p277
      %p279 = scmp.ne.s32.totalorder %s271, %s273
      %p280 = scmp.eq.s32.totalorder %s23, 7
      %p281 = por %p279, %p280
      %p282 = scmp.ne.s32.totalorder %s273, %s274
      %p283 = scmp.eq.s32.totalorder %s23, 0
      %p284 = por %p282, %p283
      %p285 = scmp.ne.s32.totalorder %s273, %s274
      %p286 = scmp.eq.s32.totalorder %s24, 7
      %p287 = por %p285, %p286
      %p289 = scmp.ne.s32.totalorder %s274, %s288
      %p290 = scmp.eq.s32.totalorder %s24, 0
      %p291 = por %p289, %p290
      %s293 = sadd.s32 %s292, 1
      %p296 = scmp.eq.s32.totalorder %s18, 7
      %p297 = scmp.ne.s32.totalorder %s292, %s294
      %p298 = scmp.eq.s32.totalorder %s18, 0
      %p299 = por %p297, %p298
      %p300 = scmp.ne.s32.totalorder %s292, %s294
      %p301 = scmp.eq.s32.totalorder %s23, 7
      %p302 = por %p300, %p301
      %p303 = scmp.ne.s32.totalorder %s294, %s295
      %p304 = scmp.eq.s32.totalorder %s23, 0
      %p305 = por %p303, %p304
      %p306 = scmp.ne.s32.totalorder %s294, %s295
      %p307 = scmp.eq.s32.totalorder %s24, 7
      %p308 = por %p306, %p307
      %p310 = scmp.ne.s32.totalorder %s295, %s309
      %p311 = scmp.eq.s32.totalorder %s24, 0
      %p312 = por %p310, %p311
      %p313 = scmp.le.s32.totalorder 1, %s18
      %p314 = scmp.lt.s32.totalorder %s18, 9
      %p315 = pnand %p313, %p314
      %p316 = pneg %p315
      // Predicated region
      $region9: #{tpu_custom_call.1} parent=5 // pred_check
        _
      $region10: #{tpu_custom_call.1} parent=5 // pred_check_branch
        %318 = sbr.rel (%p315) target = $region12
      $region11: #{tpu_custom_call.1} parent=5 // pred_region
        %s319 = ssub.s32 %s18, 1
        // Predicated region
        $region13: #{tpu_custom_call.1} parent=11 // pred_check
          %p320 = pneg %p39
        $region14: #{tpu_custom_call.1} parent=11 // pred_check_branch
          %322 = sbr.rel (%p320) target = $region16
        $region15: #{tpu_custom_call.1} parent=11 // pred_region
          _
        $region16: #{tpu_custom_call.1} parent=11 // pred_fallthru
          _
        // Predicated region
        $region17: #{tpu_custom_call.1} parent=11 // pred_check
          %p323 = pneg %p60
        $region18: #{tpu_custom_call.1} parent=11 // pred_check_branch
          %325 = sbr.rel (%p323) target = $region20
        $region19: #{tpu_custom_call.1} parent=11 // pred_region
          _
        $region20: #{tpu_custom_call.1} parent=11 // pred_fallthru
          _
        // Predicated region
        $region21: #{tpu_custom_call.1} parent=11 // pred_check
          %p326 = pneg %p81
        $region22: #{tpu_custom_call.1} parent=11 // pred_check_branch
          %328 = sbr.rel (%p326) target = $region24
        $region23: #{tpu_custom_call.1} parent=11 // pred_region
          _
        $region24: #{tpu_custom_call.1} parent=11 // pred_fallthru
          _
        // Predicated region
        $region25: #{tpu_custom_call.1} parent=11 // pred_check
          %p329 = pneg %p284
        $region26: #{tpu_custom_call.1} parent=11 // pred_check_branch
          %331 = sbr.rel (%p329) target = $region28
        $region27: #{tpu_custom_call.1} parent=11 // pred_region
          _
        $region28: #{tpu_custom_call.1} parent=11 // pred_fallthru
          _
      $region12: #{tpu_custom_call.1} parent=5 // pred_fallthru
        _
      %p332 = scmp.lt.s32.totalorder %s18, 8
      // Predicated region
      $region29: #{tpu_custom_call.1} parent=5 // pred_check
        %p333 = pneg %p332
      $region30: #{tpu_custom_call.1} parent=5 // pred_check_branch
        %335 = sbr.rel (%p333) target = $region32
      $region31: #{tpu_custom_call.1} parent=5 // pred_region
        // Predicated region
        $region33: #{tpu_custom_call.1} parent=31 // pred_check
          %p336 = pneg %p101
        $region34: #{tpu_custom_call.1} parent=31 // pred_check_branch
          %338 = sbr.rel (%p336) target = $region36
        $region35: #{tpu_custom_call.1} parent=31 // pred_region
          %p339 = scmp.lt.s32.totalorder %s18, 7
          %s340 = scalar_select %p339, %s18, 7
          %s341 = smul.addr %s340, 64
          %s342 = smul.addr %s341, 4
          %s343 = scalar_lea.vmem %s3, %s342
        $region36: #{tpu_custom_call.1} parent=31 // pred_fallthru
          _
        // Predicated region
        $region37: #{tpu_custom_call.1} parent=31 // pred_check
          %p344 = pneg %p127
        $region38: #{tpu_custom_call.1} parent=31 // pred_check_branch
          %346 = sbr.rel (%p344) target = $region40
        $region39: #{tpu_custom_call.1} parent=31 // pred_region
          %p347 = scmp.lt.s32.totalorder %s18, 7
          %s348 = scalar_select %p347, %s18, 7
          %s349 = smul.addr %s348, 64
          %s350 = smul.addr %s349, 4
          %s351 = scalar_lea.vmem %s4, %s350
        $region40: #{tpu_custom_call.1} parent=31 // pred_fallthru
          _
        // Predicated region
        $region41: #{tpu_custom_call.1} parent=31 // pred_check
          %p352 = pneg %p153
        $region42: #{tpu_custom_call.1} parent=31 // pred_check_branch
          %354 = sbr.rel (%p352) target = $region44
        $region43: #{tpu_custom_call.1} parent=31 // pred_region
          %p355 = scmp.lt.s32.totalorder %s18, 7
          %s356 = scalar_select %p355, %s18, 7
          %s357 = smul.addr %s356, 64
          %s358 = smul.addr %s357, 4
          %s359 = scalar_lea.vmem %s5, %s358
        $region44: #{tpu_custom_call.1} parent=31 // pred_fallthru
          _
        // Predicated region
        $region45: #{tpu_custom_call.1} parent=31 // pred_check
          %p360 = pneg %p179
        $region46: #{tpu_custom_call.1} parent=31 // pred_check_branch
          %362 = sbr.rel (%p360) target = $region48
        $region47: #{tpu_custom_call.1} parent=31 // pred_region
          %p363 = scmp.lt.s32.totalorder %s18, 7
          %s364 = scalar_select %p363, %s18, 7
          %s365 = smul.addr %s364, 32
          %s366 = smul.addr %s365, 4
          %s367 = scalar_lea.vmem %s6, %s366
        $region48: #{tpu_custom_call.1} parent=31 // pred_fallthru
          _
        // Predicated region
        $region49: #{tpu_custom_call.1} parent=31 // pred_check
          %p368 = pneg %p205
        $region50: #{tpu_custom_call.1} parent=31 // pred_check_branch
          %370 = sbr.rel (%p368) target = $region52
        $region51: #{tpu_custom_call.1} parent=31 // pred_region
          %p371 = scmp.lt.s32.totalorder %s18, 7
          %s372 = scalar_select %p371, %s18, 7
          %s373 = scalar_lea.vmem %s7, %s372
        $region52: #{tpu_custom_call.1} parent=31 // pred_fallthru
          _
        // Predicated region
        $region53: #{tpu_custom_call.1} parent=31 // pred_check
          %p374 = pneg %p231
        $region54: #{tpu_custom_call.1} parent=31 // pred_check_branch
          %376 = sbr.rel (%p374) target = $region56
        $region55: #{tpu_custom_call.1} parent=31 // pred_region
          %p377 = scmp.lt.s32.totalorder %s18, 7
          %s378 = scalar_select %p377, %s18, 7
          %s379 = scalar_lea.vmem %s8, %s378
        $region56: #{tpu_custom_call.1} parent=31 // pred_fallthru
          _
        // Predicated region
        $region57: #{tpu_custom_call.1} parent=31 // pred_check
          %p380 = pneg %p257
        $region58: #{tpu_custom_call.1} parent=31 // pred_check_branch
          %382 = sbr.rel (%p380) target = $region60
        $region59: #{tpu_custom_call.1} parent=31 // pred_region
          %p383 = scmp.lt.s32.totalorder %s18, 7
          %s384 = scalar_select %p383, %s18, 7
          %s385 = scalar_lea.vmem %s9, %s384
        $region60: #{tpu_custom_call.1} parent=31 // pred_fallthru
          _
      $region32: #{tpu_custom_call.1} parent=5 // pred_fallthru
        _
      %p386 = scmp.le.s32.totalorder 1, %s18
      %p387 = scmp.lt.s32.totalorder %s18, 9
      %p388 = pnand %p386, %p387
      %p389 = pneg %p388
      // Predicated region
      $region61: #{tpu_custom_call.1} parent=5 // pred_check
        _
      $region62: #{tpu_custom_call.1} parent=5 // pred_check_branch
        %391 = sbr.rel (%p388) target = $region64
      $region63: #{tpu_custom_call.1} parent=5 // pred_region
        %s392 = ssub.s32 %s18, 1
        %p393 = pneg %p39
        %p394 = pneg %p36
        %p395 = pneg %p60
        %p396 = pneg %p57
        %p397 = pneg %p81
        %p398 = pneg %p78
        %p399 = scmp.lt.s32.totalorder %s23, 7
        %s400 = scalar_select %p399, %s23, 7
        %s401 = smul.addr %s400, 64
        %s402 = smul.addr %s401, 4
        %s403 = scalar_lea.vmem %s3, %s402
        %p404 = pneg %p107
        %p405 = pneg %p104
        %p406 = scmp.lt.s32.totalorder %s23, 7
        %s407 = scalar_select %p406, %s23, 7
        %s408 = smul.addr %s407, 64
        %s409 = smul.addr %s408, 4
        %s410 = scalar_lea.vmem %s4, %s409
        %p411 = pneg %p133
        %p412 = pneg %p130
        %p413 = scmp.lt.s32.totalorder %s23, 7
        %s414 = scalar_select %p413, %s23, 7
        %s415 = smul.addr %s414, 64
        %s416 = smul.addr %s415, 4
        %s417 = scalar_lea.vmem %s5, %s416
        %p418 = pneg %p159
        %p419 = pneg %p156
        %p420 = scmp.lt.s32.totalorder %s23, 7
        %s421 = scalar_select %p420, %s23, 7
        %s422 = smul.addr %s421, 32
        %s423 = smul.addr %s422, 4
        %s424 = scalar_lea.vmem %s6, %s423
        %p425 = pneg %p185
        %p426 = pneg %p182
        %p427 = scmp.lt.s32.totalorder %s23, 7
        %s428 = scalar_select %p427, %s23, 7
        %s429 = scalar_lea.vmem %s7, %s428
        %p430 = pneg %p211
        %p431 = pneg %p208
        %p432 = scmp.lt.s32.totalorder %s23, 7
        %s433 = scalar_select %p432, %s23, 7
        %s434 = scalar_lea.vmem %s8, %s433
        %p435 = pneg %p237
        %p436 = pneg %p234
        %p437 = scmp.lt.s32.totalorder %s23, 7
        %s438 = scalar_select %p437, %s23, 7
        %s439 = scalar_lea.vmem %s9, %s438
        %p440 = pneg %p263
        %p441 = pneg %p260
        %p442 = pneg %p284
        %p443 = pneg %p281
        %p444 = pneg %p305
        %p445 = pneg %p302
        %p446 = scmp.lt.s32.totalorder %s23, 7
        %s447 = scalar_select %p446, %s23, 7
        %s448 = smul.addr %s447, 64
        %s449 = smul.addr %s448, 4
        %s450 = scalar_lea.vmem %s3, %s449
        %p451 = scmp.lt.s32.totalorder %s23, 7
        %s452 = scalar_select %p451, %s23, 7
        %s453 = smul.addr %s452, 64
        %s454 = smul.addr %s453, 4
        %s455 = scalar_lea.vmem %s4, %s454
        %p456 = scmp.lt.s32.totalorder %s23, 7
        %s457 = scalar_select %p456, %s23, 7
        %s458 = smul.addr %s457, 64
        %s459 = smul.addr %s458, 4
        %s460 = scalar_lea.vmem %s5, %s459
        %p461 = scmp.lt.s32.totalorder %s23, 7
        %s462 = scalar_select %p461, %s23, 7
        %s463 = smul.addr %s462, 32
        %s464 = smul.addr %s463, 4
        %s465 = scalar_lea.vmem %s6, %s464
        %p466 = scmp.lt.s32.totalorder %s23, 7
        %s467 = scalar_select %p466, %s23, 7
        %s468 = scalar_lea.vmem %s7, %s467
        %p469 = scmp.lt.s32.totalorder %s23, 7
        %s470 = scalar_select %p469, %s23, 7
        %s471 = scalar_lea.vmem %s8, %s470
        %p472 = scmp.lt.s32.totalorder %s23, 7
        %s473 = scalar_select %p472, %s23, 7
        %s474 = scalar_lea.vmem %s9, %s473
        %p476 = scmp.eq.s32.totalorder %s23, 0
        // Predicated region
        $region65: #{tpu_custom_call.1} parent=63 // pred_check
          %p477 = pneg %p476
        $region66: #{tpu_custom_call.1} parent=63 // pred_check_branch
          %479 = sbr.rel (%p477) target = $region68
        $region67: #{tpu_custom_call.1} parent=63 // pred_region
          %480 = vst [vmem:[#allocation2] sm:$0xff] 0.0
          %481 = vst [vmem:[#allocation2 + $0x8] sm:$0xff] 0.0
          %482 = vst [vmem:[#allocation2 + $0x10] sm:$0xff] 0.0
          %483 = vst [vmem:[#allocation2 + $0x18] sm:$0xff] 0.0
          %484 = vst [vmem:[#allocation2 + $0x20] sm:$0xff] 0.0
          %485 = vst [vmem:[#allocation2 + $0x28] sm:$0xff] 0.0
          %486 = vst [vmem:[#allocation2 + $0x30] sm:$0xff] 0.0
          %487 = vst [vmem:[#allocation2 + $0x38] sm:$0xff] 0.0
          %488 = vst [vmem:[#allocation2 + $0x40] sm:$0xff] 0.0
          %489 = vst [vmem:[#allocation2 + $0x48] sm:$0xff] 0.0
          %490 = vst [vmem:[#allocation2 + $0x50] sm:$0xff] 0.0
          %491 = vst [vmem:[#allocation2 + $0x58] sm:$0xff] 0.0
          %492 = vst [vmem:[#allocation2 + $0x60] sm:$0xff] 0.0
          %493 = vst [vmem:[#allocation2 + $0x68] sm:$0xff] 0.0
          %494 = vst [vmem:[#allocation2 + $0x70] sm:$0xff] 0.0
          %495 = vst [vmem:[#allocation2 + $0x78] sm:$0xff] 0.0
          %496 = vst [vmem:[#allocation2 + $0x80] sm:$0xff] 0.0
          %497 = vst [vmem:[#allocation2 + $0x88] sm:$0xff] 0.0
          %498 = vst [vmem:[#allocation2 + $0x90] sm:$0xff] 0.0
          %499 = vst [vmem:[#allocation2 + $0x98] sm:$0xff] 0.0
          %500 = vst [vmem:[#allocation2 + $0xa0] sm:$0xff] 0.0
          %501 = vst [vmem:[#allocation2 + $0xa8] sm:$0xff] 0.0
          %502 = vst [vmem:[#allocation2 + $0xb0] sm:$0xff] 0.0
          %503 = vst [vmem:[#allocation2 + $0xb8] sm:$0xff] 0.0
          %504 = vst [vmem:[#allocation2 + $0xc0] sm:$0xff] 0.0
          %505 = vst [vmem:[#allocation2 + $0xc8] sm:$0xff] 0.0
          %506 = vst [vmem:[#allocation2 + $0xd0] sm:$0xff] 0.0
          %507 = vst [vmem:[#allocation2 + $0xd8] sm:$0xff] 0.0
          %508 = vst [vmem:[#allocation2 + $0xe0] sm:$0xff] 0.0
          %509 = vst [vmem:[#allocation2 + $0xe8] sm:$0xff] 0.0
          %510 = vst [vmem:[#allocation2 + $0xf0] sm:$0xff] 0.0
          %511 = vst [vmem:[#allocation2 + $0xf8] sm:$0xff] 0.0
          %512 = vst [vmem:[#allocation2 + $0x100] sm:$0xff] 0.0
          %513 = vst [vmem:[#allocation2 + $0x108] sm:$0xff] 0.0
          %514 = vst [vmem:[#allocation2 + $0x110] sm:$0xff] 0.0
          %515 = vst [vmem:[#allocation2 + $0x118] sm:$0xff] 0.0
          %516 = vst [vmem:[#allocation2 + $0x120] sm:$0xff] 0.0
          %517 = vst [vmem:[#allocation2 + $0x128] sm:$0xff] 0.0
          %518 = vst [vmem:[#allocation2 + $0x130] sm:$0xff] 0.0
          %519 = vst [vmem:[#allocation2 + $0x138] sm:$0xff] 0.0
          %520 = vst [vmem:[#allocation2 + $0x140] sm:$0xff] 0.0
          %521 = vst [vmem:[#allocation2 + $0x148] sm:$0xff] 0.0
          %522 = vst [vmem:[#allocation2 + $0x150] sm:$0xff] 0.0
          %523 = vst [vmem:[#allocation2 + $0x158] sm:$0xff] 0.0
          %524 = vst [vmem:[#allocation2 + $0x160] sm:$0xff] 0.0
          %525 = vst [vmem:[#allocation2 + $0x168] sm:$0xff] 0.0
          %526 = vst [vmem:[#allocation2 + $0x170] sm:$0xff] 0.0
          %527 = vst [vmem:[#allocation2 + $0x178] sm:$0xff] 0.0
          %528 = vst [vmem:[#allocation2 + $0x180] sm:$0xff] 0.0
          %529 = vst [vmem:[#allocation2 + $0x188] sm:$0xff] 0.0
          %530 = vst [vmem:[#allocation2 + $0x190] sm:$0xff] 0.0
          %531 = vst [vmem:[#allocation2 + $0x198] sm:$0xff] 0.0
          %532 = vst [vmem:[#allocation2 + $0x1a0] sm:$0xff] 0.0
          %533 = vst [vmem:[#allocation2 + $0x1a8] sm:$0xff] 0.0
          %534 = vst [vmem:[#allocation2 + $0x1b0] sm:$0xff] 0.0
          %535 = vst [vmem:[#allocation2 + $0x1b8] sm:$0xff] 0.0
          %536 = vst [vmem:[#allocation2 + $0x1c0] sm:$0xff] 0.0
          %537 = vst [vmem:[#allocation2 + $0x1c8] sm:$0xff] 0.0
          %538 = vst [vmem:[#allocation2 + $0x1d0] sm:$0xff] 0.0
          %539 = vst [vmem:[#allocation2 + $0x1d8] sm:$0xff] 0.0
          %540 = vst [vmem:[#allocation2 + $0x1e0] sm:$0xff] 0.0
          %541 = vst [vmem:[#allocation2 + $0x1e8] sm:$0xff] 0.0
          %542 = vst [vmem:[#allocation2 + $0x1f0] sm:$0xff] 0.0
          %543 = vst [vmem:[#allocation2 + $0x1f8] sm:$0xff] 0.0
          %544 = vst [vmem:[#allocation2 + $0x200] sm:$0xff] 0.0
          %545 = vst [vmem:[#allocation2 + $0x208] sm:$0xff] 0.0
          %546 = vst [vmem:[#allocation2 + $0x210] sm:$0xff] 0.0
          %547 = vst [vmem:[#allocation2 + $0x218] sm:$0xff] 0.0
          %548 = vst [vmem:[#allocation2 + $0x220] sm:$0xff] 0.0
          %549 = vst [vmem:[#allocation2 + $0x228] sm:$0xff] 0.0
          %550 = vst [vmem:[#allocation2 + $0x230] sm:$0xff] 0.0
          %551 = vst [vmem:[#allocation2 + $0x238] sm:$0xff] 0.0
          %552 = vst [vmem:[#allocation2 + $0x240] sm:$0xff] 0.0
          %553 = vst [vmem:[#allocation2 + $0x248] sm:$0xff] 0.0
          %554 = vst [vmem:[#allocation2 + $0x250] sm:$0xff] 0.0
          %555 = vst [vmem:[#allocation2 + $0x258] sm:$0xff] 0.0
          %556 = vst [vmem:[#allocation2 + $0x260] sm:$0xff] 0.0
          %557 = vst [vmem:[#allocation2 + $0x268] sm:$0xff] 0.0
          %558 = vst [vmem:[#allocation2 + $0x270] sm:$0xff] 0.0
          %559 = vst [vmem:[#allocation2 + $0x278] sm:$0xff] 0.0
          %560 = vst [vmem:[#allocation2 + $0x280] sm:$0xff] 0.0
          %561 = vst [vmem:[#allocation2 + $0x288] sm:$0xff] 0.0
          %562 = vst [vmem:[#allocation2 + $0x290] sm:$0xff] 0.0
          %563 = vst [vmem:[#allocation2 + $0x298] sm:$0xff] 0.0
          %564 = vst [vmem:[#allocation2 + $0x2a0] sm:$0xff] 0.0
          %565 = vst [vmem:[#allocation2 + $0x2a8] sm:$0xff] 0.0
          %566 = vst [vmem:[#allocation2 + $0x2b0] sm:$0xff] 0.0
          %567 = vst [vmem:[#allocation2 + $0x2b8] sm:$0xff] 0.0
          %568 = vst [vmem:[#allocation2 + $0x2c0] sm:$0xff] 0.0
          %569 = vst [vmem:[#allocation2 + $0x2c8] sm:$0xff] 0.0
          %570 = vst [vmem:[#allocation2 + $0x2d0] sm:$0xff] 0.0
          %571 = vst [vmem:[#allocation2 + $0x2d8] sm:$0xff] 0.0
          %572 = vst [vmem:[#allocation2 + $0x2e0] sm:$0xff] 0.0
          %573 = vst [vmem:[#allocation2 + $0x2e8] sm:$0xff] 0.0
          %574 = vst [vmem:[#allocation2 + $0x2f0] sm:$0xff] 0.0
          %575 = vst [vmem:[#allocation2 + $0x2f8] sm:$0xff] 0.0
        $region68: #{tpu_custom_call.1} parent=63 // pred_fallthru
          _
        %v576 = vld [vmem:[%s450] sm:$0xf]
        %v577 = vld [vmem:[%s450 + $0x4] sm:$0xf]
        %v578 = vld [vmem:[%s450 + $0x8] sm:$0xf]
        %v579 = vld [vmem:[%s450 + $0xc] sm:$0xf]
        %v580 = vld [vmem:[%s450 + $0x10] sm:$0xf]
        %v581 = vld [vmem:[%s450 + $0x14] sm:$0xf]
        %v582 = vld [vmem:[%s450 + $0x18] sm:$0xf]
        %v583 = vld [vmem:[%s450 + $0x1c] sm:$0xf]
        %v584 = vld [vmem:[%s450 + $0x20] sm:$0xf]
        %v585 = vld [vmem:[%s450 + $0x24] sm:$0xf]
        %v586 = vld [vmem:[%s450 + $0x28] sm:$0xf]
        %v587 = vld [vmem:[%s450 + $0x2c] sm:$0xf]
        %v588 = vld [vmem:[%s450 + $0x30] sm:$0xf]
        %v589 = vld [vmem:[%s450 + $0x34] sm:$0xf]
        %v590 = vld [vmem:[%s450 + $0x38] sm:$0xf]
        %v591 = vld [vmem:[%s450 + $0x3c] sm:$0xf]
        %v592 = vld [vmem:[%s450 + $0x40] sm:$0xf]
        %v593 = vld [vmem:[%s450 + $0x44] sm:$0xf]
        %v594 = vld [vmem:[%s450 + $0x48] sm:$0xf]
        %v595 = vld [vmem:[%s450 + $0x4c] sm:$0xf]
        %v596 = vld [vmem:[%s450 + $0x50] sm:$0xf]
        %v597 = vld [vmem:[%s450 + $0x54] sm:$0xf]
        %v598 = vld [vmem:[%s450 + $0x58] sm:$0xf]
        %v599 = vld [vmem:[%s450 + $0x5c] sm:$0xf]
        %v600 = vld [vmem:[%s450 + $0x60] sm:$0xf]
        %v601 = vld [vmem:[%s450 + $0x64] sm:$0xf]
        %v602 = vld [vmem:[%s450 + $0x68] sm:$0xf]
        %v603 = vld [vmem:[%s450 + $0x6c] sm:$0xf]
        %v604 = vld [vmem:[%s450 + $0x70] sm:$0xf]
        %v605 = vld [vmem:[%s450 + $0x74] sm:$0xf]
        %v606 = vld [vmem:[%s450 + $0x78] sm:$0xf]
        %v607 = vld [vmem:[%s450 + $0x7c] sm:$0xf]
        %v608 = vld [vmem:[%s450 + $0x80] sm:$0xf]
        %v609 = vld [vmem:[%s450 + $0x84] sm:$0xf]
        %v610 = vld [vmem:[%s450 + $0x88] sm:$0xf]
        %v611 = vld [vmem:[%s450 + $0x8c] sm:$0xf]
        %v612 = vld [vmem:[%s450 + $0x90] sm:$0xf]
        %v613 = vld [vmem:[%s450 + $0x94] sm:$0xf]
        %v614 = vld [vmem:[%s450 + $0x98] sm:$0xf]
        %v615 = vld [vmem:[%s450 + $0x9c] sm:$0xf]
        %v616 = vld [vmem:[%s450 + $0xa0] sm:$0xf]
        %v617 = vld [vmem:[%s450 + $0xa4] sm:$0xf]
        %v618 = vld [vmem:[%s450 + $0xa8] sm:$0xf]
        %v619 = vld [vmem:[%s450 + $0xac] sm:$0xf]
        %v620 = vld [vmem:[%s450 + $0xb0] sm:$0xf]
        %v621 = vld [vmem:[%s450 + $0xb4] sm:$0xf]
        %v622 = vld [vmem:[%s450 + $0xb8] sm:$0xf]
        %v623 = vld [vmem:[%s450 + $0xbc] sm:$0xf]
        %v624 = vld [vmem:[%s450 + $0xc0] sm:$0xf]
        %v625 = vld [vmem:[%s450 + $0xc4] sm:$0xf]
        %v626 = vld [vmem:[%s450 + $0xc8] sm:$0xf]
        %v627 = vld [vmem:[%s450 + $0xcc] sm:$0xf]
        %v628 = vld [vmem:[%s450 + $0xd0] sm:$0xf]
        %v629 = vld [vmem:[%s450 + $0xd4] sm:$0xf]
        %v630 = vld [vmem:[%s450 + $0xd8] sm:$0xf]
        %v631 = vld [vmem:[%s450 + $0xdc] sm:$0xf]
        %v632 = vld [vmem:[%s450 + $0xe0] sm:$0xf]
        %v633 = vld [vmem:[%s450 + $0xe4] sm:$0xf]
        %v634 = vld [vmem:[%s450 + $0xe8] sm:$0xf]
        %v635 = vld [vmem:[%s450 + $0xec] sm:$0xf]
        %v636 = vld [vmem:[%s450 + $0xf0] sm:$0xf]
        %v637 = vld [vmem:[%s450 + $0xf4] sm:$0xf]
        %v638 = vld [vmem:[%s450 + $0xf8] sm:$0xf]
        %v639 = vld [vmem:[%s450 + $0xfc] sm:$0xf]
        %v640 = vld [vmem:[%s455] sm:$0xf]
        %v641 = vld [vmem:[%s455 + $0x4] sm:$0xf]
        %v642 = vld [vmem:[%s455 + $0x8] sm:$0xf]
        %v643 = vld [vmem:[%s455 + $0xc] sm:$0xf]
        %v644 = vld [vmem:[%s455 + $0x10] sm:$0xf]
        %v645 = vld [vmem:[%s455 + $0x14] sm:$0xf]
        %v646 = vld [vmem:[%s455 + $0x18] sm:$0xf]
        %v647 = vld [vmem:[%s455 + $0x1c] sm:$0xf]
        %v648 = vld [vmem:[%s455 + $0x20] sm:$0xf]
        %v649 = vld [vmem:[%s455 + $0x24] sm:$0xf]
        %v650 = vld [vmem:[%s455 + $0x28] sm:$0xf]
        %v651 = vld [vmem:[%s455 + $0x2c] sm:$0xf]
        %v652 = vld [vmem:[%s455 + $0x30] sm:$0xf]
        %v653 = vld [vmem:[%s455 + $0x34] sm:$0xf]
        %v654 = vld [vmem:[%s455 + $0x38] sm:$0xf]
        %v655 = vld [vmem:[%s455 + $0x3c] sm:$0xf]
        %v656 = vld [vmem:[%s455 + $0x40] sm:$0xf]
        %v657 = vld [vmem:[%s455 + $0x44] sm:$0xf]
        %v658 = vld [vmem:[%s455 + $0x48] sm:$0xf]
        %v659 = vld [vmem:[%s455 + $0x4c] sm:$0xf]
        %v660 = vld [vmem:[%s455 + $0x50] sm:$0xf]
        %v661 = vld [vmem:[%s455 + $0x54] sm:$0xf]
        %v662 = vld [vmem:[%s455 + $0x58] sm:$0xf]
        %v663 = vld [vmem:[%s455 + $0x5c] sm:$0xf]
        %v664 = vld [vmem:[%s455 + $0x60] sm:$0xf]
        %v665 = vld [vmem:[%s455 + $0x64] sm:$0xf]
        %v666 = vld [vmem:[%s455 + $0x68] sm:$0xf]
        %v667 = vld [vmem:[%s455 + $0x6c] sm:$0xf]
        %v668 = vld [vmem:[%s455 + $0x70] sm:$0xf]
        %v669 = vld [vmem:[%s455 + $0x74] sm:$0xf]
        %v670 = vld [vmem:[%s455 + $0x78] sm:$0xf]
        %v671 = vld [vmem:[%s455 + $0x7c] sm:$0xf]
        %v672 = vld [vmem:[%s455 + $0x80] sm:$0xf]
        %v673 = vld [vmem:[%s455 + $0x84] sm:$0xf]
        %v674 = vld [vmem:[%s455 + $0x88] sm:$0xf]
        %v675 = vld [vmem:[%s455 + $0x8c] sm:$0xf]
        %v676 = vld [vmem:[%s455 + $0x90] sm:$0xf]
        %v677 = vld [vmem:[%s455 + $0x94] sm:$0xf]
        %v678 = vld [vmem:[%s455 + $0x98] sm:$0xf]
        %v679 = vld [vmem:[%s455 + $0x9c] sm:$0xf]
        %v680 = vld [vmem:[%s455 + $0xa0] sm:$0xf]
        %v681 = vld [vmem:[%s455 + $0xa4] sm:$0xf]
        %v682 = vld [vmem:[%s455 + $0xa8] sm:$0xf]
        %v683 = vld [vmem:[%s455 + $0xac] sm:$0xf]
        %v684 = vld [vmem:[%s455 + $0xb0] sm:$0xf]
        %v685 = vld [vmem:[%s455 + $0xb4] sm:$0xf]
        %v686 = vld [vmem:[%s455 + $0xb8] sm:$0xf]
        %v687 = vld [vmem:[%s455 + $0xbc] sm:$0xf]
        %v688 = vld [vmem:[%s455 + $0xc0] sm:$0xf]
        %v689 = vld [vmem:[%s455 + $0xc4] sm:$0xf]
        %v690 = vld [vmem:[%s455 + $0xc8] sm:$0xf]
        %v691 = vld [vmem:[%s455 + $0xcc] sm:$0xf]
        %v692 = vld [vmem:[%s455 + $0xd0] sm:$0xf]
        %v693 = vld [vmem:[%s455 + $0xd4] sm:$0xf]
        %v694 = vld [vmem:[%s455 + $0xd8] sm:$0xf]
        %v695 = vld [vmem:[%s455 + $0xdc] sm:$0xf]
        %v696 = vld [vmem:[%s455 + $0xe0] sm:$0xf]
        %v697 = vld [vmem:[%s455 + $0xe4] sm:$0xf]
        %v698 = vld [vmem:[%s455 + $0xe8] sm:$0xf]
        %v699 = vld [vmem:[%s455 + $0xec] sm:$0xf]
        %v700 = vld [vmem:[%s455 + $0xf0] sm:$0xf]
        %v701 = vld [vmem:[%s455 + $0xf4] sm:$0xf]
        %v702 = vld [vmem:[%s455 + $0xf8] sm:$0xf]
        %v703 = vld [vmem:[%s455 + $0xfc] sm:$0xf]
        %v704 = vld [vmem:[%s460] sm:$0xf]
        %v705 = vld [vmem:[%s460 + $0x4] sm:$0xf]
        %v706 = vld [vmem:[%s460 + $0x8] sm:$0xf]
        %v707 = vld [vmem:[%s460 + $0xc] sm:$0xf]
        %v708 = vld [vmem:[%s460 + $0x10] sm:$0xf]
        %v709 = vld [vmem:[%s460 + $0x14] sm:$0xf]
        %v710 = vld [vmem:[%s460 + $0x18] sm:$0xf]
        %v711 = vld [vmem:[%s460 + $0x1c] sm:$0xf]
        %v712 = vld [vmem:[%s460 + $0x20] sm:$0xf]
        %v713 = vld [vmem:[%s460 + $0x24] sm:$0xf]
        %v714 = vld [vmem:[%s460 + $0x28] sm:$0xf]
        %v715 = vld [vmem:[%s460 + $0x2c] sm:$0xf]
        %v716 = vld [vmem:[%s460 + $0x30] sm:$0xf]
        %v717 = vld [vmem:[%s460 + $0x34] sm:$0xf]
        %v718 = vld [vmem:[%s460 + $0x38] sm:$0xf]
        %v719 = vld [vmem:[%s460 + $0x3c] sm:$0xf]
        %v720 = vld [vmem:[%s460 + $0x40] sm:$0xf]
        %v721 = vld [vmem:[%s460 + $0x44] sm:$0xf]
        %v722 = vld [vmem:[%s460 + $0x48] sm:$0xf]
        %v723 = vld [vmem:[%s460 + $0x4c] sm:$0xf]
        %v724 = vld [vmem:[%s460 + $0x50] sm:$0xf]
        %v725 = vld [vmem:[%s460 + $0x54] sm:$0xf]
        %v726 = vld [vmem:[%s460 + $0x58] sm:$0xf]
        %v727 = vld [vmem:[%s460 + $0x5c] sm:$0xf]
        %v728 = vld [vmem:[%s460 + $0x60] sm:$0xf]
        %v729 = vld [vmem:[%s460 + $0x64] sm:$0xf]
        %v730 = vld [vmem:[%s460 + $0x68] sm:$0xf]
        %v731 = vld [vmem:[%s460 + $0x6c] sm:$0xf]
        %v732 = vld [vmem:[%s460 + $0x70] sm:$0xf]
        %v733 = vld [vmem:[%s460 + $0x74] sm:$0xf]
        %v734 = vld [vmem:[%s460 + $0x78] sm:$0xf]
        %v735 = vld [vmem:[%s460 + $0x7c] sm:$0xf]
        %v736 = vld [vmem:[%s460 + $0x80] sm:$0xf]
        %v737 = vld [vmem:[%s460 + $0x84] sm:$0xf]
        %v738 = vld [vmem:[%s460 + $0x88] sm:$0xf]
        %v739 = vld [vmem:[%s460 + $0x8c] sm:$0xf]
        %v740 = vld [vmem:[%s460 + $0x90] sm:$0xf]
        %v741 = vld [vmem:[%s460 + $0x94] sm:$0xf]
        %v742 = vld [vmem:[%s460 + $0x98] sm:$0xf]
        %v743 = vld [vmem:[%s460 + $0x9c] sm:$0xf]
        %v744 = vld [vmem:[%s460 + $0xa0] sm:$0xf]
        %v745 = vld [vmem:[%s460 + $0xa4] sm:$0xf]
        %v746 = vld [vmem:[%s460 + $0xa8] sm:$0xf]
        %v747 = vld [vmem:[%s460 + $0xac] sm:$0xf]
        %v748 = vld [vmem:[%s460 + $0xb0] sm:$0xf]
        %v749 = vld [vmem:[%s460 + $0xb4] sm:$0xf]
        %v750 = vld [vmem:[%s460 + $0xb8] sm:$0xf]
        %v751 = vld [vmem:[%s460 + $0xbc] sm:$0xf]
        %v752 = vld [vmem:[%s460 + $0xc0] sm:$0xf]
        %v753 = vld [vmem:[%s460 + $0xc4] sm:$0xf]
        %v754 = vld [vmem:[%s460 + $0xc8] sm:$0xf]
        %v755 = vld [vmem:[%s460 + $0xcc] sm:$0xf]
        %v756 = vld [vmem:[%s460 + $0xd0] sm:$0xf]
        %v757 = vld [vmem:[%s460 + $0xd4] sm:$0xf]
        %v758 = vld [vmem:[%s460 + $0xd8] sm:$0xf]
        %v759 = vld [vmem:[%s460 + $0xdc] sm:$0xf]
        %v760 = vld [vmem:[%s460 + $0xe0] sm:$0xf]
        %v761 = vld [vmem:[%s460 + $0xe4] sm:$0xf]
        %v762 = vld [vmem:[%s460 + $0xe8] sm:$0xf]
        %v763 = vld [vmem:[%s460 + $0xec] sm:$0xf]
        %v764 = vld [vmem:[%s460 + $0xf0] sm:$0xf]
        %v765 = vld [vmem:[%s460 + $0xf4] sm:$0xf]
        %v766 = vld [vmem:[%s460 + $0xf8] sm:$0xf]
        %v767 = vld [vmem:[%s460 + $0xfc] sm:$0xf]
        %v768 = vld [vmem:[%s465] sm:$0xff]
        %v769 = vld [vmem:[%s465 + $0x8] sm:$0xff]
        %v770 = vld [vmem:[%s465 + $0x10] sm:$0xff]
        %v771 = vld [vmem:[%s465 + $0x18] sm:$0xff]
        %v772 = vld [vmem:[%s465 + $0x20] sm:$0xff]
        %v773 = vld [vmem:[%s465 + $0x28] sm:$0xff]
        %v774 = vld [vmem:[%s465 + $0x30] sm:$0xff]
        %v775 = vld [vmem:[%s465 + $0x38] sm:$0xff]
        %v776 = vld [vmem:[%s465 + $0x40] sm:$0xff]
        %v777 = vld [vmem:[%s465 + $0x48] sm:$0xff]
        %v778 = vld [vmem:[%s465 + $0x50] sm:$0xff]
        %v779 = vld [vmem:[%s465 + $0x58] sm:$0xff]
        %v780 = vld [vmem:[%s465 + $0x60] sm:$0xff]
        %v781 = vld [vmem:[%s465 + $0x68] sm:$0xff]
        %v782 = vld [vmem:[%s465 + $0x70] sm:$0xff]
        %v783 = vld [vmem:[%s465 + $0x78] sm:$0xff]
        %v784 = vld [vmem:[%s0] sm:$0xff]
        %v785 = vld [vmem:[%s0 + $0x8] sm:$0xff]
        %v786 = vld [vmem:[%s0 + $0x10] sm:$0xff]
        %v787 = vld [vmem:[%s0 + $0x18] sm:$0xff]
        %v788 = vld [vmem:[%s0 + $0x20] sm:$0xff]
        %v789 = vld [vmem:[%s0 + $0x28] sm:$0xff]
        %v790 = vld [vmem:[%s0 + $0x30] sm:$0xff]
        %v791 = vld [vmem:[%s0 + $0x38] sm:$0xff]
        %v792 = vld [vmem:[%s0 + $0x40] sm:$0xff]
        %v793 = vld [vmem:[%s0 + $0x48] sm:$0xff]
        %v794 = vld [vmem:[%s0 + $0x50] sm:$0xff]
        %v795 = vld [vmem:[%s0 + $0x58] sm:$0xff]
        %v796 = vld [vmem:[%s0 + $0x60] sm:$0xff]
        %v797 = vld [vmem:[%s0 + $0x68] sm:$0xff]
        %v798 = vld [vmem:[%s0 + $0x70] sm:$0xff]
        %v799 = vld [vmem:[%s0 + $0x78] sm:$0xff]
        %v800 = vld [vmem:[%s0 + $0x80] sm:$0xff]
        %v801 = vld [vmem:[%s0 + $0x88] sm:$0xff]
        %v802 = vld [vmem:[%s0 + $0x90] sm:$0xff]
        %v803 = vld [vmem:[%s0 + $0x98] sm:$0xff]
        %v804 = vld [vmem:[%s0 + $0xa0] sm:$0xff]
        %v805 = vld [vmem:[%s0 + $0xa8] sm:$0xff]
        %v806 = vld [vmem:[%s0 + $0xb0] sm:$0xff]
        %v807 = vld [vmem:[%s0 + $0xb8] sm:$0xff]
        %v808 = vld [vmem:[%s0 + $0xc0] sm:$0xff]
        %v809 = vld [vmem:[%s0 + $0xc8] sm:$0xff]
        %v810 = vld [vmem:[%s0 + $0xd0] sm:$0xff]
        %v811 = vld [vmem:[%s0 + $0xd8] sm:$0xff]
        %v812 = vld [vmem:[%s0 + $0xe0] sm:$0xff]
        %v813 = vld [vmem:[%s0 + $0xe8] sm:$0xff]
        %v814 = vld [vmem:[%s0 + $0xf0] sm:$0xff]
        %v815 = vld [vmem:[%s0 + $0xf8] sm:$0xff]
        %v816 = vld [vmem:[%s0 + $0x100] sm:$0xff]
        %v817 = vld [vmem:[%s0 + $0x108] sm:$0xff]
        %v818 = vld [vmem:[%s0 + $0x110] sm:$0xff]
        %v819 = vld [vmem:[%s0 + $0x118] sm:$0xff]
        %v820 = vld [vmem:[%s0 + $0x120] sm:$0xff]
        %v821 = vld [vmem:[%s0 + $0x128] sm:$0xff]
        %v822 = vld [vmem:[%s0 + $0x130] sm:$0xff]
        %v823 = vld [vmem:[%s0 + $0x138] sm:$0xff]
        %v824 = vld [vmem:[%s0 + $0x140] sm:$0xff]
        %v825 = vld [vmem:[%s0 + $0x148] sm:$0xff]
        %v826 = vld [vmem:[%s0 + $0x150] sm:$0xff]
        %v827 = vld [vmem:[%s0 + $0x158] sm:$0xff]
        %v828 = vld [vmem:[%s0 + $0x160] sm:$0xff]
        %v829 = vld [vmem:[%s0 + $0x168] sm:$0xff]
        %v830 = vld [vmem:[%s0 + $0x170] sm:$0xff]
        %v831 = vld [vmem:[%s0 + $0x178] sm:$0xff]
        %v832 = vld [vmem:[%s468] sm:$0x1]
        %v834 = vlaneseq
        %v835 = vshrl.u32 %v834, 7
        %v836 = vsub.s32 0, %v835
        %v837 = vrot.slane %v832, %v836
        %v887 = vunpack.c.l.b16 %v784
        %v888 = vunpack.c.h.b16 %v784
        %v889 = vunpack.c.l.b16 %v785
        %v890 = vunpack.c.h.b16 %v785
        %v891 = vunpack.c.l.b16 %v786
        %v892 = vunpack.c.h.b16 %v786
        %v893 = vunpack.c.l.b16 %v787
        %v894 = vunpack.c.h.b16 %v787
        %v895 = vunpack.c.l.b16 %v788
        %v896 = vunpack.c.h.b16 %v788
        %v897 = vunpack.c.l.b16 %v789
        %v898 = vunpack.c.h.b16 %v789
        %v899 = vunpack.c.l.b16 %v790
        %v900 = vunpack.c.h.b16 %v790
        %v901 = vunpack.c.l.b16 %v791
        %v902 = vunpack.c.h.b16 %v791
        %v903 = vunpack.c.l.b16 %v792
        %v904 = vunpack.c.h.b16 %v792
        %v905 = vunpack.c.l.b16 %v793
        %v906 = vunpack.c.h.b16 %v793
        %v907 = vunpack.c.l.b16 %v794
        %v908 = vunpack.c.h.b16 %v794
        %v909 = vunpack.c.l.b16 %v795
        %v910 = vunpack.c.h.b16 %v795
        %v911 = vunpack.c.l.b16 %v796
        %v912 = vunpack.c.h.b16 %v796
        %v913 = vunpack.c.l.b16 %v797
        %v914 = vunpack.c.h.b16 %v797
        %v915 = vunpack.c.l.b16 %v798
        %v916 = vunpack.c.h.b16 %v798
        %v917 = vunpack.c.l.b16 %v799
        %v918 = vunpack.c.h.b16 %v799
        %v919 = vunpack.c.l.b16 %v800
        %v920 = vunpack.c.h.b16 %v800
        %v921 = vunpack.c.l.b16 %v801
        %v922 = vunpack.c.h.b16 %v801
        %v923 = vunpack.c.l.b16 %v802
        %v924 = vunpack.c.h.b16 %v802
        %v925 = vunpack.c.l.b16 %v803
        %v926 = vunpack.c.h.b16 %v803
        %v927 = vunpack.c.l.b16 %v804
        %v928 = vunpack.c.h.b16 %v804
        %v929 = vunpack.c.l.b16 %v805
        %v930 = vunpack.c.h.b16 %v805
        %v931 = vunpack.c.l.b16 %v806
        %v932 = vunpack.c.h.b16 %v806
        %v933 = vunpack.c.l.b16 %v807
        %v934 = vunpack.c.h.b16 %v807
        %v935 = vunpack.c.l.b16 %v808
        %v936 = vunpack.c.h.b16 %v808
        %v937 = vunpack.c.l.b16 %v809
        %v938 = vunpack.c.h.b16 %v809
        %v939 = vunpack.c.l.b16 %v810
        %v940 = vunpack.c.h.b16 %v810
        %v941 = vunpack.c.l.b16 %v811
        %v942 = vunpack.c.h.b16 %v811
        %v943 = vunpack.c.l.b16 %v812
        %v944 = vunpack.c.h.b16 %v812
        %v945 = vunpack.c.l.b16 %v813
        %v946 = vunpack.c.h.b16 %v813
        %v947 = vunpack.c.l.b16 %v814
        %v948 = vunpack.c.h.b16 %v814
        %v949 = vunpack.c.l.b16 %v815
        %v950 = vunpack.c.h.b16 %v815
        %v951 = vunpack.c.l.b16 %v816
        %v952 = vunpack.c.h.b16 %v816
        %v953 = vunpack.c.l.b16 %v817
        %v954 = vunpack.c.h.b16 %v817
        %v955 = vunpack.c.l.b16 %v818
        %v956 = vunpack.c.h.b16 %v818
        %v957 = vunpack.c.l.b16 %v819
        %v958 = vunpack.c.h.b16 %v819
        %v959 = vunpack.c.l.b16 %v820
        %v960 = vunpack.c.h.b16 %v820
        %v961 = vunpack.c.l.b16 %v821
        %v962 = vunpack.c.h.b16 %v821
        %v963 = vunpack.c.l.b16 %v822
        %v964 = vunpack.c.h.b16 %v822
        %v965 = vunpack.c.l.b16 %v823
        %v966 = vunpack.c.h.b16 %v823
        %v967 = vunpack.c.l.b16 %v824
        %v968 = vunpack.c.h.b16 %v824
        %v969 = vunpack.c.l.b16 %v825
        %v970 = vunpack.c.h.b16 %v825
        %v971 = vunpack.c.l.b16 %v826
        %v972 = vunpack.c.h.b16 %v826
        %v973 = vunpack.c.l.b16 %v827
        %v974 = vunpack.c.h.b16 %v827
        %v975 = vunpack.c.l.b16 %v828
        %v976 = vunpack.c.h.b16 %v828
        %v977 = vunpack.c.l.b16 %v829
        %v978 = vunpack.c.h.b16 %v829
        %v979 = vunpack.c.l.b16 %v830
        %v980 = vunpack.c.h.b16 %v830
        %v981 = vunpack.c.l.b16 %v831
        %v982 = vunpack.c.h.b16 %v831
        %v983 = vpack.c.b16 %v891, %v887
        %v984 = vpack.c.b16 %v892, %v888
        %v985 = vpack.c.b16 %v893, %v889
        %v986 = vpack.c.b16 %v894, %v890
        %v987 = vpack.c.b16 %v899, %v895
        %v988 = vpack.c.b16 %v900, %v896
        %v989 = vpack.c.b16 %v901, %v897
        %v990 = vpack.c.b16 %v902, %v898
        %v991 = vpack.c.b16 %v907, %v903
        %v992 = vpack.c.b16 %v908, %v904
        %v993 = vpack.c.b16 %v909, %v905
        %v994 = vpack.c.b16 %v910, %v906
        %v995 = vpack.c.b16 %v915, %v911
        %v996 = vpack.c.b16 %v916, %v912
        %v997 = vpack.c.b16 %v917, %v913
        %v998 = vpack.c.b16 %v918, %v914
        %v999 = vpack.c.b16 %v923, %v919
        %v1000 = vpack.c.b16 %v924, %v920
        %v1001 = vpack.c.b16 %v925, %v921
        %v1002 = vpack.c.b16 %v926, %v922
        %v1003 = vpack.c.b16 %v931, %v927
        %v1004 = vpack.c.b16 %v932, %v928
        %v1005 = vpack.c.b16 %v933, %v929
        %v1006 = vpack.c.b16 %v934, %v930
        %v1007 = vpack.c.b16 %v939, %v935
        %v1008 = vpack.c.b16 %v940, %v936
        %v1009 = vpack.c.b16 %v941, %v937
        %v1010 = vpack.c.b16 %v942, %v938
        %v1011 = vpack.c.b16 %v947, %v943
        %v1012 = vpack.c.b16 %v948, %v944
        %v1013 = vpack.c.b16 %v949, %v945
        %v1014 = vpack.c.b16 %v950, %v946
        %v1015 = vpack.c.b16 %v955, %v951
        %v1016 = vpack.c.b16 %v956, %v952
        %v1017 = vpack.c.b16 %v957, %v953
        %v1018 = vpack.c.b16 %v958, %v954
        %v1019 = vpack.c.b16 %v963, %v959
        %v1020 = vpack.c.b16 %v964, %v960
        %v1021 = vpack.c.b16 %v965, %v961
        %v1022 = vpack.c.b16 %v966, %v962
        %v1023 = vpack.c.b16 %v971, %v967
        %v1024 = vpack.c.b16 %v972, %v968
        %v1025 = vpack.c.b16 %v973, %v969
        %v1026 = vpack.c.b16 %v974, %v970
        %v1027 = vpack.c.b16 %v979, %v975
        %v1028 = vpack.c.b16 %v980, %v976
        %v1029 = vpack.c.b16 %v981, %v977
        %v1030 = vpack.c.b16 %v982, %v978
        %v1143 = vunpack.c.l.b16 %v576
        %v1144 = vunpack.c.l.b16 %v577
        %v1145 = vunpack.c.l.b16 %v578
        %v1146 = vunpack.c.l.b16 %v579
        %v1147 = vunpack.c.l.b16 %v580
        %v1148 = vunpack.c.l.b16 %v581
        %v1149 = vunpack.c.l.b16 %v582
        %v1150 = vunpack.c.l.b16 %v583
        %v1151 = vunpack.c.l.b16 %v584
        %v1152 = vunpack.c.l.b16 %v585
        %v1153 = vunpack.c.l.b16 %v586
        %v1154 = vunpack.c.l.b16 %v587
        %v1155 = vunpack.c.l.b16 %v588
        %v1156 = vunpack.c.l.b16 %v589
        %v1157 = vunpack.c.l.b16 %v590
        %v1158 = vunpack.c.l.b16 %v591
        %v1159 = vunpack.c.l.b16 %v592
        %v1160 = vunpack.c.l.b16 %v593
        %v1161 = vunpack.c.l.b16 %v594
        %v1162 = vunpack.c.l.b16 %v595
        %v1163 = vunpack.c.l.b16 %v596
        %v1164 = vunpack.c.l.b16 %v597
        %v1165 = vunpack.c.l.b16 %v598
        %v1166 = vunpack.c.l.b16 %v599
        %v1167 = vunpack.c.l.b16 %v600
        %v1168 = vunpack.c.l.b16 %v601
        %v1169 = vunpack.c.l.b16 %v602
        %v1170 = vunpack.c.l.b16 %v603
        %v1171 = vunpack.c.l.b16 %v604
        %v1172 = vunpack.c.l.b16 %v605
        %v1173 = vunpack.c.l.b16 %v606
        %v1174 = vunpack.c.l.b16 %v607
        %v1175 = vunpack.c.l.b16 %v608
        %v1176 = vunpack.c.l.b16 %v609
        %v1177 = vunpack.c.l.b16 %v610
        %v1178 = vunpack.c.l.b16 %v611
        %v1179 = vunpack.c.l.b16 %v612
        %v1180 = vunpack.c.l.b16 %v613
        %v1181 = vunpack.c.l.b16 %v614
        %v1182 = vunpack.c.l.b16 %v615
        %v1183 = vunpack.c.l.b16 %v616
        %v1184 = vunpack.c.l.b16 %v617
        %v1185 = vunpack.c.l.b16 %v618
        %v1186 = vunpack.c.l.b16 %v619
        %v1187 = vunpack.c.l.b16 %v620
        %v1188 = vunpack.c.l.b16 %v621
        %v1189 = vunpack.c.l.b16 %v622
        %v1190 = vunpack.c.l.b16 %v623
        %v1191 = vunpack.c.l.b16 %v624
        %v1192 = vunpack.c.l.b16 %v625
        %v1193 = vunpack.c.l.b16 %v626
        %v1194 = vunpack.c.l.b16 %v627
        %v1195 = vunpack.c.l.b16 %v628
        %v1196 = vunpack.c.l.b16 %v629
        %v1197 = vunpack.c.l.b16 %v630
        %v1198 = vunpack.c.l.b16 %v631
        %v1199 = vunpack.c.l.b16 %v632
        %v1200 = vunpack.c.l.b16 %v633
        %v1201 = vunpack.c.l.b16 %v634
        %v1202 = vunpack.c.l.b16 %v635
        %v1203 = vunpack.c.l.b16 %v636
        %v1204 = vunpack.c.l.b16 %v637
        %v1205 = vunpack.c.l.b16 %v638
        %v1206 = vunpack.c.l.b16 %v639
        %v1207 = vpack.c.b16 %v1144, %v1143
        %v1208 = vpack.c.b16 %v1146, %v1145
        %v1209 = vpack.c.b16 %v1148, %v1147
        %v1210 = vpack.c.b16 %v1150, %v1149
        %v1211 = vpack.c.b16 %v1152, %v1151
        %v1212 = vpack.c.b16 %v1154, %v1153
        %v1213 = vpack.c.b16 %v1156, %v1155
        %v1214 = vpack.c.b16 %v1158, %v1157
        %v1215 = vpack.c.b16 %v1160, %v1159
        %v1216 = vpack.c.b16 %v1162, %v1161
        %v1217 = vpack.c.b16 %v1164, %v1163
        %v1218 = vpack.c.b16 %v1166, %v1165
        %v1219 = vpack.c.b16 %v1168, %v1167
        %v1220 = vpack.c.b16 %v1170, %v1169
        %v1221 = vpack.c.b16 %v1172, %v1171
        %v1222 = vpack.c.b16 %v1174, %v1173
        %v1223 = vpack.c.b16 %v1176, %v1175
        %v1224 = vpack.c.b16 %v1178, %v1177
        %v1225 = vpack.c.b16 %v1180, %v1179
        %v1226 = vpack.c.b16 %v1182, %v1181
        %v1227 = vpack.c.b16 %v1184, %v1183
        %v1228 = vpack.c.b16 %v1186, %v1185
        %v1229 = vpack.c.b16 %v1188, %v1187
        %v1230 = vpack.c.b16 %v1190, %v1189
        %v1231 = vpack.c.b16 %v1192, %v1191
        %v1232 = vpack.c.b16 %v1194, %v1193
        %v1233 = vpack.c.b16 %v1196, %v1195
        %v1234 = vpack.c.b16 %v1198, %v1197
        %v1235 = vpack.c.b16 %v1200, %v1199
        %v1236 = vpack.c.b16 %v1202, %v1201
        %v1237 = vpack.c.b16 %v1204, %v1203
        %v1238 = vpack.c.b16 %v1206, %v1205
        %1271 = vmatprep.subr.bf16.mxu0 0
        %1272 = vmatpush1.bf16.msra.mxu0 %v1207
        %1273 = vmatprep.subr.bf16.mxu0 0
        %1274 = vmatpush1.bf16.msra.mxu0 %v1208
        %1275 = vmatprep.subr.bf16.mxu0 0
        %1276 = vmatpush1.bf16.msra.mxu0 %v1209
        %1277 = vmatprep.subr.bf16.mxu0 0
        %1278 = vmatpush1.bf16.msra.mxu0 %v1210
        %1279 = vmatprep.subr.bf16.mxu0 0
        %1280 = vmatpush1.bf16.msra.mxu0 %v1211
        %1281 = vmatprep.subr.bf16.mxu0 0
        %1282 = vmatpush1.bf16.msra.mxu0 %v1212
        %1283 = vmatprep.subr.bf16.mxu0 0
        %1284 = vmatpush1.bf16.msra.mxu0 %v1213
        %1285 = vmatprep.subr.bf16.mxu0 0
        %1286 = vmatpush1.bf16.msra.mxu0 %v1214
        %1287 = vmatprep.subr.bf16.mxu0 0
        %1288 = vmatpush1.bf16.msra.mxu0 %v1215
        %1289 = vmatprep.subr.bf16.mxu0 0
        %1290 = vmatpush1.bf16.msra.mxu0 %v1216
        %1291 = vmatprep.subr.bf16.mxu0 0
        %1292 = vmatpush1.bf16.msra.mxu0 %v1217
        %1293 = vmatprep.subr.bf16.mxu0 0
        %1294 = vmatpush1.bf16.msra.mxu0 %v1218
        %1295 = vmatprep.subr.bf16.mxu0 0
        %1296 = vmatpush1.bf16.msra.mxu0 %v1219
        %1297 = vmatprep.subr.bf16.mxu0 0
        %1298 = vmatpush1.bf16.msra.mxu0 %v1220
        %1299 = vmatprep.subr.bf16.mxu0 0
        %1300 = vmatpush1.bf16.msra.mxu0 %v1221
        %1301 = vmatprep.subr.bf16.mxu0 0
        %1302 = vmatpush1.bf16.msra.mxu0 %v1222
        %1303 = vmatprep.mubr.bf16.mxu0 %v984
        %1304 = vmatmul.mubr.bf16.gmra.mrb[0].mxu0 %v983
        %v1305 = vpop.f32.mrb[0].mxu0
        %v1306 = vadd.f32 %v837, %v1305
        %v1307 = vpop.f32.mrb[0].mxu0
        %v1308 = vpop.f32.mrb[0].mxu0
        %v1309 = vadd.f32 %v837, %v1308
        %v1310 = vpop.f32.mrb[0].mxu0
        %1311 = vmatprep.mubr.bf16.mxu0 %v988
        %1312 = vmatmul.mubr.bf16.gmra.mrb[0].mxu0 %v987
        %v1313 = vpop.f32.mrb[0].mxu0
        %v1314 = vadd.f32 %v837, %v1313
        %v1315 = vpop.f32.mrb[0].mxu0
        %v1316 = vpop.f32.mrb[0].mxu0
        %v1317 = vadd.f32 %v837, %v1316
        %v1318 = vpop.f32.mrb[0].mxu0
        %1319 = vmatprep.mubr.bf16.mxu0 %v992
        %1320 = vmatmul.mubr.bf16.gmra.mrb[0].mxu0 %v991
        %v1321 = vpop.f32.mrb[0].mxu0
        %v1322 = vadd.f32 %v837, %v1321
        %v1323 = vpop.f32.mrb[0].mxu0
        %v1324 = vpop.f32.mrb[0].mxu0
        %v1325 = vadd.f32 %v837, %v1324
        %v1326 = vpop.f32.mrb[0].mxu0
        %1327 = vmatprep.mubr.bf16.mxu0 %v996
        %1328 = vmatmul.mubr.bf16.gmra.mrb[0].mxu0 %v995
        %v1329 = vpop.f32.mrb[0].mxu0
        %v1330 = vadd.f32 %v837, %v1329
        %v1331 = vpop.f32.mrb[0].mxu0
        %v1332 = vpop.f32.mrb[0].mxu0
        %v1333 = vadd.f32 %v837, %v1332
        %v1334 = vpop.f32.mrb[0].mxu0
        %1335 = vmatprep.mubr.bf16.mxu0 %v1000
        %1336 = vmatmul.mubr.bf16.gmra.mrb[0].mxu0 %v999
        %v1337 = vpop.f32.mrb[0].mxu0
        %v1338 = vadd.f32 %v837, %v1337
        %v1339 = vpop.f32.mrb[0].mxu0
        %v1340 = vpop.f32.mrb[0].mxu0
        %v1341 = vadd.f32 %v837, %v1340
        %v1342 = vpop.f32.mrb[0].mxu0
        %1343 = vmatprep.mubr.bf16.mxu0 %v1004
        %1344 = vmatmul.mubr.bf16.gmra.mrb[0].mxu0 %v1003
        %v1345 = vpop.f32.mrb[0].mxu0
        %v1346 = vadd.f32 %v837, %v1345
        %v1347 = vpop.f32.mrb[0].mxu0
        %v1348 = vpop.f32.mrb[0].mxu0
        %v1349 = vadd.f32 %v837, %v1348
        %v1350 = vpop.f32.mrb[0].mxu0
        %1351 = vmatprep.mubr.bf16.mxu0 %v1008
        %1352 = vmatmul.mubr.bf16.gmra.mrb[0].mxu0 %v1007
        %v1353 = vpop.f32.mrb[0].mxu0
        %v1354 = vadd.f32 %v837, %v1353
        %v1355 = vpop.f32.mrb[0].mxu0
        %v1356 = vpop.f32.mrb[0].mxu0
        %v1357 = vadd.f32 %v837, %v1356
        %v1358 = vpop.f32.mrb[0].mxu0
        %1359 = vmatprep.mubr.bf16.mxu0 %v1012
        %1360 = vmatmul.mubr.bf16.gmra.mrb[0].mxu0 %v1011
        %v1361 = vpop.f32.mrb[0].mxu0
        %v1362 = vadd.f32 %v837, %v1361
        %v1363 = vpop.f32.mrb[0].mxu0
        %v1364 = vpop.f32.mrb[0].mxu0
        %v1365 = vadd.f32 %v837, %v1364
        %v1366 = vpop.f32.mrb[0].mxu0
        %1367 = vmatprep.mubr.bf16.mxu0 %v1016
        %1368 = vmatmul.mubr.bf16.gmra.mrb[0].mxu0 %v1015
        %v1369 = vpop.f32.mrb[0].mxu0
        %v1370 = vadd.f32 %v837, %v1369
        %v1371 = vpop.f32.mrb[0].mxu0
        %v1372 = vpop.f32.mrb[0].mxu0
        %v1373 = vadd.f32 %v837, %v1372
        %v1374 = vpop.f32.mrb[0].mxu0
        %1375 = vmatprep.mubr.bf16.mxu0 %v1020
        %1376 = vmatmul.mubr.bf16.gmra.mrb[0].mxu0 %v1019
        %v1377 = vpop.f32.mrb[0].mxu0
        %v1378 = vadd.f32 %v837, %v1377
        %v1379 = vpop.f32.mrb[0].mxu0
        %v1380 = vpop.f32.mrb[0].mxu0
        %v1381 = vadd.f32 %v837, %v1380
        %v1382 = vpop.f32.mrb[0].mxu0
        %1383 = vmatprep.mubr.bf16.mxu0 %v1024
        %1384 = vmatmul.mubr.bf16.gmra.mrb[0].mxu0 %v1023
        %v1385 = vpop.f32.mrb[0].mxu0
        %v1386 = vadd.f32 %v837, %v1385
        %v1387 = vpop.f32.mrb[0].mxu0
        %v1388 = vpop.f32.mrb[0].mxu0
        %v1389 = vadd.f32 %v837, %v1388
        %v1390 = vpop.f32.mrb[0].mxu0
        %1391 = vmatprep.mubr.bf16.mxu0 %v1028
        %1392 = vmatmul.mubr.bf16.gmra.mrb[0].mxu0 %v1027
        %v1393 = vpop.f32.mrb[0].mxu0
        %v1394 = vadd.f32 %v837, %v1393
        %v1395 = vpop.f32.mrb[0].mxu0
        %v1396 = vpop.f32.mrb[0].mxu0
        %v1397 = vadd.f32 %v837, %v1396
        %v1398 = vpop.f32.mrb[0].mxu0
        %1399 = vdwg.mxu0
        %1400 = vmatprep.subr.bf16.mxu0 0
        %1401 = vmatpush1.bf16.msra.mxu0 %v1223
        %1402 = vmatprep.subr.bf16.mxu0 0
        %1403 = vmatpush1.bf16.msra.mxu0 %v1224
        %1404 = vmatprep.subr.bf16.mxu0 0
        %1405 = vmatpush1.bf16.msra.mxu0 %v1225
        %1406 = vmatprep.subr.bf16.mxu0 0
        %1407 = vmatpush1.bf16.msra.mxu0 %v1226
        %1408 = vmatprep.subr.bf16.mxu0 0
        %1409 = vmatpush1.bf16.msra.mxu0 %v1227
        %1410 = vmatprep.subr.bf16.mxu0 0
        %1411 = vmatpush1.bf16.msra.mxu0 %v1228
        %1412 = vmatprep.subr.bf16.mxu0 0
        %1413 = vmatpush1.bf16.msra.mxu0 %v1229
        %1414 = vmatprep.subr.bf16.mxu0 0
        %1415 = vmatpush1.bf16.msra.mxu0 %v1230
        %1416 = vmatprep.subr.bf16.mxu0 0
        %1417 = vmatpush1.bf16.msra.mxu0 %v1231
        %1418 = vmatprep.subr.bf16.mxu0 0
        %1419 = vmatpush1.bf16.msra.mxu0 %v1232
        %1420 = vmatprep.subr.bf16.mxu0 0
        %1421 = vmatpush1.bf16.msra.mxu0 %v1233
        %1422 = vmatprep.subr.bf16.mxu0 0
        %1423 = vmatpush1.bf16.msra.mxu0 %v1234
        %1424 = vmatprep.subr.bf16.mxu0 0
        %1425 = vmatpush1.bf16.msra.mxu0 %v1235
        %1426 = vmatprep.subr.bf16.mxu0 0
        %1427 = vmatpush1.bf16.msra.mxu0 %v1236
        %1428 = vmatprep.subr.bf16.mxu0 0
        %1429 = vmatpush1.bf16.msra.mxu0 %v1237
        %1430 = vmatprep.subr.bf16.mxu0 0
        %1431 = vmatpush1.bf16.msra.mxu0 %v1238
        %1432 = vmatprep.mubr.bf16.mxu0 %v986
        %1433 = vmatmul.mubr.bf16.gmra.mrb[0].mxu0 %v985
        %v1434 = vpop.f32.mrb[0].mxu0
        %v1435 = vadd.f32 %v1306, %v1434
        %v1436 = vpop.f32.mrb[0].mxu0
        %v1437 = vpop.f32.mrb[0].mxu0
        %v1438 = vadd.f32 %v1309, %v1437
        %v1439 = vpop.f32.mrb[0].mxu0
        %1440 = vmatprep.mubr.bf16.mxu0 %v990
        %1441 = vmatmul.mubr.bf16.gmra.mrb[0].mxu0 %v989
        %v1442 = vpop.f32.mrb[0].mxu0
        %v1443 = vadd.f32 %v1314, %v1442
        %v1444 = vpop.f32.mrb[0].mxu0
        %v1445 = vpop.f32.mrb[0].mxu0
        %v1446 = vadd.f32 %v1317, %v1445
        %v1447 = vpop.f32.mrb[0].mxu0
        %1448 = vmatprep.mubr.bf16.mxu0 %v994
        %1449 = vmatmul.mubr.bf16.gmra.mrb[0].mxu0 %v993
        %v1450 = vpop.f32.mrb[0].mxu0
        %v1451 = vadd.f32 %v1322, %v1450
        %v1452 = vpop.f32.mrb[0].mxu0
        %v1453 = vpop.f32.mrb[0].mxu0
        %v1454 = vadd.f32 %v1325, %v1453
        %v1455 = vpop.f32.mrb[0].mxu0
        %1456 = vmatprep.mubr.bf16.mxu0 %v998
        %1457 = vmatmul.mubr.bf16.gmra.mrb[0].mxu0 %v997
        %v1458 = vpop.f32.mrb[0].mxu0
        %v1459 = vadd.f32 %v1330, %v1458
        %v1460 = vpop.f32.mrb[0].mxu0
        %v1461 = vpop.f32.mrb[0].mxu0
        %v1462 = vadd.f32 %v1333, %v1461
        %v1463 = vpop.f32.mrb[0].mxu0
        %1464 = vmatprep.mubr.bf16.mxu0 %v1002
        %1465 = vmatmul.mubr.bf16.gmra.mrb[0].mxu0 %v1001
        %v1466 = vpop.f32.mrb[0].mxu0
        %v1467 = vadd.f32 %v1338, %v1466
        %v1468 = vpop.f32.mrb[0].mxu0
        %v1469 = vpop.f32.mrb[0].mxu0
        %v1470 = vadd.f32 %v1341, %v1469
        %v1471 = vpop.f32.mrb[0].mxu0
        %1472 = vmatprep.mubr.bf16.mxu0 %v1006
        %1473 = vmatmul.mubr.bf16.gmra.mrb[0].mxu0 %v1005
        %v1474 = vpop.f32.mrb[0].mxu0
        %v1475 = vadd.f32 %v1346, %v1474
        %v1476 = vpop.f32.mrb[0].mxu0
        %v1477 = vpop.f32.mrb[0].mxu0
        %v1478 = vadd.f32 %v1349, %v1477
        %v1479 = vpop.f32.mrb[0].mxu0
        %1480 = vmatprep.mubr.bf16.mxu0 %v1010
        %1481 = vmatmul.mubr.bf16.gmra.mrb[0].mxu0 %v1009
        %v1482 = vpop.f32.mrb[0].mxu0
        %v1483 = vadd.f32 %v1354, %v1482
        %v1484 = vpop.f32.mrb[0].mxu0
        %v1485 = vpop.f32.mrb[0].mxu0
        %v1486 = vadd.f32 %v1357, %v1485
        %v1487 = vpop.f32.mrb[0].mxu0
        %1488 = vmatprep.mubr.bf16.mxu0 %v1014
        %1489 = vmatmul.mubr.bf16.gmra.mrb[0].mxu0 %v1013
        %v1490 = vpop.f32.mrb[0].mxu0
        %v1491 = vadd.f32 %v1362, %v1490
        %v1492 = vpop.f32.mrb[0].mxu0
        %v1493 = vpop.f32.mrb[0].mxu0
        %v1494 = vadd.f32 %v1365, %v1493
        %v1495 = vpop.f32.mrb[0].mxu0
        %1496 = vmatprep.mubr.bf16.mxu0 %v1018
        %1497 = vmatmul.mubr.bf16.gmra.mrb[0].mxu0 %v1017
        %v1498 = vpop.f32.mrb[0].mxu0
        %v1499 = vadd.f32 %v1370, %v1498
        %v1500 = vpop.f32.mrb[0].mxu0
        %v1501 = vpop.f32.mrb[0].mxu0
        %v1502 = vadd.f32 %v1373, %v1501
        %v1503 = vpop.f32.mrb[0].mxu0
        %1504 = vmatprep.mubr.bf16.mxu0 %v1022
        %1505 = vmatmul.mubr.bf16.gmra.mrb[0].mxu0 %v1021
        %v1506 = vpop.f32.mrb[0].mxu0
        %v1507 = vadd.f32 %v1378, %v1506
        %v1508 = vpop.f32.mrb[0].mxu0
        %v1509 = vpop.f32.mrb[0].mxu0
        %v1510 = vadd.f32 %v1381, %v1509
        %v1511 = vpop.f32.mrb[0].mxu0
        %1512 = vmatprep.mubr.bf16.mxu0 %v1026
        %1513 = vmatmul.mubr.bf16.gmra.mrb[0].mxu0 %v1025
        %v1514 = vpop.f32.mrb[0].mxu0
        %v1515 = vadd.f32 %v1386, %v1514
        %v1516 = vpop.f32.mrb[0].mxu0
        %v1517 = vpop.f32.mrb[0].mxu0
        %v1518 = vadd.f32 %v1389, %v1517
        %v1519 = vpop.f32.mrb[0].mxu0
        %1520 = vmatprep.mubr.bf16.mxu0 %v1030
        %1521 = vmatmul.mubr.bf16.gmra.mrb[0].mxu0 %v1029
        %v1522 = vpop.f32.mrb[0].mxu0
        %v1523 = vadd.f32 %v1394, %v1522
        %v1524 = vpop.f32.mrb[0].mxu0
        %v1525 = vpop.f32.mrb[0].mxu0
        %v1526 = vadd.f32 %v1397, %v1525
        %v1527 = vpop.f32.mrb[0].mxu0
        %1528 = vdwg.mxu0
        %v1529 = vld [vmem:[%s1] sm:$0xff]
        %v1530 = vld [vmem:[%s1 + $0x8] sm:$0xff]
        %v1531 = vld [vmem:[%s1 + $0x10] sm:$0xff]
        %v1532 = vld [vmem:[%s1 + $0x18] sm:$0xff]
        %v1533 = vld [vmem:[%s1 + $0x20] sm:$0xff]
        %v1534 = vld [vmem:[%s1 + $0x28] sm:$0xff]
        %v1535 = vld [vmem:[%s1 + $0x30] sm:$0xff]
        %v1536 = vld [vmem:[%s1 + $0x38] sm:$0xff]
        %v1537 = vld [vmem:[%s1 + $0x40] sm:$0xff]
        %v1538 = vld [vmem:[%s1 + $0x48] sm:$0xff]
        %v1539 = vld [vmem:[%s1 + $0x50] sm:$0xff]
        %v1540 = vld [vmem:[%s1 + $0x58] sm:$0xff]
        %v1541 = vld [vmem:[%s1 + $0x60] sm:$0xff]
        %v1542 = vld [vmem:[%s1 + $0x68] sm:$0xff]
        %v1543 = vld [vmem:[%s1 + $0x70] sm:$0xff]
        %v1544 = vld [vmem:[%s1 + $0x78] sm:$0xff]
        %v1545 = vld [vmem:[%s1 + $0x80] sm:$0xff]
        %v1546 = vld [vmem:[%s1 + $0x88] sm:$0xff]
        %v1547 = vld [vmem:[%s1 + $0x90] sm:$0xff]
        %v1548 = vld [vmem:[%s1 + $0x98] sm:$0xff]
        %v1549 = vld [vmem:[%s1 + $0xa0] sm:$0xff]
        %v1550 = vld [vmem:[%s1 + $0xa8] sm:$0xff]
        %v1551 = vld [vmem:[%s1 + $0xb0] sm:$0xff]
        %v1552 = vld [vmem:[%s1 + $0xb8] sm:$0xff]
        %v1553 = vld [vmem:[%s1 + $0xc0] sm:$0xff]
        %v1554 = vld [vmem:[%s1 + $0xc8] sm:$0xff]
        %v1555 = vld [vmem:[%s1 + $0xd0] sm:$0xff]
        %v1556 = vld [vmem:[%s1 + $0xd8] sm:$0xff]
        %v1557 = vld [vmem:[%s1 + $0xe0] sm:$0xff]
        %v1558 = vld [vmem:[%s1 + $0xe8] sm:$0xff]
        %v1559 = vld [vmem:[%s1 + $0xf0] sm:$0xff]
        %v1560 = vld [vmem:[%s1 + $0xf8] sm:$0xff]
        %v1561 = vld [vmem:[%s1 + $0x100] sm:$0xff]
        %v1562 = vld [vmem:[%s1 + $0x108] sm:$0xff]
        %v1563 = vld [vmem:[%s1 + $0x110] sm:$0xff]
        %v1564 = vld [vmem:[%s1 + $0x118] sm:$0xff]
        %v1565 = vld [vmem:[%s1 + $0x120] sm:$0xff]
        %v1566 = vld [vmem:[%s1 + $0x128] sm:$0xff]
        %v1567 = vld [vmem:[%s1 + $0x130] sm:$0xff]
        %v1568 = vld [vmem:[%s1 + $0x138] sm:$0xff]
        %v1569 = vld [vmem:[%s1 + $0x140] sm:$0xff]
        %v1570 = vld [vmem:[%s1 + $0x148] sm:$0xff]
        %v1571 = vld [vmem:[%s1 + $0x150] sm:$0xff]
        %v1572 = vld [vmem:[%s1 + $0x158] sm:$0xff]
        %v1573 = vld [vmem:[%s1 + $0x160] sm:$0xff]
        %v1574 = vld [vmem:[%s1 + $0x168] sm:$0xff]
        %v1575 = vld [vmem:[%s1 + $0x170] sm:$0xff]
        %v1576 = vld [vmem:[%s1 + $0x178] sm:$0xff]
        %v1577 = vld [vmem:[%s471] sm:$0x1]
        %v1579 = vlaneseq
        %v1580 = vshrl.u32 %v1579, 7
        %v1581 = vsub.s32 0, %v1580
        %v1582 = vrot.slane %v1577, %v1581
        %v1632 = vunpack.c.l.b16 %v1529
        %v1633 = vunpack.c.h.b16 %v1529
        %v1634 = vunpack.c.l.b16 %v1530
        %v1635 = vunpack.c.h.b16 %v1530
        %v1636 = vunpack.c.l.b16 %v1531
        %v1637 = vunpack.c.h.b16 %v1531
        %v1638 = vunpack.c.l.b16 %v1532
        %v1639 = vunpack.c.h.b16 %v1532
        %v1640 = vunpack.c.l.b16 %v1533
        %v1641 = vunpack.c.h.b16 %v1533
        %v1642 = vunpack.c.l.b16 %v1534
        %v1643 = vunpack.c.h.b16 %v1534
        %v1644 = vunpack.c.l.b16 %v1535
        %v1645 = vunpack.c.h.b16 %v1535
        %v1646 = vunpack.c.l.b16 %v1536
        %v1647 = vunpack.c.h.b16 %v1536
        %v1648 = vunpack.c.l.b16 %v1537
        %v1649 = vunpack.c.h.b16 %v1537
        %v1650 = vunpack.c.l.b16 %v1538
        %v1651 = vunpack.c.h.b16 %v1538
        %v1652 = vunpack.c.l.b16 %v1539
        %v1653 = vunpack.c.h.b16 %v1539
        %v1654 = vunpack.c.l.b16 %v1540
        %v1655 = vunpack.c.h.b16 %v1540
        %v1656 = vunpack.c.l.b16 %v1541
        %v1657 = vunpack.c.h.b16 %v1541
        %v1658 = vunpack.c.l.b16 %v1542
        %v1659 = vunpack.c.h.b16 %v1542
        %v1660 = vunpack.c.l.b16 %v1543
        %v1661 = vunpack.c.h.b16 %v1543
        %v1662 = vunpack.c.l.b16 %v1544
        %v1663 = vunpack.c.h.b16 %v1544
        %v1664 = vunpack.c.l.b16 %v1545
        %v1665 = vunpack.c.h.b16 %v1545
        %v1666 = vunpack.c.l.b16 %v1546
        %v1667 = vunpack.c.h.b16 %v1546
        %v1668 = vunpack.c.l.b16 %v1547
        %v1669 = vunpack.c.h.b16 %v1547
        %v1670 = vunpack.c.l.b16 %v1548
        %v1671 = vunpack.c.h.b16 %v1548
        %v1672 = vunpack.c.l.b16 %v1549
        %v1673 = vunpack.c.h.b16 %v1549
        %v1674 = vunpack.c.l.b16 %v1550
        %v1675 = vunpack.c.h.b16 %v1550
        %v1676 = vunpack.c.l.b16 %v1551
        %v1677 = vunpack.c.h.b16 %v1551
        %v1678 = vunpack.c.l.b16 %v1552
        %v1679 = vunpack.c.h.b16 %v1552
        %v1680 = vunpack.c.l.b16 %v1553
        %v1681 = vunpack.c.h.b16 %v1553
        %v1682 = vunpack.c.l.b16 %v1554
        %v1683 = vunpack.c.h.b16 %v1554
        %v1684 = vunpack.c.l.b16 %v1555
        %v1685 = vunpack.c.h.b16 %v1555
        %v1686 = vunpack.c.l.b16 %v1556
        %v1687 = vunpack.c.h.b16 %v1556
        %v1688 = vunpack.c.l.b16 %v1557
        %v1689 = vunpack.c.h.b16 %v1557
        %v1690 = vunpack.c.l.b16 %v1558
        %v1691 = vunpack.c.h.b16 %v1558
        %v1692 = vunpack.c.l.b16 %v1559
        %v1693 = vunpack.c.h.b16 %v1559
        %v1694 = vunpack.c.l.b16 %v1560
        %v1695 = vunpack.c.h.b16 %v1560
        %v1696 = vunpack.c.l.b16 %v1561
        %v1697 = vunpack.c.h.b16 %v1561
        %v1698 = vunpack.c.l.b16 %v1562
        %v1699 = vunpack.c.h.b16 %v1562
        %v1700 = vunpack.c.l.b16 %v1563
        %v1701 = vunpack.c.h.b16 %v1563
        %v1702 = vunpack.c.l.b16 %v1564
        %v1703 = vunpack.c.h.b16 %v1564
        %v1704 = vunpack.c.l.b16 %v1565
        %v1705 = vunpack.c.h.b16 %v1565
        %v1706 = vunpack.c.l.b16 %v1566
        %v1707 = vunpack.c.h.b16 %v1566
        %v1708 = vunpack.c.l.b16 %v1567
        %v1709 = vunpack.c.h.b16 %v1567
        %v1710 = vunpack.c.l.b16 %v1568
        %v1711 = vunpack.c.h.b16 %v1568
        %v1712 = vunpack.c.l.b16 %v1569
        %v1713 = vunpack.c.h.b16 %v1569
        %v1714 = vunpack.c.l.b16 %v1570
        %v1715 = vunpack.c.h.b16 %v1570
        %v1716 = vunpack.c.l.b16 %v1571
        %v1717 = vunpack.c.h.b16 %v1571
        %v1718 = vunpack.c.l.b16 %v1572
        %v1719 = vunpack.c.h.b16 %v1572
        %v1720 = vunpack.c.l.b16 %v1573
        %v1721 = vunpack.c.h.b16 %v1573
        %v1722 = vunpack.c.l.b16 %v1574
        %v1723 = vunpack.c.h.b16 %v1574
        %v1724 = vunpack.c.l.b16 %v1575
        %v1725 = vunpack.c.h.b16 %v1575
        %v1726 = vunpack.c.l.b16 %v1576
        %v1727 = vunpack.c.h.b16 %v1576
        %v1728 = vpack.c.b16 %v1636, %v1632
        %v1729 = vpack.c.b16 %v1637, %v1633
        %v1730 = vpack.c.b16 %v1638, %v1634
        %v1731 = vpack.c.b16 %v1639, %v1635
        %v1732 = vpack.c.b16 %v1644, %v1640
        %v1733 = vpack.c.b16 %v1645, %v1641
        %v1734 = vpack.c.b16 %v1646, %v1642
        %v1735 = vpack.c.b16 %v1647, %v1643
        %v1736 = vpack.c.b16 %v1652, %v1648
        %v1737 = vpack.c.b16 %v1653, %v1649
        %v1738 = vpack.c.b16 %v1654, %v1650
        %v1739 = vpack.c.b16 %v1655, %v1651
        %v1740 = vpack.c.b16 %v1660, %v1656
        %v1741 = vpack.c.b16 %v1661, %v1657
        %v1742 = vpack.c.b16 %v1662, %v1658
        %v1743 = vpack.c.b16 %v1663, %v1659
        %v1744 = vpack.c.b16 %v1668, %v1664
        %v1745 = vpack.c.b16 %v1669, %v1665
        %v1746 = vpack.c.b16 %v1670, %v1666
        %v1747 = vpack.c.b16 %v1671, %v1667
        %v1748 = vpack.c.b16 %v1676, %v1672
        %v1749 = vpack.c.b16 %v1677, %v1673
        %v1750 = vpack.c.b16 %v1678, %v1674
        %v1751 = vpack.c.b16 %v1679, %v1675
        %v1752 = vpack.c.b16 %v1684, %v1680
        %v1753 = vpack.c.b16 %v1685, %v1681
        %v1754 = vpack.c.b16 %v1686, %v1682
        %v1755 = vpack.c.b16 %v1687, %v1683
        %v1756 = vpack.c.b16 %v1692, %v1688
        %v1757 = vpack.c.b16 %v1693, %v1689
        %v1758 = vpack.c.b16 %v1694, %v1690
        %v1759 = vpack.c.b16 %v1695, %v1691
        %v1760 = vpack.c.b16 %v1700, %v1696
        %v1761 = vpack.c.b16 %v1701, %v1697
        %v1762 = vpack.c.b16 %v1702, %v1698
        %v1763 = vpack.c.b16 %v1703, %v1699
        %v1764 = vpack.c.b16 %v1708, %v1704
        %v1765 = vpack.c.b16 %v1709, %v1705
        %v1766 = vpack.c.b16 %v1710, %v1706
        %v1767 = vpack.c.b16 %v1711, %v1707
        %v1768 = vpack.c.b16 %v1716, %v1712
        %v1769 = vpack.c.b16 %v1717, %v1713
        %v1770 = vpack.c.b16 %v1718, %v1714
        %v1771 = vpack.c.b16 %v1719, %v1715
        %v1772 = vpack.c.b16 %v1724, %v1720
        %v1773 = vpack.c.b16 %v1725, %v1721
        %v1774 = vpack.c.b16 %v1726, %v1722
        %v1775 = vpack.c.b16 %v1727, %v1723
        %v1888 = vunpack.c.l.b16 %v640
        %v1889 = vunpack.c.l.b16 %v641
        %v1890 = vunpack.c.l.b16 %v642
        %v1891 = vunpack.c.l.b16 %v643
        %v1892 = vunpack.c.l.b16 %v644
        %v1893 = vunpack.c.l.b16 %v645
        %v1894 = vunpack.c.l.b16 %v646
        %v1895 = vunpack.c.l.b16 %v647
        %v1896 = vunpack.c.l.b16 %v648
        %v1897 = vunpack.c.l.b16 %v649
        %v1898 = vunpack.c.l.b16 %v650
        %v1899 = vunpack.c.l.b16 %v651
        %v1900 = vunpack.c.l.b16 %v652
        %v1901 = vunpack.c.l.b16 %v653
        %v1902 = vunpack.c.l.b16 %v654
        %v1903 = vunpack.c.l.b16 %v655
        %v1904 = vunpack.c.l.b16 %v656
        %v1905 = vunpack.c.l.b16 %v657
        %v1906 = vunpack.c.l.b16 %v658
        %v1907 = vunpack.c.l.b16 %v659
        %v1908 = vunpack.c.l.b16 %v660
        %v1909 = vunpack.c.l.b16 %v661
        %v1910 = vunpack.c.l.b16 %v662
        %v1911 = vunpack.c.l.b16 %v663
        %v1912 = vunpack.c.l.b16 %v664
        %v1913 = vunpack.c.l.b16 %v665
        %v1914 = vunpack.c.l.b16 %v666
        %v1915 = vunpack.c.l.b16 %v667
        %v1916 = vunpack.c.l.b16 %v668
        %v1917 = vunpack.c.l.b16 %v669
        %v1918 = vunpack.c.l.b16 %v670
        %v1919 = vunpack.c.l.b16 %v671
        %v1920 = vunpack.c.l.b16 %v672
        %v1921 = vunpack.c.l.b16 %v673
        %v1922 = vunpack.c.l.b16 %v674
        %v1923 = vunpack.c.l.b16 %v675
        %v1924 = vunpack.c.l.b16 %v676
        %v1925 = vunpack.c.l.b16 %v677
        %v1926 = vunpack.c.l.b16 %v678
        %v1927 = vunpack.c.l.b16 %v679
        %v1928 = vunpack.c.l.b16 %v680
        %v1929 = vunpack.c.l.b16 %v681
        %v1930 = vunpack.c.l.b16 %v682
        %v1931 = vunpack.c.l.b16 %v683
        %v1932 = vunpack.c.l.b16 %v684
        %v1933 = vunpack.c.l.b16 %v685
        %v1934 = vunpack.c.l.b16 %v686
        %v1935 = vunpack.c.l.b16 %v687
        %v1936 = vunpack.c.l.b16 %v688
        %v1937 = vunpack.c.l.b16 %v689
        %v1938 = vunpack.c.l.b16 %v690
        %v1939 = vunpack.c.l.b16 %v691
        %v1940 = vunpack.c.l.b16 %v692
        %v1941 = vunpack.c.l.b16 %v693
        %v1942 = vunpack.c.l.b16 %v694
        %v1943 = vunpack.c.l.b16 %v695
        %v1944 = vunpack.c.l.b16 %v696
        %v1945 = vunpack.c.l.b16 %v697
        %v1946 = vunpack.c.l.b16 %v698
        %v1947 = vunpack.c.l.b16 %v699
        %v1948 = vunpack.c.l.b16 %v700
        %v1949 = vunpack.c.l.b16 %v701
        %v1950 = vunpack.c.l.b16 %v702
        %v1951 = vunpack.c.l.b16 %v703
        %v1952 = vpack.c.b16 %v1889, %v1888
        %v1953 = vpack.c.b16 %v1891, %v1890
        %v1954 = vpack.c.b16 %v1893, %v1892
        %v1955 = vpack.c.b16 %v1895, %v1894
        %v1956 = vpack.c.b16 %v1897, %v1896
        %v1957 = vpack.c.b16 %v1899, %v1898
        %v1958 = vpack.c.b16 %v1901, %v1900
        %v1959 = vpack.c.b16 %v1903, %v1902
        %v1960 = vpack.c.b16 %v1905, %v1904
        %v1961 = vpack.c.b16 %v1907, %v1906
        %v1962 = vpack.c.b16 %v1909, %v1908
        %v1963 = vpack.c.b16 %v1911, %v1910
        %v1964 = vpack.c.b16 %v1913, %v1912
        %v1965 = vpack.c.b16 %v1915, %v1914
        %v1966 = vpack.c.b16 %v1917, %v1916
        %v1967 = vpack.c.b16 %v1919, %v1918
        %v1968 = vpack.c.b16 %v1921, %v1920
        %v1969 = vpack.c.b16 %v1923, %v1922
        %v1970 = vpack.c.b16 %v1925, %v1924
        %v1971 = vpack.c.b16 %v1927, %v1926
        %v1972 = vpack.c.b16 %v1929, %v1928
        %v1973 = vpack.c.b16 %v1931, %v1930
        %v1974 = vpack.c.b16 %v1933, %v1932
        %v1975 = vpack.c.b16 %v1935, %v1934
        %v1976 = vpack.c.b16 %v1937, %v1936
        %v1977 = vpack.c.b16 %v1939, %v1938
        %v1978 = vpack.c.b16 %v1941, %v1940
        %v1979 = vpack.c.b16 %v1943, %v1942
        %v1980 = vpack.c.b16 %v1945, %v1944
        %v1981 = vpack.c.b16 %v1947, %v1946
        %v1982 = vpack.c.b16 %v1949, %v1948
        %v1983 = vpack.c.b16 %v1951, %v1950
        %2016 = vmatprep.subr.bf16.mxu0 0
        %2017 = vmatpush1.bf16.msra.mxu0 %v1952
        %2018 = vmatprep.subr.bf16.mxu0 0
        %2019 = vmatpush1.bf16.msra.mxu0 %v1953
        %2020 = vmatprep.subr.bf16.mxu0 0
        %2021 = vmatpush1.bf16.msra.mxu0 %v1954
        %2022 = vmatprep.subr.bf16.mxu0 0
        %2023 = vmatpush1.bf16.msra.mxu0 %v1955
        %2024 = vmatprep.subr.bf16.mxu0 0
        %2025 = vmatpush1.bf16.msra.mxu0 %v1956
        %2026 = vmatprep.subr.bf16.mxu0 0
        %2027 = vmatpush1.bf16.msra.mxu0 %v1957
        %2028 = vmatprep.subr.bf16.mxu0 0
        %2029 = vmatpush1.bf16.msra.mxu0 %v1958
        %2030 = vmatprep.subr.bf16.mxu0 0
        %2031 = vmatpush1.bf16.msra.mxu0 %v1959
        %2032 = vmatprep.subr.bf16.mxu0 0
        %2033 = vmatpush1.bf16.msra.mxu0 %v1960
        %2034 = vmatprep.subr.bf16.mxu0 0
        %2035 = vmatpush1.bf16.msra.mxu0 %v1961
        %2036 = vmatprep.subr.bf16.mxu0 0
        %2037 = vmatpush1.bf16.msra.mxu0 %v1962
        %2038 = vmatprep.subr.bf16.mxu0 0
        %2039 = vmatpush1.bf16.msra.mxu0 %v1963
        %2040 = vmatprep.subr.bf16.mxu0 0
        %2041 = vmatpush1.bf16.msra.mxu0 %v1964
        %2042 = vmatprep.subr.bf16.mxu0 0
        %2043 = vmatpush1.bf16.msra.mxu0 %v1965
        %2044 = vmatprep.subr.bf16.mxu0 0
        %2045 = vmatpush1.bf16.msra.mxu0 %v1966
        %2046 = vmatprep.subr.bf16.mxu0 0
        %2047 = vmatpush1.bf16.msra.mxu0 %v1967
        %2048 = vmatprep.mubr.bf16.mxu0 %v1729
        %2049 = vmatmul.mubr.bf16.gmra.mrb[0].mxu0 %v1728
        %v2050 = vpop.f32.mrb[0].mxu0
        %v2051 = vadd.f32 %v1582, %v2050
        %v2052 = vpop.f32.mrb[0].mxu0
        %v2053 = vpop.f32.mrb[0].mxu0
        %v2054 = vadd.f32 %v1582, %v2053
        %v2055 = vpop.f32.mrb[0].mxu0
        %2056 = vmatprep.mubr.bf16.mxu0 %v1733
        %2057 = vmatmul.mubr.bf16.gmra.mrb[0].mxu0 %v1732
        %v2058 = vpop.f32.mrb[0].mxu0
        %v2059 = vadd.f32 %v1582, %v2058
        %v2060 = vpop.f32.mrb[0].mxu0
        %v2061 = vpop.f32.mrb[0].mxu0
        %v2062 = vadd.f32 %v1582, %v2061
        %v2063 = vpop.f32.mrb[0].mxu0
        %2064 = vmatprep.mubr.bf16.mxu0 %v1737
        %2065 = vmatmul.mubr.bf16.gmra.mrb[0].mxu0 %v1736
        %v2066 = vpop.f32.mrb[0].mxu0
        %v2067 = vadd.f32 %v1582, %v2066
        %v2068 = vpop.f32.mrb[0].mxu0
        %v2069 = vpop.f32.mrb[0].mxu0
        %v2070 = vadd.f32 %v1582, %v2069
        %v2071 = vpop.f32.mrb[0].mxu0
        %2072 = vmatprep.mubr.bf16.mxu0 %v1741
        %2073 = vmatmul.mubr.bf16.gmra.mrb[0].mxu0 %v1740
        %v2074 = vpop.f32.mrb[0].mxu0
        %v2075 = vadd.f32 %v1582, %v2074
        %v2076 = vpop.f32.mrb[0].mxu0
        %v2077 = vpop.f32.mrb[0].mxu0
        %v2078 = vadd.f32 %v1582, %v2077
        %v2079 = vpop.f32.mrb[0].mxu0
        %2080 = vmatprep.mubr.bf16.mxu0 %v1745
        %2081 = vmatmul.mubr.bf16.gmra.mrb[0].mxu0 %v1744
        %v2082 = vpop.f32.mrb[0].mxu0
        %v2083 = vadd.f32 %v1582, %v2082
        %v2084 = vpop.f32.mrb[0].mxu0
        %v2085 = vpop.f32.mrb[0].mxu0
        %v2086 = vadd.f32 %v1582, %v2085
        %v2087 = vpop.f32.mrb[0].mxu0
        %2088 = vmatprep.mubr.bf16.mxu0 %v1749
        %2089 = vmatmul.mubr.bf16.gmra.mrb[0].mxu0 %v1748
        %v2090 = vpop.f32.mrb[0].mxu0
        %v2091 = vadd.f32 %v1582, %v2090
        %v2092 = vpop.f32.mrb[0].mxu0
        %v2093 = vpop.f32.mrb[0].mxu0
        %v2094 = vadd.f32 %v1582, %v2093
        %v2095 = vpop.f32.mrb[0].mxu0
        %2096 = vmatprep.mubr.bf16.mxu0 %v1753
        %2097 = vmatmul.mubr.bf16.gmra.mrb[0].mxu0 %v1752
        %v2098 = vpop.f32.mrb[0].mxu0
        %v2099 = vadd.f32 %v1582, %v2098
        %v2100 = vpop.f32.mrb[0].mxu0
        %v2101 = vpop.f32.mrb[0].mxu0
        %v2102 = vadd.f32 %v1582, %v2101
        %v2103 = vpop.f32.mrb[0].mxu0
        %2104 = vmatprep.mubr.bf16.mxu0 %v1757
        %2105 = vmatmul.mubr.bf16.gmra.mrb[0].mxu0 %v1756
        %v2106 = vpop.f32.mrb[0].mxu0
        %v2107 = vadd.f32 %v1582, %v2106
        %v2108 = vpop.f32.mrb[0].mxu0
        %v2109 = vpop.f32.mrb[0].mxu0
        %v2110 = vadd.f32 %v1582, %v2109
        %v2111 = vpop.f32.mrb[0].mxu0
        %2112 = vmatprep.mubr.bf16.mxu0 %v1761
        %2113 = vmatmul.mubr.bf16.gmra.mrb[0].mxu0 %v1760
        %v2114 = vpop.f32.mrb[0].mxu0
        %v2115 = vadd.f32 %v1582, %v2114
        %v2116 = vpop.f32.mrb[0].mxu0
        %v2117 = vpop.f32.mrb[0].mxu0
        %v2118 = vadd.f32 %v1582, %v2117
        %v2119 = vpop.f32.mrb[0].mxu0
        %2120 = vmatprep.mubr.bf16.mxu0 %v1765
        %2121 = vmatmul.mubr.bf16.gmra.mrb[0].mxu0 %v1764
        %v2122 = vpop.f32.mrb[0].mxu0
        %v2123 = vadd.f32 %v1582, %v2122
        %v2124 = vpop.f32.mrb[0].mxu0
        %v2125 = vpop.f32.mrb[0].mxu0
        %v2126 = vadd.f32 %v1582, %v2125
        %v2127 = vpop.f32.mrb[0].mxu0
        %2128 = vmatprep.mubr.bf16.mxu0 %v1769
        %2129 = vmatmul.mubr.bf16.gmra.mrb[0].mxu0 %v1768
        %v2130 = vpop.f32.mrb[0].mxu0
        %v2131 = vadd.f32 %v1582, %v2130
        %v2132 = vpop.f32.mrb[0].mxu0
        %v2133 = vpop.f32.mrb[0].mxu0
        %v2134 = vadd.f32 %v1582, %v2133
        %v2135 = vpop.f32.mrb[0].mxu0
        %2136 = vmatprep.mubr.bf16.mxu0 %v1773
        %2137 = vmatmul.mubr.bf16.gmra.mrb[0].mxu0 %v1772
        %v2138 = vpop.f32.mrb[0].mxu0
        %v2139 = vadd.f32 %v1582, %v2138
        %v2140 = vpop.f32.mrb[0].mxu0
        %v2141 = vpop.f32.mrb[0].mxu0
        %v2142 = vadd.f32 %v1582, %v2141
        %v2143 = vpop.f32.mrb[0].mxu0
        %2144 = vdwg.mxu0
        %2145 = vmatprep.subr.bf16.mxu0 0
        %2146 = vmatpush1.bf16.msra.mxu0 %v1968
        %2147 = vmatprep.subr.bf16.mxu0 0
        %2148 = vmatpush1.bf16.msra.mxu0 %v1969
        %2149 = vmatprep.subr.bf16.mxu0 0
        %2150 = vmatpush1.bf16.msra.mxu0 %v1970
        %2151 = vmatprep.subr.bf16.mxu0 0
        %2152 = vmatpush1.bf16.msra.mxu0 %v1971
        %2153 = vmatprep.subr.bf16.mxu0 0
        %2154 = vmatpush1.bf16.msra.mxu0 %v1972
        %2155 = vmatprep.subr.bf16.mxu0 0
        %2156 = vmatpush1.bf16.msra.mxu0 %v1973
        %2157 = vmatprep.subr.bf16.mxu0 0
        %2158 = vmatpush1.bf16.msra.mxu0 %v1974
        %2159 = vmatprep.subr.bf16.mxu0 0
        %2160 = vmatpush1.bf16.msra.mxu0 %v1975
        %2161 = vmatprep.subr.bf16.mxu0 0
        %2162 = vmatpush1.bf16.msra.mxu0 %v1976
        %2163 = vmatprep.subr.bf16.mxu0 0
        %2164 = vmatpush1.bf16.msra.mxu0 %v1977
        %2165 = vmatprep.subr.bf16.mxu0 0
        %2166 = vmatpush1.bf16.msra.mxu0 %v1978
        %2167 = vmatprep.subr.bf16.mxu0 0
        %2168 = vmatpush1.bf16.msra.mxu0 %v1979
        %2169 = vmatprep.subr.bf16.mxu0 0
        %2170 = vmatpush1.bf16.msra.mxu0 %v1980
        %2171 = vmatprep.subr.bf16.mxu0 0
        %2172 = vmatpush1.bf16.msra.mxu0 %v1981
        %2173 = vmatprep.subr.bf16.mxu0 0
        %2174 = vmatpush1.bf16.msra.mxu0 %v1982
        %2175 = vmatprep.subr.bf16.mxu0 0
        %2176 = vmatpush1.bf16.msra.mxu0 %v1983
        %2177 = vmatprep.mubr.bf16.mxu0 %v1731
        %2178 = vmatmul.mubr.bf16.gmra.mrb[0].mxu0 %v1730
        %v2179 = vpop.f32.mrb[0].mxu0
        %v2180 = vadd.f32 %v2051, %v2179
        %v2181 = vpop.f32.mrb[0].mxu0
        %v2182 = vpop.f32.mrb[0].mxu0
        %v2183 = vadd.f32 %v2054, %v2182
        %v2184 = vpop.f32.mrb[0].mxu0
        %2185 = vmatprep.mubr.bf16.mxu0 %v1735
        %2186 = vmatmul.mubr.bf16.gmra.mrb[0].mxu0 %v1734
        %v2187 = vpop.f32.mrb[0].mxu0
        %v2188 = vadd.f32 %v2059, %v2187
        %v2189 = vpop.f32.mrb[0].mxu0
        %v2190 = vpop.f32.mrb[0].mxu0
        %v2191 = vadd.f32 %v2062, %v2190
        %v2192 = vpop.f32.mrb[0].mxu0
        %2193 = vmatprep.mubr.bf16.mxu0 %v1739
        %2194 = vmatmul.mubr.bf16.gmra.mrb[0].mxu0 %v1738
        %v2195 = vpop.f32.mrb[0].mxu0
        %v2196 = vadd.f32 %v2067, %v2195
        %v2197 = vpop.f32.mrb[0].mxu0
        %v2198 = vpop.f32.mrb[0].mxu0
        %v2199 = vadd.f32 %v2070, %v2198
        %v2200 = vpop.f32.mrb[0].mxu0
        %2201 = vmatprep.mubr.bf16.mxu0 %v1743
        %2202 = vmatmul.mubr.bf16.gmra.mrb[0].mxu0 %v1742
        %v2203 = vpop.f32.mrb[0].mxu0
        %v2204 = vadd.f32 %v2075, %v2203
        %v2205 = vpop.f32.mrb[0].mxu0
        %v2206 = vpop.f32.mrb[0].mxu0
        %v2207 = vadd.f32 %v2078, %v2206
        %v2208 = vpop.f32.mrb[0].mxu0
        %2209 = vmatprep.mubr.bf16.mxu0 %v1747
        %2210 = vmatmul.mubr.bf16.gmra.mrb[0].mxu0 %v1746
        %v2211 = vpop.f32.mrb[0].mxu0
        %v2212 = vadd.f32 %v2083, %v2211
        %v2213 = vpop.f32.mrb[0].mxu0
        %v2214 = vpop.f32.mrb[0].mxu0
        %v2215 = vadd.f32 %v2086, %v2214
        %v2216 = vpop.f32.mrb[0].mxu0
        %2217 = vmatprep.mubr.bf16.mxu0 %v1751
        %2218 = vmatmul.mubr.bf16.gmra.mrb[0].mxu0 %v1750
        %v2219 = vpop.f32.mrb[0].mxu0
        %v2220 = vadd.f32 %v2091, %v2219
        %v2221 = vpop.f32.mrb[0].mxu0
        %v2222 = vpop.f32.mrb[0].mxu0
        %v2223 = vadd.f32 %v2094, %v2222
        %v2224 = vpop.f32.mrb[0].mxu0
        %2225 = vmatprep.mubr.bf16.mxu0 %v1755
        %2226 = vmatmul.mubr.bf16.gmra.mrb[0].mxu0 %v1754
        %v2227 = vpop.f32.mrb[0].mxu0
        %v2228 = vadd.f32 %v2099, %v2227
        %v2229 = vpop.f32.mrb[0].mxu0
        %v2230 = vpop.f32.mrb[0].mxu0
        %v2231 = vadd.f32 %v2102, %v2230
        %v2232 = vpop.f32.mrb[0].mxu0
        %2233 = vmatprep.mubr.bf16.mxu0 %v1759
        %2234 = vmatmul.mubr.bf16.gmra.mrb[0].mxu0 %v1758
        %v2235 = vpop.f32.mrb[0].mxu0
        %v2236 = vadd.f32 %v2107, %v2235
        %v2237 = vpop.f32.mrb[0].mxu0
        %v2238 = vpop.f32.mrb[0].mxu0
        %v2239 = vadd.f32 %v2110, %v2238
        %v2240 = vpop.f32.mrb[0].mxu0
        %2241 = vmatprep.mubr.bf16.mxu0 %v1763
        %2242 = vmatmul.mubr.bf16.gmra.mrb[0].mxu0 %v1762
        %v2243 = vpop.f32.mrb[0].mxu0
        %v2244 = vadd.f32 %v2115, %v2243
        %v2245 = vpop.f32.mrb[0].mxu0
        %v2246 = vpop.f32.mrb[0].mxu0
        %v2247 = vadd.f32 %v2118, %v2246
        %v2248 = vpop.f32.mrb[0].mxu0
        %2249 = vmatprep.mubr.bf16.mxu0 %v1767
        %2250 = vmatmul.mubr.bf16.gmra.mrb[0].mxu0 %v1766
        %v2251 = vpop.f32.mrb[0].mxu0
        %v2252 = vadd.f32 %v2123, %v2251
        %v2253 = vpop.f32.mrb[0].mxu0
        %v2254 = vpop.f32.mrb[0].mxu0
        %v2255 = vadd.f32 %v2126, %v2254
        %v2256 = vpop.f32.mrb[0].mxu0
        %2257 = vmatprep.mubr.bf16.mxu0 %v1771
        %2258 = vmatmul.mubr.bf16.gmra.mrb[0].mxu0 %v1770
        %v2259 = vpop.f32.mrb[0].mxu0
        %v2260 = vadd.f32 %v2131, %v2259
        %v2261 = vpop.f32.mrb[0].mxu0
        %v2262 = vpop.f32.mrb[0].mxu0
        %v2263 = vadd.f32 %v2134, %v2262
        %v2264 = vpop.f32.mrb[0].mxu0
        %2265 = vmatprep.mubr.bf16.mxu0 %v1775
        %2266 = vmatmul.mubr.bf16.gmra.mrb[0].mxu0 %v1774
        %v2267 = vpop.f32.mrb[0].mxu0
        %v2268 = vadd.f32 %v2139, %v2267
        %v2269 = vpop.f32.mrb[0].mxu0
        %v2270 = vpop.f32.mrb[0].mxu0
        %v2271 = vadd.f32 %v2142, %v2270
        %v2272 = vpop.f32.mrb[0].mxu0
        %2273 = vdwg.mxu0
        %v2274 = vld [vmem:[%s2] sm:$0xff]
        %v2275 = vld [vmem:[%s2 + $0x8] sm:$0xff]
        %v2276 = vld [vmem:[%s2 + $0x10] sm:$0xff]
        %v2277 = vld [vmem:[%s2 + $0x18] sm:$0xff]
        %v2278 = vld [vmem:[%s2 + $0x20] sm:$0xff]
        %v2279 = vld [vmem:[%s2 + $0x28] sm:$0xff]
        %v2280 = vld [vmem:[%s2 + $0x30] sm:$0xff]
        %v2281 = vld [vmem:[%s2 + $0x38] sm:$0xff]
        %v2282 = vld [vmem:[%s2 + $0x40] sm:$0xff]
        %v2283 = vld [vmem:[%s2 + $0x48] sm:$0xff]
        %v2284 = vld [vmem:[%s2 + $0x50] sm:$0xff]
        %v2285 = vld [vmem:[%s2 + $0x58] sm:$0xff]
        %v2286 = vld [vmem:[%s2 + $0x60] sm:$0xff]
        %v2287 = vld [vmem:[%s2 + $0x68] sm:$0xff]
        %v2288 = vld [vmem:[%s2 + $0x70] sm:$0xff]
        %v2289 = vld [vmem:[%s2 + $0x78] sm:$0xff]
        %v2290 = vld [vmem:[%s2 + $0x80] sm:$0xff]
        %v2291 = vld [vmem:[%s2 + $0x88] sm:$0xff]
        %v2292 = vld [vmem:[%s2 + $0x90] sm:$0xff]
        %v2293 = vld [vmem:[%s2 + $0x98] sm:$0xff]
        %v2294 = vld [vmem:[%s2 + $0xa0] sm:$0xff]
        %v2295 = vld [vmem:[%s2 + $0xa8] sm:$0xff]
        %v2296 = vld [vmem:[%s2 + $0xb0] sm:$0xff]
        %v2297 = vld [vmem:[%s2 + $0xb8] sm:$0xff]
        %v2298 = vld [vmem:[%s2 + $0xc0] sm:$0xff]
        %v2299 = vld [vmem:[%s2 + $0xc8] sm:$0xff]
        %v2300 = vld [vmem:[%s2 + $0xd0] sm:$0xff]
        %v2301 = vld [vmem:[%s2 + $0xd8] sm:$0xff]
        %v2302 = vld [vmem:[%s2 + $0xe0] sm:$0xff]
        %v2303 = vld [vmem:[%s2 + $0xe8] sm:$0xff]
        %v2304 = vld [vmem:[%s2 + $0xf0] sm:$0xff]
        %v2305 = vld [vmem:[%s2 + $0xf8] sm:$0xff]
        %v2306 = vld [vmem:[%s2 + $0x100] sm:$0xff]
        %v2307 = vld [vmem:[%s2 + $0x108] sm:$0xff]
        %v2308 = vld [vmem:[%s2 + $0x110] sm:$0xff]
        %v2309 = vld [vmem:[%s2 + $0x118] sm:$0xff]
        %v2310 = vld [vmem:[%s2 + $0x120] sm:$0xff]
        %v2311 = vld [vmem:[%s2 + $0x128] sm:$0xff]
        %v2312 = vld [vmem:[%s2 + $0x130] sm:$0xff]
        %v2313 = vld [vmem:[%s2 + $0x138] sm:$0xff]
        %v2314 = vld [vmem:[%s2 + $0x140] sm:$0xff]
        %v2315 = vld [vmem:[%s2 + $0x148] sm:$0xff]
        %v2316 = vld [vmem:[%s2 + $0x150] sm:$0xff]
        %v2317 = vld [vmem:[%s2 + $0x158] sm:$0xff]
        %v2318 = vld [vmem:[%s2 + $0x160] sm:$0xff]
        %v2319 = vld [vmem:[%s2 + $0x168] sm:$0xff]
        %v2320 = vld [vmem:[%s2 + $0x170] sm:$0xff]
        %v2321 = vld [vmem:[%s2 + $0x178] sm:$0xff]
        %v2322 = vld [vmem:[%s474] sm:$0x1]
        %v2324 = vlaneseq
        %v2325 = vshrl.u32 %v2324, 7
        %v2326 = vsub.s32 0, %v2325
        %v2327 = vrot.slane %v2322, %v2326
        %v2377 = vunpack.c.l.b16 %v2274
        %v2378 = vunpack.c.h.b16 %v2274
        %v2379 = vunpack.c.l.b16 %v2275
        %v2380 = vunpack.c.h.b16 %v2275
        %v2381 = vunpack.c.l.b16 %v2276
        %v2382 = vunpack.c.h.b16 %v2276
        %v2383 = vunpack.c.l.b16 %v2277
        %v2384 = vunpack.c.h.b16 %v2277
        %v2385 = vunpack.c.l.b16 %v2278
        %v2386 = vunpack.c.h.b16 %v2278
        %v2387 = vunpack.c.l.b16 %v2279
        %v2388 = vunpack.c.h.b16 %v2279
        %v2389 = vunpack.c.l.b16 %v2280
        %v2390 = vunpack.c.h.b16 %v2280
        %v2391 = vunpack.c.l.b16 %v2281
        %v2392 = vunpack.c.h.b16 %v2281
        %v2393 = vunpack.c.l.b16 %v2282
        %v2394 = vunpack.c.h.b16 %v2282
        %v2395 = vunpack.c.l.b16 %v2283
        %v2396 = vunpack.c.h.b16 %v2283
        %v2397 = vunpack.c.l.b16 %v2284
        %v2398 = vunpack.c.h.b16 %v2284
        %v2399 = vunpack.c.l.b16 %v2285
        %v2400 = vunpack.c.h.b16 %v2285
        %v2401 = vunpack.c.l.b16 %v2286
        %v2402 = vunpack.c.h.b16 %v2286
        %v2403 = vunpack.c.l.b16 %v2287
        %v2404 = vunpack.c.h.b16 %v2287
        %v2405 = vunpack.c.l.b16 %v2288
        %v2406 = vunpack.c.h.b16 %v2288
        %v2407 = vunpack.c.l.b16 %v2289
        %v2408 = vunpack.c.h.b16 %v2289
        %v2409 = vunpack.c.l.b16 %v2290
        %v2410 = vunpack.c.h.b16 %v2290
        %v2411 = vunpack.c.l.b16 %v2291
        %v2412 = vunpack.c.h.b16 %v2291
        %v2413 = vunpack.c.l.b16 %v2292
        %v2414 = vunpack.c.h.b16 %v2292
        %v2415 = vunpack.c.l.b16 %v2293
        %v2416 = vunpack.c.h.b16 %v2293
        %v2417 = vunpack.c.l.b16 %v2294
        %v2418 = vunpack.c.h.b16 %v2294
        %v2419 = vunpack.c.l.b16 %v2295
        %v2420 = vunpack.c.h.b16 %v2295
        %v2421 = vunpack.c.l.b16 %v2296
        %v2422 = vunpack.c.h.b16 %v2296
        %v2423 = vunpack.c.l.b16 %v2297
        %v2424 = vunpack.c.h.b16 %v2297
        %v2425 = vunpack.c.l.b16 %v2298
        %v2426 = vunpack.c.h.b16 %v2298
        %v2427 = vunpack.c.l.b16 %v2299
        %v2428 = vunpack.c.h.b16 %v2299
        %v2429 = vunpack.c.l.b16 %v2300
        %v2430 = vunpack.c.h.b16 %v2300
        %v2431 = vunpack.c.l.b16 %v2301
        %v2432 = vunpack.c.h.b16 %v2301
        %v2433 = vunpack.c.l.b16 %v2302
        %v2434 = vunpack.c.h.b16 %v2302
        %v2435 = vunpack.c.l.b16 %v2303
        %v2436 = vunpack.c.h.b16 %v2303
        %v2437 = vunpack.c.l.b16 %v2304
        %v2438 = vunpack.c.h.b16 %v2304
        %v2439 = vunpack.c.l.b16 %v2305
        %v2440 = vunpack.c.h.b16 %v2305
        %v2441 = vunpack.c.l.b16 %v2306
        %v2442 = vunpack.c.h.b16 %v2306
        %v2443 = vunpack.c.l.b16 %v2307
        %v2444 = vunpack.c.h.b16 %v2307
        %v2445 = vunpack.c.l.b16 %v2308
        %v2446 = vunpack.c.h.b16 %v2308
        %v2447 = vunpack.c.l.b16 %v2309
        %v2448 = vunpack.c.h.b16 %v2309
        %v2449 = vunpack.c.l.b16 %v2310
        %v2450 = vunpack.c.h.b16 %v2310
        %v2451 = vunpack.c.l.b16 %v2311
        %v2452 = vunpack.c.h.b16 %v2311
        %v2453 = vunpack.c.l.b16 %v2312
        %v2454 = vunpack.c.h.b16 %v2312
        %v2455 = vunpack.c.l.b16 %v2313
        %v2456 = vunpack.c.h.b16 %v2313
        %v2457 = vunpack.c.l.b16 %v2314
        %v2458 = vunpack.c.h.b16 %v2314
        %v2459 = vunpack.c.l.b16 %v2315
        %v2460 = vunpack.c.h.b16 %v2315
        %v2461 = vunpack.c.l.b16 %v2316
        %v2462 = vunpack.c.h.b16 %v2316
        %v2463 = vunpack.c.l.b16 %v2317
        %v2464 = vunpack.c.h.b16 %v2317
        %v2465 = vunpack.c.l.b16 %v2318
        %v2466 = vunpack.c.h.b16 %v2318
        %v2467 = vunpack.c.l.b16 %v2319
        %v2468 = vunpack.c.h.b16 %v2319
        %v2469 = vunpack.c.l.b16 %v2320
        %v2470 = vunpack.c.h.b16 %v2320
        %v2471 = vunpack.c.l.b16 %v2321
        %v2472 = vunpack.c.h.b16 %v2321
        %v2473 = vpack.c.b16 %v2381, %v2377
        %v2474 = vpack.c.b16 %v2382, %v2378
        %v2475 = vpack.c.b16 %v2383, %v2379
        %v2476 = vpack.c.b16 %v2384, %v2380
        %v2477 = vpack.c.b16 %v2389, %v2385
        %v2478 = vpack.c.b16 %v2390, %v2386
        %v2479 = vpack.c.b16 %v2391, %v2387
        %v2480 = vpack.c.b16 %v2392, %v2388
        %v2481 = vpack.c.b16 %v2397, %v2393
        %v2482 = vpack.c.b16 %v2398, %v2394
        %v2483 = vpack.c.b16 %v2399, %v2395
        %v2484 = vpack.c.b16 %v2400, %v2396
        %v2485 = vpack.c.b16 %v2405, %v2401
        %v2486 = vpack.c.b16 %v2406, %v2402
        %v2487 = vpack.c.b16 %v2407, %v2403
        %v2488 = vpack.c.b16 %v2408, %v2404
        %v2489 = vpack.c.b16 %v2413, %v2409
        %v2490 = vpack.c.b16 %v2414, %v2410
        %v2491 = vpack.c.b16 %v2415, %v2411
        %v2492 = vpack.c.b16 %v2416, %v2412
        %v2493 = vpack.c.b16 %v2421, %v2417
        %v2494 = vpack.c.b16 %v2422, %v2418
        %v2495 = vpack.c.b16 %v2423, %v2419
        %v2496 = vpack.c.b16 %v2424, %v2420
        %v2497 = vpack.c.b16 %v2429, %v2425
        %v2498 = vpack.c.b16 %v2430, %v2426
        %v2499 = vpack.c.b16 %v2431, %v2427
        %v2500 = vpack.c.b16 %v2432, %v2428
        %v2501 = vpack.c.b16 %v2437, %v2433
        %v2502 = vpack.c.b16 %v2438, %v2434
        %v2503 = vpack.c.b16 %v2439, %v2435
        %v2504 = vpack.c.b16 %v2440, %v2436
        %v2505 = vpack.c.b16 %v2445, %v2441
        %v2506 = vpack.c.b16 %v2446, %v2442
        %v2507 = vpack.c.b16 %v2447, %v2443
        %v2508 = vpack.c.b16 %v2448, %v2444
        %v2509 = vpack.c.b16 %v2453, %v2449
        %v2510 = vpack.c.b16 %v2454, %v2450
        %v2511 = vpack.c.b16 %v2455, %v2451
        %v2512 = vpack.c.b16 %v2456, %v2452
        %v2513 = vpack.c.b16 %v2461, %v2457
        %v2514 = vpack.c.b16 %v2462, %v2458
        %v2515 = vpack.c.b16 %v2463, %v2459
        %v2516 = vpack.c.b16 %v2464, %v2460
        %v2517 = vpack.c.b16 %v2469, %v2465
        %v2518 = vpack.c.b16 %v2470, %v2466
        %v2519 = vpack.c.b16 %v2471, %v2467
        %v2520 = vpack.c.b16 %v2472, %v2468
        %v2633 = vunpack.c.l.b16 %v704
        %v2634 = vunpack.c.l.b16 %v705
        %v2635 = vunpack.c.l.b16 %v706
        %v2636 = vunpack.c.l.b16 %v707
        %v2637 = vunpack.c.l.b16 %v708
        %v2638 = vunpack.c.l.b16 %v709
        %v2639 = vunpack.c.l.b16 %v710
        %v2640 = vunpack.c.l.b16 %v711
        %v2641 = vunpack.c.l.b16 %v712
        %v2642 = vunpack.c.l.b16 %v713
        %v2643 = vunpack.c.l.b16 %v714
        %v2644 = vunpack.c.l.b16 %v715
        %v2645 = vunpack.c.l.b16 %v716
        %v2646 = vunpack.c.l.b16 %v717
        %v2647 = vunpack.c.l.b16 %v718
        %v2648 = vunpack.c.l.b16 %v719
        %v2649 = vunpack.c.l.b16 %v720
        %v2650 = vunpack.c.l.b16 %v721
        %v2651 = vunpack.c.l.b16 %v722
        %v2652 = vunpack.c.l.b16 %v723
        %v2653 = vunpack.c.l.b16 %v724
        %v2654 = vunpack.c.l.b16 %v725
        %v2655 = vunpack.c.l.b16 %v726
        %v2656 = vunpack.c.l.b16 %v727
        %v2657 = vunpack.c.l.b16 %v728
        %v2658 = vunpack.c.l.b16 %v729
        %v2659 = vunpack.c.l.b16 %v730
        %v2660 = vunpack.c.l.b16 %v731
        %v2661 = vunpack.c.l.b16 %v732
        %v2662 = vunpack.c.l.b16 %v733
        %v2663 = vunpack.c.l.b16 %v734
        %v2664 = vunpack.c.l.b16 %v735
        %v2665 = vunpack.c.l.b16 %v736
        %v2666 = vunpack.c.l.b16 %v737
        %v2667 = vunpack.c.l.b16 %v738
        %v2668 = vunpack.c.l.b16 %v739
        %v2669 = vunpack.c.l.b16 %v740
        %v2670 = vunpack.c.l.b16 %v741
        %v2671 = vunpack.c.l.b16 %v742
        %v2672 = vunpack.c.l.b16 %v743
        %v2673 = vunpack.c.l.b16 %v744
        %v2674 = vunpack.c.l.b16 %v745
        %v2675 = vunpack.c.l.b16 %v746
        %v2676 = vunpack.c.l.b16 %v747
        %v2677 = vunpack.c.l.b16 %v748
        %v2678 = vunpack.c.l.b16 %v749
        %v2679 = vunpack.c.l.b16 %v750
        %v2680 = vunpack.c.l.b16 %v751
        %v2681 = vunpack.c.l.b16 %v752
        %v2682 = vunpack.c.l.b16 %v753
        %v2683 = vunpack.c.l.b16 %v754
        %v2684 = vunpack.c.l.b16 %v755
        %v2685 = vunpack.c.l.b16 %v756
        %v2686 = vunpack.c.l.b16 %v757
        %v2687 = vunpack.c.l.b16 %v758
        %v2688 = vunpack.c.l.b16 %v759
        %v2689 = vunpack.c.l.b16 %v760
        %v2690 = vunpack.c.l.b16 %v761
        %v2691 = vunpack.c.l.b16 %v762
        %v2692 = vunpack.c.l.b16 %v763
        %v2693 = vunpack.c.l.b16 %v764
        %v2694 = vunpack.c.l.b16 %v765
        %v2695 = vunpack.c.l.b16 %v766
        %v2696 = vunpack.c.l.b16 %v767
        %v2697 = vpack.c.b16 %v2634, %v2633
        %v2698 = vpack.c.b16 %v2636, %v2635
        %v2699 = vpack.c.b16 %v2638, %v2637
        %v2700 = vpack.c.b16 %v2640, %v2639
        %v2701 = vpack.c.b16 %v2642, %v2641
        %v2702 = vpack.c.b16 %v2644, %v2643
        %v2703 = vpack.c.b16 %v2646, %v2645
        %v2704 = vpack.c.b16 %v2648, %v2647
        %v2705 = vpack.c.b16 %v2650, %v2649
        %v2706 = vpack.c.b16 %v2652, %v2651
        %v2707 = vpack.c.b16 %v2654, %v2653
        %v2708 = vpack.c.b16 %v2656, %v2655
        %v2709 = vpack.c.b16 %v2658, %v2657
        %v2710 = vpack.c.b16 %v2660, %v2659
        %v2711 = vpack.c.b16 %v2662, %v2661
        %v2712 = vpack.c.b16 %v2664, %v2663
        %v2713 = vpack.c.b16 %v2666, %v2665
        %v2714 = vpack.c.b16 %v2668, %v2667
        %v2715 = vpack.c.b16 %v2670, %v2669
        %v2716 = vpack.c.b16 %v2672, %v2671
        %v2717 = vpack.c.b16 %v2674, %v2673
        %v2718 = vpack.c.b16 %v2676, %v2675
        %v2719 = vpack.c.b16 %v2678, %v2677
        %v2720 = vpack.c.b16 %v2680, %v2679
        %v2721 = vpack.c.b16 %v2682, %v2681
        %v2722 = vpack.c.b16 %v2684, %v2683
        %v2723 = vpack.c.b16 %v2686, %v2685
        %v2724 = vpack.c.b16 %v2688, %v2687
        %v2725 = vpack.c.b16 %v2690, %v2689
        %v2726 = vpack.c.b16 %v2692, %v2691
        %v2727 = vpack.c.b16 %v2694, %v2693
        %v2728 = vpack.c.b16 %v2696, %v2695
        %2761 = vmatprep.subr.bf16.mxu0 0
        %2762 = vmatpush1.bf16.msra.mxu0 %v2697
        %2763 = vmatprep.subr.bf16.mxu0 0
        %2764 = vmatpush1.bf16.msra.mxu0 %v2698
        %2765 = vmatprep.subr.bf16.mxu0 0
        %2766 = vmatpush1.bf16.msra.mxu0 %v2699
        %2767 = vmatprep.subr.bf16.mxu0 0
        %2768 = vmatpush1.bf16.msra.mxu0 %v2700
        %2769 = vmatprep.subr.bf16.mxu0 0
        %2770 = vmatpush1.bf16.msra.mxu0 %v2701
        %2771 = vmatprep.subr.bf16.mxu0 0
        %2772 = vmatpush1.bf16.msra.mxu0 %v2702
        %2773 = vmatprep.subr.bf16.mxu0 0
        %2774 = vmatpush1.bf16.msra.mxu0 %v2703
        %2775 = vmatprep.subr.bf16.mxu0 0
        %2776 = vmatpush1.bf16.msra.mxu0 %v2704
        %2777 = vmatprep.subr.bf16.mxu0 0
        %2778 = vmatpush1.bf16.msra.mxu0 %v2705
        %2779 = vmatprep.subr.bf16.mxu0 0
        %2780 = vmatpush1.bf16.msra.mxu0 %v2706
        %2781 = vmatprep.subr.bf16.mxu0 0
        %2782 = vmatpush1.bf16.msra.mxu0 %v2707
        %2783 = vmatprep.subr.bf16.mxu0 0
        %2784 = vmatpush1.bf16.msra.mxu0 %v2708
        %2785 = vmatprep.subr.bf16.mxu0 0
        %2786 = vmatpush1.bf16.msra.mxu0 %v2709
        %2787 = vmatprep.subr.bf16.mxu0 0
        %2788 = vmatpush1.bf16.msra.mxu0 %v2710
        %2789 = vmatprep.subr.bf16.mxu0 0
        %2790 = vmatpush1.bf16.msra.mxu0 %v2711
        %2791 = vmatprep.subr.bf16.mxu0 0
        %2792 = vmatpush1.bf16.msra.mxu0 %v2712
        %2793 = vmatprep.mubr.bf16.mxu0 %v2474
        %2794 = vmatmul.mubr.bf16.gmra.mrb[0].mxu0 %v2473
        %v2795 = vpop.f32.mrb[0].mxu0
        %v2796 = vadd.f32 %v2327, %v2795
        %v2797 = vpop.f32.mrb[0].mxu0
        %v2798 = vpop.f32.mrb[0].mxu0
        %v2799 = vadd.f32 %v2327, %v2798
        %v2800 = vpop.f32.mrb[0].mxu0
        %2801 = vmatprep.mubr.bf16.mxu0 %v2478
        %2802 = vmatmul.mubr.bf16.gmra.mrb[0].mxu0 %v2477
        %v2803 = vpop.f32.mrb[0].mxu0
        %v2804 = vadd.f32 %v2327, %v2803
        %v2805 = vpop.f32.mrb[0].mxu0
        %v2806 = vpop.f32.mrb[0].mxu0
        %v2807 = vadd.f32 %v2327, %v2806
        %v2808 = vpop.f32.mrb[0].mxu0
        %2809 = vmatprep.mubr.bf16.mxu0 %v2482
        %2810 = vmatmul.mubr.bf16.gmra.mrb[0].mxu0 %v2481
        %v2811 = vpop.f32.mrb[0].mxu0
        %v2812 = vadd.f32 %v2327, %v2811
        %v2813 = vpop.f32.mrb[0].mxu0
        %v2814 = vpop.f32.mrb[0].mxu0
        %v2815 = vadd.f32 %v2327, %v2814
        %v2816 = vpop.f32.mrb[0].mxu0
        %2817 = vmatprep.mubr.bf16.mxu0 %v2486
        %2818 = vmatmul.mubr.bf16.gmra.mrb[0].mxu0 %v2485
        %v2819 = vpop.f32.mrb[0].mxu0
        %v2820 = vadd.f32 %v2327, %v2819
        %v2821 = vpop.f32.mrb[0].mxu0
        %v2822 = vpop.f32.mrb[0].mxu0
        %v2823 = vadd.f32 %v2327, %v2822
        %v2824 = vpop.f32.mrb[0].mxu0
        %2825 = vmatprep.mubr.bf16.mxu0 %v2490
        %2826 = vmatmul.mubr.bf16.gmra.mrb[0].mxu0 %v2489
        %v2827 = vpop.f32.mrb[0].mxu0
        %v2828 = vadd.f32 %v2327, %v2827
        %v2829 = vpop.f32.mrb[0].mxu0
        %v2830 = vpop.f32.mrb[0].mxu0
        %v2831 = vadd.f32 %v2327, %v2830
        %v2832 = vpop.f32.mrb[0].mxu0
        %2833 = vmatprep.mubr.bf16.mxu0 %v2494
        %2834 = vmatmul.mubr.bf16.gmra.mrb[0].mxu0 %v2493
        %v2835 = vpop.f32.mrb[0].mxu0
        %v2836 = vadd.f32 %v2327, %v2835
        %v2837 = vpop.f32.mrb[0].mxu0
        %v2838 = vpop.f32.mrb[0].mxu0
        %v2839 = vadd.f32 %v2327, %v2838
        %v2840 = vpop.f32.mrb[0].mxu0
        %2841 = vmatprep.mubr.bf16.mxu0 %v2498
        %2842 = vmatmul.mubr.bf16.gmra.mrb[0].mxu0 %v2497
        %v2843 = vpop.f32.mrb[0].mxu0
        %v2844 = vadd.f32 %v2327, %v2843
        %v2845 = vpop.f32.mrb[0].mxu0
        %v2846 = vpop.f32.mrb[0].mxu0
        %v2847 = vadd.f32 %v2327, %v2846
        %v2848 = vpop.f32.mrb[0].mxu0
        %2849 = vmatprep.mubr.bf16.mxu0 %v2502
        %2850 = vmatmul.mubr.bf16.gmra.mrb[0].mxu0 %v2501
        %v2851 = vpop.f32.mrb[0].mxu0
        %v2852 = vadd.f32 %v2327, %v2851
        %v2853 = vpop.f32.mrb[0].mxu0
        %v2854 = vpop.f32.mrb[0].mxu0
        %v2855 = vadd.f32 %v2327, %v2854
        %v2856 = vpop.f32.mrb[0].mxu0
        %2857 = vmatprep.mubr.bf16.mxu0 %v2506
        %2858 = vmatmul.mubr.bf16.gmra.mrb[0].mxu0 %v2505
        %v2859 = vpop.f32.mrb[0].mxu0
        %v2860 = vadd.f32 %v2327, %v2859
        %v2861 = vpop.f32.mrb[0].mxu0
        %v2862 = vpop.f32.mrb[0].mxu0
        %v2863 = vadd.f32 %v2327, %v2862
        %v2864 = vpop.f32.mrb[0].mxu0
        %2865 = vmatprep.mubr.bf16.mxu0 %v2510
        %2866 = vmatmul.mubr.bf16.gmra.mrb[0].mxu0 %v2509
        %v2867 = vpop.f32.mrb[0].mxu0
        %v2868 = vadd.f32 %v2327, %v2867
        %v2869 = vpop.f32.mrb[0].mxu0
        %v2870 = vpop.f32.mrb[0].mxu0
        %v2871 = vadd.f32 %v2327, %v2870
        %v2872 = vpop.f32.mrb[0].mxu0
        %2873 = vmatprep.mubr.bf16.mxu0 %v2514
        %2874 = vmatmul.mubr.bf16.gmra.mrb[0].mxu0 %v2513
        %v2875 = vpop.f32.mrb[0].mxu0
        %v2876 = vadd.f32 %v2327, %v2875
        %v2877 = vpop.f32.mrb[0].mxu0
        %v2878 = vpop.f32.mrb[0].mxu0
        %v2879 = vadd.f32 %v2327, %v2878
        %v2880 = vpop.f32.mrb[0].mxu0
        %2881 = vmatprep.mubr.bf16.mxu0 %v2518
        %2882 = vmatmul.mubr.bf16.gmra.mrb[0].mxu0 %v2517
        %v2883 = vpop.f32.mrb[0].mxu0
        %v2884 = vadd.f32 %v2327, %v2883
        %v2885 = vpop.f32.mrb[0].mxu0
        %v2886 = vpop.f32.mrb[0].mxu0
        %v2887 = vadd.f32 %v2327, %v2886
        %v2888 = vpop.f32.mrb[0].mxu0
        %2889 = vdwg.mxu0
        %2890 = vmatprep.subr.bf16.mxu0 0
        %2891 = vmatpush1.bf16.msra.mxu0 %v2713
        %2892 = vmatprep.subr.bf16.mxu0 0
        %2893 = vmatpush1.bf16.msra.mxu0 %v2714
        %2894 = vmatprep.subr.bf16.mxu0 0
        %2895 = vmatpush1.bf16.msra.mxu0 %v2715
        %2896 = vmatprep.subr.bf16.mxu0 0
        %2897 = vmatpush1.bf16.msra.mxu0 %v2716
        %2898 = vmatprep.subr.bf16.mxu0 0
        %2899 = vmatpush1.bf16.msra.mxu0 %v2717
        %2900 = vmatprep.subr.bf16.mxu0 0
        %2901 = vmatpush1.bf16.msra.mxu0 %v2718
        %2902 = vmatprep.subr.bf16.mxu0 0
        %2903 = vmatpush1.bf16.msra.mxu0 %v2719
        %2904 = vmatprep.subr.bf16.mxu0 0
        %2905 = vmatpush1.bf16.msra.mxu0 %v2720
        %2906 = vmatprep.subr.bf16.mxu0 0
        %2907 = vmatpush1.bf16.msra.mxu0 %v2721
        %2908 = vmatprep.subr.bf16.mxu0 0
        %2909 = vmatpush1.bf16.msra.mxu0 %v2722
        %2910 = vmatprep.subr.bf16.mxu0 0
        %2911 = vmatpush1.bf16.msra.mxu0 %v2723
        %2912 = vmatprep.subr.bf16.mxu0 0
        %2913 = vmatpush1.bf16.msra.mxu0 %v2724
        %2914 = vmatprep.subr.bf16.mxu0 0
        %2915 = vmatpush1.bf16.msra.mxu0 %v2725
        %2916 = vmatprep.subr.bf16.mxu0 0
        %2917 = vmatpush1.bf16.msra.mxu0 %v2726
        %2918 = vmatprep.subr.bf16.mxu0 0
        %2919 = vmatpush1.bf16.msra.mxu0 %v2727
        %2920 = vmatprep.subr.bf16.mxu0 0
        %2921 = vmatpush1.bf16.msra.mxu0 %v2728
        %2922 = vmatprep.mubr.bf16.mxu0 %v2476
        %2923 = vmatmul.mubr.bf16.gmra.mrb[0].mxu0 %v2475
        %v2924 = vpop.f32.mrb[0].mxu0
        %v2925 = vadd.f32 %v2796, %v2924
        %v2926 = vpop.f32.mrb[0].mxu0
        %v2927 = vpop.f32.mrb[0].mxu0
        %v2928 = vadd.f32 %v2799, %v2927
        %v2929 = vpop.f32.mrb[0].mxu0
        %2930 = vmatprep.mubr.bf16.mxu0 %v2480
        %2931 = vmatmul.mubr.bf16.gmra.mrb[0].mxu0 %v2479
        %v2932 = vpop.f32.mrb[0].mxu0
        %v2933 = vadd.f32 %v2804, %v2932
        %v2934 = vpop.f32.mrb[0].mxu0
        %v2935 = vpop.f32.mrb[0].mxu0
        %v2936 = vadd.f32 %v2807, %v2935
        %v2937 = vpop.f32.mrb[0].mxu0
        %2938 = vmatprep.mubr.bf16.mxu0 %v2484
        %2939 = vmatmul.mubr.bf16.gmra.mrb[0].mxu0 %v2483
        %v2940 = vpop.f32.mrb[0].mxu0
        %v2941 = vadd.f32 %v2812, %v2940
        %v2942 = vpop.f32.mrb[0].mxu0
        %v2943 = vpop.f32.mrb[0].mxu0
        %v2944 = vadd.f32 %v2815, %v2943
        %v2945 = vpop.f32.mrb[0].mxu0
        %2946 = vmatprep.mubr.bf16.mxu0 %v2488
        %2947 = vmatmul.mubr.bf16.gmra.mrb[0].mxu0 %v2487
        %v2948 = vpop.f32.mrb[0].mxu0
        %v2949 = vadd.f32 %v2820, %v2948
        %v2950 = vpop.f32.mrb[0].mxu0
        %v2951 = vpop.f32.mrb[0].mxu0
        %v2952 = vadd.f32 %v2823, %v2951
        %v2953 = vpop.f32.mrb[0].mxu0
        %2954 = vmatprep.mubr.bf16.mxu0 %v2492
        %2955 = vmatmul.mubr.bf16.gmra.mrb[0].mxu0 %v2491
        %v2956 = vpop.f32.mrb[0].mxu0
        %v2957 = vadd.f32 %v2828, %v2956
        %v2958 = vpop.f32.mrb[0].mxu0
        %v2959 = vpop.f32.mrb[0].mxu0
        %v2960 = vadd.f32 %v2831, %v2959
        %v2961 = vpop.f32.mrb[0].mxu0
        %2962 = vmatprep.mubr.bf16.mxu0 %v2496
        %2963 = vmatmul.mubr.bf16.gmra.mrb[0].mxu0 %v2495
        %v2964 = vpop.f32.mrb[0].mxu0
        %v2965 = vadd.f32 %v2836, %v2964
        %v2966 = vpop.f32.mrb[0].mxu0
        %v2967 = vpop.f32.mrb[0].mxu0
        %v2968 = vadd.f32 %v2839, %v2967
        %v2969 = vpop.f32.mrb[0].mxu0
        %2970 = vmatprep.mubr.bf16.mxu0 %v2500
        %2971 = vmatmul.mubr.bf16.gmra.mrb[0].mxu0 %v2499
        %v2972 = vpop.f32.mrb[0].mxu0
        %v2973 = vadd.f32 %v2844, %v2972
        %v2974 = vpop.f32.mrb[0].mxu0
        %v2975 = vpop.f32.mrb[0].mxu0
        %v2976 = vadd.f32 %v2847, %v2975
        %v2977 = vpop.f32.mrb[0].mxu0
        %2978 = vmatprep.mubr.bf16.mxu0 %v2504
        %2979 = vmatmul.mubr.bf16.gmra.mrb[0].mxu0 %v2503
        %v2980 = vpop.f32.mrb[0].mxu0
        %v2981 = vadd.f32 %v2852, %v2980
        %v2982 = vpop.f32.mrb[0].mxu0
        %v2983 = vpop.f32.mrb[0].mxu0
        %v2984 = vadd.f32 %v2855, %v2983
        %v2985 = vpop.f32.mrb[0].mxu0
        %2986 = vmatprep.mubr.bf16.mxu0 %v2508
        %2987 = vmatmul.mubr.bf16.gmra.mrb[0].mxu0 %v2507
        %v2988 = vpop.f32.mrb[0].mxu0
        %v2989 = vadd.f32 %v2860, %v2988
        %v2990 = vpop.f32.mrb[0].mxu0
        %v2991 = vpop.f32.mrb[0].mxu0
        %v2992 = vadd.f32 %v2863, %v2991
        %v2993 = vpop.f32.mrb[0].mxu0
        %2994 = vmatprep.mubr.bf16.mxu0 %v2512
        %2995 = vmatmul.mubr.bf16.gmra.mrb[0].mxu0 %v2511
        %v2996 = vpop.f32.mrb[0].mxu0
        %v2997 = vadd.f32 %v2868, %v2996
        %v2998 = vpop.f32.mrb[0].mxu0
        %v2999 = vpop.f32.mrb[0].mxu0
        %v3000 = vadd.f32 %v2871, %v2999
        %v3001 = vpop.f32.mrb[0].mxu0
        %3002 = vmatprep.mubr.bf16.mxu0 %v2516
        %3003 = vmatmul.mubr.bf16.gmra.mrb[0].mxu0 %v2515
        %v3004 = vpop.f32.mrb[0].mxu0
        %v3005 = vadd.f32 %v2876, %v3004
        %v3006 = vpop.f32.mrb[0].mxu0
        %v3007 = vpop.f32.mrb[0].mxu0
        %v3008 = vadd.f32 %v2879, %v3007
        %v3009 = vpop.f32.mrb[0].mxu0
        %3010 = vmatprep.mubr.bf16.mxu0 %v2520
        %3011 = vmatmul.mubr.bf16.gmra.mrb[0].mxu0 %v2519
        %v3012 = vpop.f32.mrb[0].mxu0
        %v3013 = vadd.f32 %v2884, %v3012
        %v3014 = vpop.f32.mrb[0].mxu0
        %v3015 = vpop.f32.mrb[0].mxu0
        %v3016 = vadd.f32 %v2887, %v3015
        %v3017 = vpop.f32.mrb[0].mxu0
        %3018 = vdwg.mxu0
        %v3019 = vpack.c.bf16 %v1438, %v1435
        %v3020 = vpack.c.bf16 %v1446, %v1443
        %v3021 = vpack.c.bf16 %v1454, %v1451
        %v3022 = vpack.c.bf16 %v1462, %v1459
        %v3023 = vpack.c.bf16 %v1470, %v1467
        %v3024 = vpack.c.bf16 %v1478, %v1475
        %v3025 = vpack.c.bf16 %v1486, %v1483
        %v3026 = vpack.c.bf16 %v1494, %v1491
        %v3027 = vpack.c.bf16 %v1502, %v1499
        %v3028 = vpack.c.bf16 %v1510, %v1507
        %v3029 = vpack.c.bf16 %v1518, %v1515
        %v3030 = vpack.c.bf16 %v1526, %v1523
        %v3031 = vpack.c.bf16 %v2183, %v2180
        %v3032 = vpack.c.bf16 %v2191, %v2188
        %v3033 = vpack.c.bf16 %v2199, %v2196
        %v3034 = vpack.c.bf16 %v2207, %v2204
        %v3035 = vpack.c.bf16 %v2215, %v2212
        %v3036 = vpack.c.bf16 %v2223, %v2220
        %v3037 = vpack.c.bf16 %v2231, %v2228
        %v3038 = vpack.c.bf16 %v2239, %v2236
        %v3039 = vpack.c.bf16 %v2247, %v2244
        %v3040 = vpack.c.bf16 %v2255, %v2252
        %v3041 = vpack.c.bf16 %v2263, %v2260
        %v3042 = vpack.c.bf16 %v2271, %v2268
        %v3043 = vpack.c.bf16 %v2928, %v2925
        %v3044 = vpack.c.bf16 %v2936, %v2933
        %v3045 = vpack.c.bf16 %v2944, %v2941
        %v3046 = vpack.c.bf16 %v2952, %v2949
        %v3047 = vpack.c.bf16 %v2960, %v2957
        %v3048 = vpack.c.bf16 %v2968, %v2965
        %v3049 = vpack.c.bf16 %v2976, %v2973
        %v3050 = vpack.c.bf16 %v2984, %v2981
        %v3051 = vpack.c.bf16 %v2992, %v2989
        %v3052 = vpack.c.bf16 %v3000, %v2997
        %v3053 = vpack.c.bf16 %v3008, %v3005
        %v3054 = vpack.c.bf16 %v3016, %v3013
        %vm3055 = vcmask 523264
        %v3057 = vsel %vm3055, %v3019, 0
        %v3060 = vsel %vm3055, %v3031, 0
        %3062 = vmatprep.subr.bf16.mxu0 0
        %3063 = vmatpush1.bf16.xpose.msra.mxu0 %v3060
        %3064 = vmatprep.subr.bf16.mxu0 0
        %3065 = vmatpush1.bf16.xpose.msra.mxu0 0
        %3066 = vmatprep.subr.bf16.mxu0 0
        %3067 = vmatpush1.bf16.xpose.msra.mxu0 0
        %3068 = vmatprep.subr.bf16.mxu0 0
        %3069 = vmatpush1.bf16.xpose.msra.mxu0 0
        %3070 = vmatprep.subr.bf16.mxu0 0
        %3071 = vmatpush1.bf16.xpose.msra.mxu0 0
        %3072 = vmatprep.subr.bf16.mxu0 0
        %3073 = vmatpush1.bf16.xpose.msra.mxu0 0
        %3074 = vmatprep.subr.bf16.mxu0 0
        %3075 = vmatpush1.bf16.xpose.msra.mxu0 0
        %3076 = vmatprep.subr.bf16.mxu0 0
        %3077 = vmatpush1.bf16.xpose.msra.mxu0 0
        %3078 = vmatprep.subr.bf16.mxu0 0
        %3079 = vmatpush1.bf16.xpose.msra.mxu0 0
        %3080 = vmatprep.subr.bf16.mxu0 0
        %3081 = vmatpush1.bf16.xpose.msra.mxu0 0
        %3082 = vmatprep.subr.bf16.mxu0 0
        %3083 = vmatpush1.bf16.xpose.msra.mxu0 0
        %3084 = vmatprep.subr.bf16.mxu0 0
        %3085 = vmatpush1.bf16.xpose.msra.mxu0 0
        %3086 = vmatprep.subr.bf16.mxu0 0
        %3087 = vmatpush1.bf16.xpose.msra.mxu0 0
        %3088 = vmatprep.subr.bf16.mxu0 0
        %3089 = vmatpush1.bf16.xpose.msra.mxu0 0
        %3090 = vmatprep.subr.bf16.mxu0 0
        %3091 = vmatpush1.bf16.xpose.msra.mxu0 0
        %3092 = vmatprep.subr.bf16.mxu0 0
        %3093 = vmatpush1.bf16.xpose.msra.mxu0 0
        %3094 = vmatprep.mubr.bf16.mxu0 0
        %3095 = vmatmul.mubr.bf16.gmra.mrb[0].mxu0 %v3057
        %v3096 = vpop.f32.mrb[0].mxu0
        %v3097 = vadd.f32 0.0, %v3096
        %v3098 = vpop.f32.mrb[0].mxu0
        %v3099 = vpop.f32.mrb[0].mxu0
        %v3100 = vadd.f32 0.0, %v3099
        %v3101 = vpop.f32.mrb[0].mxu0
        %3102 = vdwg.mxu0
        %v3104 = vsel %vm3055, %v3020, 0
        %v3107 = vsel %vm3055, %v3032, 0
        %3109 = vmatprep.subr.bf16.mxu0 0
        %3110 = vmatpush1.bf16.xpose.msra.mxu0 %v3107
        %3111 = vmatprep.subr.bf16.mxu0 0
        %3112 = vmatpush1.bf16.xpose.msra.mxu0 0
        %3113 = vmatprep.subr.bf16.mxu0 0
        %3114 = vmatpush1.bf16.xpose.msra.mxu0 0
        %3115 = vmatprep.subr.bf16.mxu0 0
        %3116 = vmatpush1.bf16.xpose.msra.mxu0 0
        %3117 = vmatprep.subr.bf16.mxu0 0
        %3118 = vmatpush1.bf16.xpose.msra.mxu0 0
        %3119 = vmatprep.subr.bf16.mxu0 0
        %3120 = vmatpush1.bf16.xpose.msra.mxu0 0
        %3121 = vmatprep.subr.bf16.mxu0 0
        %3122 = vmatpush1.bf16.xpose.msra.mxu0 0
        %3123 = vmatprep.subr.bf16.mxu0 0
        %3124 = vmatpush1.bf16.xpose.msra.mxu0 0
        %3125 = vmatprep.subr.bf16.mxu0 0
        %3126 = vmatpush1.bf16.xpose.msra.mxu0 0
        %3127 = vmatprep.subr.bf16.mxu0 0
        %3128 = vmatpush1.bf16.xpose.msra.mxu0 0
        %3129 = vmatprep.subr.bf16.mxu0 0
        %3130 = vmatpush1.bf16.xpose.msra.mxu0 0
        %3131 = vmatprep.subr.bf16.mxu0 0
        %3132 = vmatpush1.bf16.xpose.msra.mxu0 0
        %3133 = vmatprep.subr.bf16.mxu0 0
        %3134 = vmatpush1.bf16.xpose.msra.mxu0 0
        %3135 = vmatprep.subr.bf16.mxu0 0
        %3136 = vmatpush1.bf16.xpose.msra.mxu0 0
        %3137 = vmatprep.subr.bf16.mxu0 0
        %3138 = vmatpush1.bf16.xpose.msra.mxu0 0
        %3139 = vmatprep.subr.bf16.mxu0 0
        %3140 = vmatpush1.bf16.xpose.msra.mxu0 0
        %3141 = vmatprep.mubr.bf16.mxu0 0
        %3142 = vmatmul.mubr.bf16.gmra.mrb[0].mxu0 %v3104
        %v3143 = vpop.f32.mrb[0].mxu0
        %v3144 = vadd.f32 0.0, %v3143
        %v3145 = vpop.f32.mrb[0].mxu0
        %v3146 = vpop.f32.mrb[0].mxu0
        %v3147 = vadd.f32 0.0, %v3146
        %v3148 = vpop.f32.mrb[0].mxu0
        %3149 = vdwg.mxu0
        %v3151 = vsel %vm3055, %v3021, 0
        %v3154 = vsel %vm3055, %v3033, 0
        %3156 = vmatprep.subr.bf16.mxu0 0
        %3157 = vmatpush1.bf16.xpose.msra.mxu0 %v3154
        %3158 = vmatprep.subr.bf16.mxu0 0
        %3159 = vmatpush1.bf16.xpose.msra.mxu0 0
        %3160 = vmatprep.subr.bf16.mxu0 0
        %3161 = vmatpush1.bf16.xpose.msra.mxu0 0
        %3162 = vmatprep.subr.bf16.mxu0 0
        %3163 = vmatpush1.bf16.xpose.msra.mxu0 0
        %3164 = vmatprep.subr.bf16.mxu0 0
        %3165 = vmatpush1.bf16.xpose.msra.mxu0 0
        %3166 = vmatprep.subr.bf16.mxu0 0
        %3167 = vmatpush1.bf16.xpose.msra.mxu0 0
        %3168 = vmatprep.subr.bf16.mxu0 0
        %3169 = vmatpush1.bf16.xpose.msra.mxu0 0
        %3170 = vmatprep.subr.bf16.mxu0 0
        %3171 = vmatpush1.bf16.xpose.msra.mxu0 0
        %3172 = vmatprep.subr.bf16.mxu0 0
        %3173 = vmatpush1.bf16.xpose.msra.mxu0 0
        %3174 = vmatprep.subr.bf16.mxu0 0
        %3175 = vmatpush1.bf16.xpose.msra.mxu0 0
        %3176 = vmatprep.subr.bf16.mxu0 0
        %3177 = vmatpush1.bf16.xpose.msra.mxu0 0
        %3178 = vmatprep.subr.bf16.mxu0 0
        %3179 = vmatpush1.bf16.xpose.msra.mxu0 0
        %3180 = vmatprep.subr.bf16.mxu0 0
        %3181 = vmatpush1.bf16.xpose.msra.mxu0 0
        %3182 = vmatprep.subr.bf16.mxu0 0
        %3183 = vmatpush1.bf16.xpose.msra.mxu0 0
        %3184 = vmatprep.subr.bf16.mxu0 0
        %3185 = vmatpush1.bf16.xpose.msra.mxu0 0
        %3186 = vmatprep.subr.bf16.mxu0 0
        %3187 = vmatpush1.bf16.xpose.msra.mxu0 0
        %3188 = vmatprep.mubr.bf16.mxu0 0
        %3189 = vmatmul.mubr.bf16.gmra.mrb[0].mxu0 %v3151
        %v3190 = vpop.f32.mrb[0].mxu0
        %v3191 = vadd.f32 0.0, %v3190
        %v3192 = vpop.f32.mrb[0].mxu0
        %v3193 = vpop.f32.mrb[0].mxu0
        %v3194 = vadd.f32 0.0, %v3193
        %v3195 = vpop.f32.mrb[0].mxu0
        %3196 = vdwg.mxu0
        %v3198 = vsel %vm3055, %v3022, 0
        %v3201 = vsel %vm3055, %v3034, 0
        %3203 = vmatprep.subr.bf16.mxu0 0
        %3204 = vmatpush1.bf16.xpose.msra.mxu0 %v3201
        %3205 = vmatprep.subr.bf16.mxu0 0
        %3206 = vmatpush1.bf16.xpose.msra.mxu0 0
        %3207 = vmatprep.subr.bf16.mxu0 0
        %3208 = vmatpush1.bf16.xpose.msra.mxu0 0
        %3209 = vmatprep.subr.bf16.mxu0 0
        %3210 = vmatpush1.bf16.xpose.msra.mxu0 0
        %3211 = vmatprep.subr.bf16.mxu0 0
        %3212 = vmatpush1.bf16.xpose.msra.mxu0 0
        %3213 = vmatprep.subr.bf16.mxu0 0
        %3214 = vmatpush1.bf16.xpose.msra.mxu0 0
        %3215 = vmatprep.subr.bf16.mxu0 0
        %3216 = vmatpush1.bf16.xpose.msra.mxu0 0
        %3217 = vmatprep.subr.bf16.mxu0 0
        %3218 = vmatpush1.bf16.xpose.msra.mxu0 0
        %3219 = vmatprep.subr.bf16.mxu0 0
        %3220 = vmatpush1.bf16.xpose.msra.mxu0 0
        %3221 = vmatprep.subr.bf16.mxu0 0
        %3222 = vmatpush1.bf16.xpose.msra.mxu0 0
        %3223 = vmatprep.subr.bf16.mxu0 0
        %3224 = vmatpush1.bf16.xpose.msra.mxu0 0
        %3225 = vmatprep.subr.bf16.mxu0 0
        %3226 = vmatpush1.bf16.xpose.msra.mxu0 0
        %3227 = vmatprep.subr.bf16.mxu0 0
        %3228 = vmatpush1.bf16.xpose.msra.mxu0 0
        %3229 = vmatprep.subr.bf16.mxu0 0
        %3230 = vmatpush1.bf16.xpose.msra.mxu0 0
        %3231 = vmatprep.subr.bf16.mxu0 0
        %3232 = vmatpush1.bf16.xpose.msra.mxu0 0
        %3233 = vmatprep.subr.bf16.mxu0 0
        %3234 = vmatpush1.bf16.xpose.msra.mxu0 0
        %3235 = vmatprep.mubr.bf16.mxu0 0
        %3236 = vmatmul.mubr.bf16.gmra.mrb[0].mxu0 %v3198
        %v3237 = vpop.f32.mrb[0].mxu0
        %v3238 = vadd.f32 0.0, %v3237
        %v3239 = vpop.f32.mrb[0].mxu0
        %v3240 = vpop.f32.mrb[0].mxu0
        %v3241 = vadd.f32 0.0, %v3240
        %v3242 = vpop.f32.mrb[0].mxu0
        %3243 = vdwg.mxu0
        %v3245 = vsel %vm3055, %v3023, 0
        %v3248 = vsel %vm3055, %v3035, 0
        %3250 = vmatprep.subr.bf16.mxu0 0
        %3251 = vmatpush1.bf16.xpose.msra.mxu0 %v3248
        %3252 = vmatprep.subr.bf16.mxu0 0
        %3253 = vmatpush1.bf16.xpose.msra.mxu0 0
        %3254 = vmatprep.subr.bf16.mxu0 0
        %3255 = vmatpush1.bf16.xpose.msra.mxu0 0
        %3256 = vmatprep.subr.bf16.mxu0 0
        %3257 = vmatpush1.bf16.xpose.msra.mxu0 0
        %3258 = vmatprep.subr.bf16.mxu0 0
        %3259 = vmatpush1.bf16.xpose.msra.mxu0 0
        %3260 = vmatprep.subr.bf16.mxu0 0
        %3261 = vmatpush1.bf16.xpose.msra.mxu0 0
        %3262 = vmatprep.subr.bf16.mxu0 0
        %3263 = vmatpush1.bf16.xpose.msra.mxu0 0
        %3264 = vmatprep.subr.bf16.mxu0 0
        %3265 = vmatpush1.bf16.xpose.msra.mxu0 0
        %3266 = vmatprep.subr.bf16.mxu0 0
        %3267 = vmatpush1.bf16.xpose.msra.mxu0 0
        %3268 = vmatprep.subr.bf16.mxu0 0
        %3269 = vmatpush1.bf16.xpose.msra.mxu0 0
        %3270 = vmatprep.subr.bf16.mxu0 0
        %3271 = vmatpush1.bf16.xpose.msra.mxu0 0
        %3272 = vmatprep.subr.bf16.mxu0 0
        %3273 = vmatpush1.bf16.xpose.msra.mxu0 0
        %3274 = vmatprep.subr.bf16.mxu0 0
        %3275 = vmatpush1.bf16.xpose.msra.mxu0 0
        %3276 = vmatprep.subr.bf16.mxu0 0
        %3277 = vmatpush1.bf16.xpose.msra.mxu0 0
        %3278 = vmatprep.subr.bf16.mxu0 0
        %3279 = vmatpush1.bf16.xpose.msra.mxu0 0
        %3280 = vmatprep.subr.bf16.mxu0 0
        %3281 = vmatpush1.bf16.xpose.msra.mxu0 0
        %3282 = vmatprep.mubr.bf16.mxu0 0
        %3283 = vmatmul.mubr.bf16.gmra.mrb[0].mxu0 %v3245
        %v3284 = vpop.f32.mrb[0].mxu0
        %v3285 = vadd.f32 0.0, %v3284
        %v3286 = vpop.f32.mrb[0].mxu0
        %v3287 = vpop.f32.mrb[0].mxu0
        %v3288 = vadd.f32 0.0, %v3287
        %v3289 = vpop.f32.mrb[0].mxu0
        %3290 = vdwg.mxu0
        %v3292 = vsel %vm3055, %v3024, 0
        %v3295 = vsel %vm3055, %v3036, 0
        %3297 = vmatprep.subr.bf16.mxu0 0
        %3298 = vmatpush1.bf16.xpose.msra.mxu0 %v3295
        %3299 = vmatprep.subr.bf16.mxu0 0
        %3300 = vmatpush1.bf16.xpose.msra.mxu0 0
        %3301 = vmatprep.subr.bf16.mxu0 0
        %3302 = vmatpush1.bf16.xpose.msra.mxu0 0
        %3303 = vmatprep.subr.bf16.mxu0 0
        %3304 = vmatpush1.bf16.xpose.msra.mxu0 0
        %3305 = vmatprep.subr.bf16.mxu0 0
        %3306 = vmatpush1.bf16.xpose.msra.mxu0 0
        %3307 = vmatprep.subr.bf16.mxu0 0
        %3308 = vmatpush1.bf16.xpose.msra.mxu0 0
        %3309 = vmatprep.subr.bf16.mxu0 0
        %3310 = vmatpush1.bf16.xpose.msra.mxu0 0
        %3311 = vmatprep.subr.bf16.mxu0 0
        %3312 = vmatpush1.bf16.xpose.msra.mxu0 0
        %3313 = vmatprep.subr.bf16.mxu0 0
        %3314 = vmatpush1.bf16.xpose.msra.mxu0 0
        %3315 = vmatprep.subr.bf16.mxu0 0
        %3316 = vmatpush1.bf16.xpose.msra.mxu0 0
        %3317 = vmatprep.subr.bf16.mxu0 0
        %3318 = vmatpush1.bf16.xpose.msra.mxu0 0
        %3319 = vmatprep.subr.bf16.mxu0 0
        %3320 = vmatpush1.bf16.xpose.msra.mxu0 0
        %3321 = vmatprep.subr.bf16.mxu0 0
        %3322 = vmatpush1.bf16.xpose.msra.mxu0 0
        %3323 = vmatprep.subr.bf16.mxu0 0
        %3324 = vmatpush1.bf16.xpose.msra.mxu0 0
        %3325 = vmatprep.subr.bf16.mxu0 0
        %3326 = vmatpush1.bf16.xpose.msra.mxu0 0
        %3327 = vmatprep.subr.bf16.mxu0 0
        %3328 = vmatpush1.bf16.xpose.msra.mxu0 0
        %3329 = vmatprep.mubr.bf16.mxu0 0
        %3330 = vmatmul.mubr.bf16.gmra.mrb[0].mxu0 %v3292
        %v3331 = vpop.f32.mrb[0].mxu0
        %v3332 = vadd.f32 0.0, %v3331
        %v3333 = vpop.f32.mrb[0].mxu0
        %v3334 = vpop.f32.mrb[0].mxu0
        %v3335 = vadd.f32 0.0, %v3334
        %v3336 = vpop.f32.mrb[0].mxu0
        %3337 = vdwg.mxu0
        %v3339 = vsel %vm3055, %v3025, 0
        %v3342 = vsel %vm3055, %v3037, 0
        %3344 = vmatprep.subr.bf16.mxu0 0
        %3345 = vmatpush1.bf16.xpose.msra.mxu0 %v3342
        %3346 = vmatprep.subr.bf16.mxu0 0
        %3347 = vmatpush1.bf16.xpose.msra.mxu0 0
        %3348 = vmatprep.subr.bf16.mxu0 0
        %3349 = vmatpush1.bf16.xpose.msra.mxu0 0
        %3350 = vmatprep.subr.bf16.mxu0 0
        %3351 = vmatpush1.bf16.xpose.msra.mxu0 0
        %3352 = vmatprep.subr.bf16.mxu0 0
        %3353 = vmatpush1.bf16.xpose.msra.mxu0 0
        %3354 = vmatprep.subr.bf16.mxu0 0
        %3355 = vmatpush1.bf16.xpose.msra.mxu0 0
        %3356 = vmatprep.subr.bf16.mxu0 0
        %3357 = vmatpush1.bf16.xpose.msra.mxu0 0
        %3358 = vmatprep.subr.bf16.mxu0 0
        %3359 = vmatpush1.bf16.xpose.msra.mxu0 0
        %3360 = vmatprep.subr.bf16.mxu0 0
        %3361 = vmatpush1.bf16.xpose.msra.mxu0 0
        %3362 = vmatprep.subr.bf16.mxu0 0
        %3363 = vmatpush1.bf16.xpose.msra.mxu0 0
        %3364 = vmatprep.subr.bf16.mxu0 0
        %3365 = vmatpush1.bf16.xpose.msra.mxu0 0
        %3366 = vmatprep.subr.bf16.mxu0 0
        %3367 = vmatpush1.bf16.xpose.msra.mxu0 0
        %3368 = vmatprep.subr.bf16.mxu0 0
        %3369 = vmatpush1.bf16.xpose.msra.mxu0 0
        %3370 = vmatprep.subr.bf16.mxu0 0
        %3371 = vmatpush1.bf16.xpose.msra.mxu0 0
        %3372 = vmatprep.subr.bf16.mxu0 0
        %3373 = vmatpush1.bf16.xpose.msra.mxu0 0
        %3374 = vmatprep.subr.bf16.mxu0 0
        %3375 = vmatpush1.bf16.xpose.msra.mxu0 0
        %3376 = vmatprep.mubr.bf16.mxu0 0
        %3377 = vmatmul.mubr.bf16.gmra.mrb[0].mxu0 %v3339
        %v3378 = vpop.f32.mrb[0].mxu0
        %v3379 = vadd.f32 0.0, %v3378
        %v3380 = vpop.f32.mrb[0].mxu0
        %v3381 = vpop.f32.mrb[0].mxu0
        %v3382 = vadd.f32 0.0, %v3381
        %v3383 = vpop.f32.mrb[0].mxu0
        %3384 = vdwg.mxu0
        %v3386 = vsel %vm3055, %v3026, 0
        %v3389 = vsel %vm3055, %v3038, 0
        %3391 = vmatprep.subr.bf16.mxu0 0
        %3392 = vmatpush1.bf16.xpose.msra.mxu0 %v3389
        %3393 = vmatprep.subr.bf16.mxu0 0
        %3394 = vmatpush1.bf16.xpose.msra.mxu0 0
        %3395 = vmatprep.subr.bf16.mxu0 0
        %3396 = vmatpush1.bf16.xpose.msra.mxu0 0
        %3397 = vmatprep.subr.bf16.mxu0 0
        %3398 = vmatpush1.bf16.xpose.msra.mxu0 0
        %3399 = vmatprep.subr.bf16.mxu0 0
        %3400 = vmatpush1.bf16.xpose.msra.mxu0 0
        %3401 = vmatprep.subr.bf16.mxu0 0
        %3402 = vmatpush1.bf16.xpose.msra.mxu0 0
        %3403 = vmatprep.subr.bf16.mxu0 0
        %3404 = vmatpush1.bf16.xpose.msra.mxu0 0
        %3405 = vmatprep.subr.bf16.mxu0 0
        %3406 = vmatpush1.bf16.xpose.msra.mxu0 0
        %3407 = vmatprep.subr.bf16.mxu0 0
        %3408 = vmatpush1.bf16.xpose.msra.mxu0 0
        %3409 = vmatprep.subr.bf16.mxu0 0
        %3410 = vmatpush1.bf16.xpose.msra.mxu0 0
        %3411 = vmatprep.subr.bf16.mxu0 0
        %3412 = vmatpush1.bf16.xpose.msra.mxu0 0
        %3413 = vmatprep.subr.bf16.mxu0 0
        %3414 = vmatpush1.bf16.xpose.msra.mxu0 0
        %3415 = vmatprep.subr.bf16.mxu0 0
        %3416 = vmatpush1.bf16.xpose.msra.mxu0 0
        %3417 = vmatprep.subr.bf16.mxu0 0
        %3418 = vmatpush1.bf16.xpose.msra.mxu0 0
        %3419 = vmatprep.subr.bf16.mxu0 0
        %3420 = vmatpush1.bf16.xpose.msra.mxu0 0
        %3421 = vmatprep.subr.bf16.mxu0 0
        %3422 = vmatpush1.bf16.xpose.msra.mxu0 0
        %3423 = vmatprep.mubr.bf16.mxu0 0
        %3424 = vmatmul.mubr.bf16.gmra.mrb[0].mxu0 %v3386
        %v3425 = vpop.f32.mrb[0].mxu0
        %v3426 = vadd.f32 0.0, %v3425
        %v3427 = vpop.f32.mrb[0].mxu0
        %v3428 = vpop.f32.mrb[0].mxu0
        %v3429 = vadd.f32 0.0, %v3428
        %v3430 = vpop.f32.mrb[0].mxu0
        %3431 = vdwg.mxu0
        %v3433 = vsel %vm3055, %v3027, 0
        %v3436 = vsel %vm3055, %v3039, 0
        %3438 = vmatprep.subr.bf16.mxu0 0
        %3439 = vmatpush1.bf16.xpose.msra.mxu0 %v3436
        %3440 = vmatprep.subr.bf16.mxu0 0
        %3441 = vmatpush1.bf16.xpose.msra.mxu0 0
        %3442 = vmatprep.subr.bf16.mxu0 0
        %3443 = vmatpush1.bf16.xpose.msra.mxu0 0
        %3444 = vmatprep.subr.bf16.mxu0 0
        %3445 = vmatpush1.bf16.xpose.msra.mxu0 0
        %3446 = vmatprep.subr.bf16.mxu0 0
        %3447 = vmatpush1.bf16.xpose.msra.mxu0 0
        %3448 = vmatprep.subr.bf16.mxu0 0
        %3449 = vmatpush1.bf16.xpose.msra.mxu0 0
        %3450 = vmatprep.subr.bf16.mxu0 0
        %3451 = vmatpush1.bf16.xpose.msra.mxu0 0
        %3452 = vmatprep.subr.bf16.mxu0 0
        %3453 = vmatpush1.bf16.xpose.msra.mxu0 0
        %3454 = vmatprep.subr.bf16.mxu0 0
        %3455 = vmatpush1.bf16.xpose.msra.mxu0 0
        %3456 = vmatprep.subr.bf16.mxu0 0
        %3457 = vmatpush1.bf16.xpose.msra.mxu0 0
        %3458 = vmatprep.subr.bf16.mxu0 0
        %3459 = vmatpush1.bf16.xpose.msra.mxu0 0
        %3460 = vmatprep.subr.bf16.mxu0 0
        %3461 = vmatpush1.bf16.xpose.msra.mxu0 0
        %3462 = vmatprep.subr.bf16.mxu0 0
        %3463 = vmatpush1.bf16.xpose.msra.mxu0 0
        %3464 = vmatprep.subr.bf16.mxu0 0
        %3465 = vmatpush1.bf16.xpose.msra.mxu0 0
        %3466 = vmatprep.subr.bf16.mxu0 0
        %3467 = vmatpush1.bf16.xpose.msra.mxu0 0
        %3468 = vmatprep.subr.bf16.mxu0 0
        %3469 = vmatpush1.bf16.xpose.msra.mxu0 0
        %3470 = vmatprep.mubr.bf16.mxu0 0
        %3471 = vmatmul.mubr.bf16.gmra.mrb[0].mxu0 %v3433
        %v3472 = vpop.f32.mrb[0].mxu0
        %v3473 = vadd.f32 0.0, %v3472
        %v3474 = vpop.f32.mrb[0].mxu0
        %v3475 = vpop.f32.mrb[0].mxu0
        %v3476 = vadd.f32 0.0, %v3475
        %v3477 = vpop.f32.mrb[0].mxu0
        %3478 = vdwg.mxu0
        %v3480 = vsel %vm3055, %v3028, 0
        %v3483 = vsel %vm3055, %v3040, 0
        %3485 = vmatprep.subr.bf16.mxu0 0
        %3486 = vmatpush1.bf16.xpose.msra.mxu0 %v3483
        %3487 = vmatprep.subr.bf16.mxu0 0
        %3488 = vmatpush1.bf16.xpose.msra.mxu0 0
        %3489 = vmatprep.subr.bf16.mxu0 0
        %3490 = vmatpush1.bf16.xpose.msra.mxu0 0
        %3491 = vmatprep.subr.bf16.mxu0 0
        %3492 = vmatpush1.bf16.xpose.msra.mxu0 0
        %3493 = vmatprep.subr.bf16.mxu0 0
        %3494 = vmatpush1.bf16.xpose.msra.mxu0 0
        %3495 = vmatprep.subr.bf16.mxu0 0
        %3496 = vmatpush1.bf16.xpose.msra.mxu0 0
        %3497 = vmatprep.subr.bf16.mxu0 0
        %3498 = vmatpush1.bf16.xpose.msra.mxu0 0
        %3499 = vmatprep.subr.bf16.mxu0 0
        %3500 = vmatpush1.bf16.xpose.msra.mxu0 0
        %3501 = vmatprep.subr.bf16.mxu0 0
        %3502 = vmatpush1.bf16.xpose.msra.mxu0 0
        %3503 = vmatprep.subr.bf16.mxu0 0
        %3504 = vmatpush1.bf16.xpose.msra.mxu0 0
        %3505 = vmatprep.subr.bf16.mxu0 0
        %3506 = vmatpush1.bf16.xpose.msra.mxu0 0
        %3507 = vmatprep.subr.bf16.mxu0 0
        %3508 = vmatpush1.bf16.xpose.msra.mxu0 0
        %3509 = vmatprep.subr.bf16.mxu0 0
        %3510 = vmatpush1.bf16.xpose.msra.mxu0 0
        %3511 = vmatprep.subr.bf16.mxu0 0
        %3512 = vmatpush1.bf16.xpose.msra.mxu0 0
        %3513 = vmatprep.subr.bf16.mxu0 0
        %3514 = vmatpush1.bf16.xpose.msra.mxu0 0
        %3515 = vmatprep.subr.bf16.mxu0 0
        %3516 = vmatpush1.bf16.xpose.msra.mxu0 0
        %3517 = vmatprep.mubr.bf16.mxu0 0
        %3518 = vmatmul.mubr.bf16.gmra.mrb[0].mxu0 %v3480
        %v3519 = vpop.f32.mrb[0].mxu0
        %v3520 = vadd.f32 0.0, %v3519
        %v3521 = vpop.f32.mrb[0].mxu0
        %v3522 = vpop.f32.mrb[0].mxu0
        %v3523 = vadd.f32 0.0, %v3522
        %v3524 = vpop.f32.mrb[0].mxu0
        %3525 = vdwg.mxu0
        %v3527 = vsel %vm3055, %v3029, 0
        %v3530 = vsel %vm3055, %v3041, 0
        %3532 = vmatprep.subr.bf16.mxu0 0
        %3533 = vmatpush1.bf16.xpose.msra.mxu0 %v3530
        %3534 = vmatprep.subr.bf16.mxu0 0
        %3535 = vmatpush1.bf16.xpose.msra.mxu0 0
        %3536 = vmatprep.subr.bf16.mxu0 0
        %3537 = vmatpush1.bf16.xpose.msra.mxu0 0
        %3538 = vmatprep.subr.bf16.mxu0 0
        %3539 = vmatpush1.bf16.xpose.msra.mxu0 0
        %3540 = vmatprep.subr.bf16.mxu0 0
        %3541 = vmatpush1.bf16.xpose.msra.mxu0 0
        %3542 = vmatprep.subr.bf16.mxu0 0
        %3543 = vmatpush1.bf16.xpose.msra.mxu0 0
        %3544 = vmatprep.subr.bf16.mxu0 0
        %3545 = vmatpush1.bf16.xpose.msra.mxu0 0
        %3546 = vmatprep.subr.bf16.mxu0 0
        %3547 = vmatpush1.bf16.xpose.msra.mxu0 0
        %3548 = vmatprep.subr.bf16.mxu0 0
        %3549 = vmatpush1.bf16.xpose.msra.mxu0 0
        %3550 = vmatprep.subr.bf16.mxu0 0
        %3551 = vmatpush1.bf16.xpose.msra.mxu0 0
        %3552 = vmatprep.subr.bf16.mxu0 0
        %3553 = vmatpush1.bf16.xpose.msra.mxu0 0
        %3554 = vmatprep.subr.bf16.mxu0 0
        %3555 = vmatpush1.bf16.xpose.msra.mxu0 0
        %3556 = vmatprep.subr.bf16.mxu0 0
        %3557 = vmatpush1.bf16.xpose.msra.mxu0 0
        %3558 = vmatprep.subr.bf16.mxu0 0
        %3559 = vmatpush1.bf16.xpose.msra.mxu0 0
        %3560 = vmatprep.subr.bf16.mxu0 0
        %3561 = vmatpush1.bf16.xpose.msra.mxu0 0
        %3562 = vmatprep.subr.bf16.mxu0 0
        %3563 = vmatpush1.bf16.xpose.msra.mxu0 0
        %3564 = vmatprep.mubr.bf16.mxu0 0
        %3565 = vmatmul.mubr.bf16.gmra.mrb[0].mxu0 %v3527
        %v3566 = vpop.f32.mrb[0].mxu0
        %v3567 = vadd.f32 0.0, %v3566
        %v3568 = vpop.f32.mrb[0].mxu0
        %v3569 = vpop.f32.mrb[0].mxu0
        %v3570 = vadd.f32 0.0, %v3569
        %v3571 = vpop.f32.mrb[0].mxu0
        %3572 = vdwg.mxu0
        %v3574 = vsel %vm3055, %v3030, 0
        %v3577 = vsel %vm3055, %v3042, 0
        %3579 = vmatprep.subr.bf16.mxu0 0
        %3580 = vmatpush1.bf16.xpose.msra.mxu0 %v3577
        %3581 = vmatprep.subr.bf16.mxu0 0
        %3582 = vmatpush1.bf16.xpose.msra.mxu0 0
        %3583 = vmatprep.subr.bf16.mxu0 0
        %3584 = vmatpush1.bf16.xpose.msra.mxu0 0
        %3585 = vmatprep.subr.bf16.mxu0 0
        %3586 = vmatpush1.bf16.xpose.msra.mxu0 0
        %3587 = vmatprep.subr.bf16.mxu0 0
        %3588 = vmatpush1.bf16.xpose.msra.mxu0 0
        %3589 = vmatprep.subr.bf16.mxu0 0
        %3590 = vmatpush1.bf16.xpose.msra.mxu0 0
        %3591 = vmatprep.subr.bf16.mxu0 0
        %3592 = vmatpush1.bf16.xpose.msra.mxu0 0
        %3593 = vmatprep.subr.bf16.mxu0 0
        %3594 = vmatpush1.bf16.xpose.msra.mxu0 0
        %3595 = vmatprep.subr.bf16.mxu0 0
        %3596 = vmatpush1.bf16.xpose.msra.mxu0 0
        %3597 = vmatprep.subr.bf16.mxu0 0
        %3598 = vmatpush1.bf16.xpose.msra.mxu0 0
        %3599 = vmatprep.subr.bf16.mxu0 0
        %3600 = vmatpush1.bf16.xpose.msra.mxu0 0
        %3601 = vmatprep.subr.bf16.mxu0 0
        %3602 = vmatpush1.bf16.xpose.msra.mxu0 0
        %3603 = vmatprep.subr.bf16.mxu0 0
        %3604 = vmatpush1.bf16.xpose.msra.mxu0 0
        %3605 = vmatprep.subr.bf16.mxu0 0
        %3606 = vmatpush1.bf16.xpose.msra.mxu0 0
        %3607 = vmatprep.subr.bf16.mxu0 0
        %3608 = vmatpush1.bf16.xpose.msra.mxu0 0
        %3609 = vmatprep.subr.bf16.mxu0 0
        %3610 = vmatpush1.bf16.xpose.msra.mxu0 0
        %3611 = vmatprep.mubr.bf16.mxu0 0
        %3612 = vmatmul.mubr.bf16.gmra.mrb[0].mxu0 %v3574
        %v3613 = vpop.f32.mrb[0].mxu0
        %v3614 = vadd.f32 0.0, %v3613
        %v3615 = vpop.f32.mrb[0].mxu0
        %v3616 = vpop.f32.mrb[0].mxu0
        %v3617 = vadd.f32 0.0, %v3616
        %v3618 = vpop.f32.mrb[0].mxu0
        %3619 = vdwg.mxu0
        %v3620 = vmul.f32 %v3097, 0.125
        %v3621 = vmul.f32 %v3100, 0.125
        %v3622 = vmul.f32 %v3144, 0.125
        %v3623 = vmul.f32 %v3147, 0.125
        %v3624 = vmul.f32 %v3191, 0.125
        %v3625 = vmul.f32 %v3194, 0.125
        %v3626 = vmul.f32 %v3238, 0.125
        %v3627 = vmul.f32 %v3241, 0.125
        %v3628 = vmul.f32 %v3285, 0.125
        %v3629 = vmul.f32 %v3288, 0.125
        %v3630 = vmul.f32 %v3332, 0.125
        %v3631 = vmul.f32 %v3335, 0.125
        %v3632 = vmul.f32 %v3379, 0.125
        %v3633 = vmul.f32 %v3382, 0.125
        %v3634 = vmul.f32 %v3426, 0.125
        %v3635 = vmul.f32 %v3429, 0.125
        %v3636 = vmul.f32 %v3473, 0.125
        %v3637 = vmul.f32 %v3476, 0.125
        %v3638 = vmul.f32 %v3520, 0.125
        %v3639 = vmul.f32 %v3523, 0.125
        %v3640 = vmul.f32 %v3567, 0.125
        %v3641 = vmul.f32 %v3570, 0.125
        %v3642 = vmul.f32 %v3614, 0.125
        %v3643 = vmul.f32 %v3617, 0.125
        %v3644 = vlaneseq
        %v3645 = vand.u32 %v3644, 127
        %vm3646 = vcmp.lt.s32.totalorder %v3645, 10
        %v3647 = vsel %vm3646, %v3620, -1e+30
        %v3648 = vsel %vm3646, %v3621, -1e+30
        %v3649 = vsel %vm3646, %v3622, -1e+30
        %v3650 = vsel %vm3646, %v3623, -1e+30
        %v3651 = vsel %vm3646, %v3624, -1e+30
        %v3652 = vsel %vm3646, %v3625, -1e+30
        %v3653 = vsel %vm3646, %v3626, -1e+30
        %v3654 = vsel %vm3646, %v3627, -1e+30
        %v3655 = vsel %vm3646, %v3628, -1e+30
        %v3656 = vsel %vm3646, %v3629, -1e+30
        %v3657 = vsel %vm3646, %v3630, -1e+30
        %v3658 = vsel %vm3646, %v3631, -1e+30
        %v3659 = vsel %vm3646, %v3632, -1e+30
        %v3660 = vsel %vm3646, %v3633, -1e+30
        %v3661 = vsel %vm3646, %v3634, -1e+30
        %v3662 = vsel %vm3646, %v3635, -1e+30
        %v3663 = vsel %vm3646, %v3636, -1e+30
        %v3664 = vsel %vm3646, %v3637, -1e+30
        %v3665 = vsel %vm3646, %v3638, -1e+30
        %v3666 = vsel %vm3646, %v3639, -1e+30
        %v3667 = vsel %vm3646, %v3640, -1e+30
        %v3668 = vsel %vm3646, %v3641, -1e+30
        %v3669 = vsel %vm3646, %v3642, -1e+30
        %v3670 = vsel %vm3646, %v3643, -1e+30
        %vm3671 = vcmask 130048
        %v3672 = vsel %vm3671, %v3647, -inf
        %3673 = vmax.xlane.f32.xlu0 %v3672
        %v3674 = vpop.xlane.xlu0 %3673
        %v3675 = vsel %vm3671, %v3648, -inf
        %3676 = vmax.xlane.f32.xlu0 %v3675
        %v3677 = vpop.xlane.xlu0 %3676
        %v3678 = vsel %vm3671, %v3649, -inf
        %3679 = vmax.xlane.f32.xlu0 %v3678
        %v3680 = vpop.xlane.xlu0 %3679
        %v3681 = vsel %vm3671, %v3650, -inf
        %3682 = vmax.xlane.f32.xlu0 %v3681
        %v3683 = vpop.xlane.xlu0 %3682
        %v3684 = vsel %vm3671, %v3651, -inf
        %3685 = vmax.xlane.f32.xlu0 %v3684
        %v3686 = vpop.xlane.xlu0 %3685
        %v3687 = vsel %vm3671, %v3652, -inf
        %3688 = vmax.xlane.f32.xlu0 %v3687
        %v3689 = vpop.xlane.xlu0 %3688
        %v3690 = vsel %vm3671, %v3653, -inf
        %3691 = vmax.xlane.f32.xlu0 %v3690
        %v3692 = vpop.xlane.xlu0 %3691
        %v3693 = vsel %vm3671, %v3654, -inf
        %3694 = vmax.xlane.f32.xlu0 %v3693
        %v3695 = vpop.xlane.xlu0 %3694
        %v3696 = vsel %vm3671, %v3655, -inf
        %3697 = vmax.xlane.f32.xlu0 %v3696
        %v3698 = vpop.xlane.xlu0 %3697
        %v3699 = vsel %vm3671, %v3656, -inf
        %3700 = vmax.xlane.f32.xlu0 %v3699
        %v3701 = vpop.xlane.xlu0 %3700
        %v3702 = vsel %vm3671, %v3657, -inf
        %3703 = vmax.xlane.f32.xlu0 %v3702
        %v3704 = vpop.xlane.xlu0 %3703
        %v3705 = vsel %vm3671, %v3658, -inf
        %3706 = vmax.xlane.f32.xlu0 %v3705
        %v3707 = vpop.xlane.xlu0 %3706
        %v3708 = vsel %vm3671, %v3659, -inf
        %3709 = vmax.xlane.f32.xlu0 %v3708
        %v3710 = vpop.xlane.xlu0 %3709
        %v3711 = vsel %vm3671, %v3660, -inf
        %3712 = vmax.xlane.f32.xlu0 %v3711
        %v3713 = vpop.xlane.xlu0 %3712
        %v3714 = vsel %vm3671, %v3661, -inf
        %3715 = vmax.xlane.f32.xlu0 %v3714
        %v3716 = vpop.xlane.xlu0 %3715
        %v3717 = vsel %vm3671, %v3662, -inf
        %3718 = vmax.xlane.f32.xlu0 %v3717
        %v3719 = vpop.xlane.xlu0 %3718
        %v3720 = vsel %vm3671, %v3663, -inf
        %3721 = vmax.xlane.f32.xlu0 %v3720
        %v3722 = vpop.xlane.xlu0 %3721
        %v3723 = vsel %vm3671, %v3664, -inf
        %3724 = vmax.xlane.f32.xlu0 %v3723
        %v3725 = vpop.xlane.xlu0 %3724
        %v3726 = vsel %vm3671, %v3665, -inf
        %3727 = vmax.xlane.f32.xlu0 %v3726
        %v3728 = vpop.xlane.xlu0 %3727
        %v3729 = vsel %vm3671, %v3666, -inf
        %3730 = vmax.xlane.f32.xlu0 %v3729
        %v3731 = vpop.xlane.xlu0 %3730
        %v3732 = vsel %vm3671, %v3667, -inf
        %3733 = vmax.xlane.f32.xlu0 %v3732
        %v3734 = vpop.xlane.xlu0 %3733
        %v3735 = vsel %vm3671, %v3668, -inf
        %3736 = vmax.xlane.f32.xlu0 %v3735
        %v3737 = vpop.xlane.xlu0 %3736
        %v3738 = vsel %vm3671, %v3669, -inf
        %3739 = vmax.xlane.f32.xlu0 %v3738
        %v3740 = vpop.xlane.xlu0 %3739
        %v3741 = vsel %vm3671, %v3670, -inf
        %3742 = vmax.xlane.f32.xlu0 %v3741
        %v3743 = vpop.xlane.xlu0 %3742
        %v3744 = vsub.f32 %v3647, %v3674
        %v3745 = vsub.f32 %v3648, %v3677
        %v3746 = vsub.f32 %v3649, %v3680
        %v3747 = vsub.f32 %v3650, %v3683
        %v3748 = vsub.f32 %v3651, %v3686
        %v3749 = vsub.f32 %v3652, %v3689
        %v3750 = vsub.f32 %v3653, %v3692
        %v3751 = vsub.f32 %v3654, %v3695
        %v3752 = vsub.f32 %v3655, %v3698
        %v3753 = vsub.f32 %v3656, %v3701
        %v3754 = vsub.f32 %v3657, %v3704
        %v3755 = vsub.f32 %v3658, %v3707
        %v3756 = vsub.f32 %v3659, %v3710
        %v3757 = vsub.f32 %v3660, %v3713
        %v3758 = vsub.f32 %v3661, %v3716
        %v3759 = vsub.f32 %v3662, %v3719
        %v3760 = vsub.f32 %v3663, %v3722
        %v3761 = vsub.f32 %v3664, %v3725
        %v3762 = vsub.f32 %v3665, %v3728
        %v3763 = vsub.f32 %v3666, %v3731
        %v3764 = vsub.f32 %v3667, %v3734
        %v3765 = vsub.f32 %v3668, %v3737
        %v3766 = vsub.f32 %v3669, %v3740
        %v3767 = vsub.f32 %v3670, %v3743
        %v3768 = vmul.f32 %v3744, 1.442695
        %v3769 = vpow.pop %v3768
        %v3770 = vmul.f32 %v3745, 1.442695
        %v3771 = vpow.pop %v3770
        %v3772 = vmul.f32 %v3746, 1.442695
        %v3773 = vpow.pop %v3772
        %v3774 = vmul.f32 %v3747, 1.442695
        %v3775 = vpow.pop %v3774
        %v3776 = vmul.f32 %v3748, 1.442695
        %v3777 = vpow.pop %v3776
        %v3778 = vmul.f32 %v3749, 1.442695
        %v3779 = vpow.pop %v3778
        %v3780 = vmul.f32 %v3750, 1.442695
        %v3781 = vpow.pop %v3780
        %v3782 = vmul.f32 %v3751, 1.442695
        %v3783 = vpow.pop %v3782
        %v3784 = vmul.f32 %v3752, 1.442695
        %v3785 = vpow.pop %v3784
        %v3786 = vmul.f32 %v3753, 1.442695
        %v3787 = vpow.pop %v3786
        %v3788 = vmul.f32 %v3754, 1.442695
        %v3789 = vpow.pop %v3788
        %v3790 = vmul.f32 %v3755, 1.442695
        %v3791 = vpow.pop %v3790
        %v3792 = vmul.f32 %v3756, 1.442695
        %v3793 = vpow.pop %v3792
        %v3794 = vmul.f32 %v3757, 1.442695
        %v3795 = vpow.pop %v3794
        %v3796 = vmul.f32 %v3758, 1.442695
        %v3797 = vpow.pop %v3796
        %v3798 = vmul.f32 %v3759, 1.442695
        %v3799 = vpow.pop %v3798
        %v3800 = vmul.f32 %v3760, 1.442695
        %v3801 = vpow.pop %v3800
        %v3802 = vmul.f32 %v3761, 1.442695
        %v3803 = vpow.pop %v3802
        %v3804 = vmul.f32 %v3762, 1.442695
        %v3805 = vpow.pop %v3804
        %v3806 = vmul.f32 %v3763, 1.442695
        %v3807 = vpow.pop %v3806
        %v3808 = vmul.f32 %v3764, 1.442695
        %v3809 = vpow.pop %v3808
        %v3810 = vmul.f32 %v3765, 1.442695
        %v3811 = vpow.pop %v3810
        %v3812 = vmul.f32 %v3766, 1.442695
        %v3813 = vpow.pop %v3812
        %v3814 = vmul.f32 %v3767, 1.442695
        %v3815 = vpow.pop %v3814
        %v3816 = vsel %vm3671, %v3769, 0.0
        %3817 = vadd.xlane.f32.xlu0 %v3816
        %v3818 = vpop.xlane.xlu0 %3817
        %v3819 = vsel %vm3671, %v3771, 0.0
        %3820 = vadd.xlane.f32.xlu0 %v3819
        %v3821 = vpop.xlane.xlu0 %3820
        %v3822 = vsel %vm3671, %v3773, 0.0
        %3823 = vadd.xlane.f32.xlu0 %v3822
        %v3824 = vpop.xlane.xlu0 %3823
        %v3825 = vsel %vm3671, %v3775, 0.0
        %3826 = vadd.xlane.f32.xlu0 %v3825
        %v3827 = vpop.xlane.xlu0 %3826
        %v3828 = vsel %vm3671, %v3777, 0.0
        %3829 = vadd.xlane.f32.xlu0 %v3828
        %v3830 = vpop.xlane.xlu0 %3829
        %v3831 = vsel %vm3671, %v3779, 0.0
        %3832 = vadd.xlane.f32.xlu0 %v3831
        %v3833 = vpop.xlane.xlu0 %3832
        %v3834 = vsel %vm3671, %v3781, 0.0
        %3835 = vadd.xlane.f32.xlu0 %v3834
        %v3836 = vpop.xlane.xlu0 %3835
        %v3837 = vsel %vm3671, %v3783, 0.0
        %3838 = vadd.xlane.f32.xlu0 %v3837
        %v3839 = vpop.xlane.xlu0 %3838
        %v3840 = vsel %vm3671, %v3785, 0.0
        %3841 = vadd.xlane.f32.xlu0 %v3840
        %v3842 = vpop.xlane.xlu0 %3841
        %v3843 = vsel %vm3671, %v3787, 0.0
        %3844 = vadd.xlane.f32.xlu0 %v3843
        %v3845 = vpop.xlane.xlu0 %3844
        %v3846 = vsel %vm3671, %v3789, 0.0
        %3847 = vadd.xlane.f32.xlu0 %v3846
        %v3848 = vpop.xlane.xlu0 %3847
        %v3849 = vsel %vm3671, %v3791, 0.0
        %3850 = vadd.xlane.f32.xlu0 %v3849
        %v3851 = vpop.xlane.xlu0 %3850
        %v3852 = vsel %vm3671, %v3793, 0.0
        %3853 = vadd.xlane.f32.xlu0 %v3852
        %v3854 = vpop.xlane.xlu0 %3853
        %v3855 = vsel %vm3671, %v3795, 0.0
        %3856 = vadd.xlane.f32.xlu0 %v3855
        %v3857 = vpop.xlane.xlu0 %3856
        %v3858 = vsel %vm3671, %v3797, 0.0
        %3859 = vadd.xlane.f32.xlu0 %v3858
        %v3860 = vpop.xlane.xlu0 %3859
        %v3861 = vsel %vm3671, %v3799, 0.0
        %3862 = vadd.xlane.f32.xlu0 %v3861
        %v3863 = vpop.xlane.xlu0 %3862
        %v3864 = vsel %vm3671, %v3801, 0.0
        %3865 = vadd.xlane.f32.xlu0 %v3864
        %v3866 = vpop.xlane.xlu0 %3865
        %v3867 = vsel %vm3671, %v3803, 0.0
        %3868 = vadd.xlane.f32.xlu0 %v3867
        %v3869 = vpop.xlane.xlu0 %3868
        %v3870 = vsel %vm3671, %v3805, 0.0
        %3871 = vadd.xlane.f32.xlu0 %v3870
        %v3872 = vpop.xlane.xlu0 %3871
        %v3873 = vsel %vm3671, %v3807, 0.0
        %3874 = vadd.xlane.f32.xlu0 %v3873
        %v3875 = vpop.xlane.xlu0 %3874
        %v3876 = vsel %vm3671, %v3809, 0.0
        %3877 = vadd.xlane.f32.xlu0 %v3876
        %v3878 = vpop.xlane.xlu0 %3877
        %v3879 = vsel %vm3671, %v3811, 0.0
        %3880 = vadd.xlane.f32.xlu0 %v3879
        %v3881 = vpop.xlane.xlu0 %3880
        %v3882 = vsel %vm3671, %v3813, 0.0
        %3883 = vadd.xlane.f32.xlu0 %v3882
        %v3884 = vpop.xlane.xlu0 %3883
        %v3885 = vsel %vm3671, %v3815, 0.0
        %3886 = vadd.xlane.f32.xlu0 %v3885
        %v3887 = vpop.xlane.xlu0 %3886
        %v3888 = vrcp.pop %v3818
        %v3889 = vrcp.pop %v3821
        %v3890 = vrcp.pop %v3824
        %v3891 = vrcp.pop %v3827
        %v3892 = vrcp.pop %v3830
        %v3893 = vrcp.pop %v3833
        %v3894 = vrcp.pop %v3836
        %v3895 = vrcp.pop %v3839
        %v3896 = vrcp.pop %v3842
        %v3897 = vrcp.pop %v3845
        %v3898 = vrcp.pop %v3848
        %v3899 = vrcp.pop %v3851
        %v3900 = vrcp.pop %v3854
        %v3901 = vrcp.pop %v3857
        %v3902 = vrcp.pop %v3860
        %v3903 = vrcp.pop %v3863
        %v3904 = vrcp.pop %v3866
        %v3905 = vrcp.pop %v3869
        %v3906 = vrcp.pop %v3872
        %v3907 = vrcp.pop %v3875
        %v3908 = vrcp.pop %v3878
        %v3909 = vrcp.pop %v3881
        %v3910 = vrcp.pop %v3884
        %v3911 = vrcp.pop %v3887
        %v3912 = vmul.f32 %v3769, %v3888
        %v3913 = vmul.f32 %v3771, %v3889
        %v3914 = vmul.f32 %v3773, %v3890
        %v3915 = vmul.f32 %v3775, %v3891
        %v3916 = vmul.f32 %v3777, %v3892
        %v3917 = vmul.f32 %v3779, %v3893
        %v3918 = vmul.f32 %v3781, %v3894
        %v3919 = vmul.f32 %v3783, %v3895
        %v3920 = vmul.f32 %v3785, %v3896
        %v3921 = vmul.f32 %v3787, %v3897
        %v3922 = vmul.f32 %v3789, %v3898
        %v3923 = vmul.f32 %v3791, %v3899
        %v3924 = vmul.f32 %v3793, %v3900
        %v3925 = vmul.f32 %v3795, %v3901
        %v3926 = vmul.f32 %v3797, %v3902
        %v3927 = vmul.f32 %v3799, %v3903
        %v3928 = vmul.f32 %v3801, %v3904
        %v3929 = vmul.f32 %v3803, %v3905
        %v3930 = vmul.f32 %v3805, %v3906
        %v3931 = vmul.f32 %v3807, %v3907
        %v3932 = vmul.f32 %v3809, %v3908
        %v3933 = vmul.f32 %v3811, %v3909
        %v3934 = vmul.f32 %v3813, %v3910
        %v3935 = vmul.f32 %v3815, %v3911
        %v3936 = vpack.c.bf16 %v3913, %v3912
        %v3937 = vpack.c.bf16 %v3915, %v3914
        %v3938 = vpack.c.bf16 %v3917, %v3916
        %v3939 = vpack.c.bf16 %v3919, %v3918
        %v3940 = vpack.c.bf16 %v3921, %v3920
        %v3941 = vpack.c.bf16 %v3923, %v3922
        %v3942 = vpack.c.bf16 %v3925, %v3924
        %v3943 = vpack.c.bf16 %v3927, %v3926
        %v3944 = vpack.c.bf16 %v3929, %v3928
        %v3945 = vpack.c.bf16 %v3931, %v3930
        %v3946 = vpack.c.bf16 %v3933, %v3932
        %v3947 = vpack.c.bf16 %v3935, %v3934
        %v3949 = vsel %vm3671, %v3936, 0
        %3951 = vmatprep.subr.bf16.mxu0 0
        %3952 = vmatpush1.bf16.msra.mxu0 %v3043
        %3953 = vmatprep.subr.bf16.mxu0 0
        %3954 = vmatpush1.bf16.msra.mxu0 0
        %3955 = vmatprep.subr.bf16.mxu0 0
        %3956 = vmatpush1.bf16.msra.mxu0 0
        %3957 = vmatprep.subr.bf16.mxu0 0
        %3958 = vmatpush1.bf16.msra.mxu0 0
        %3959 = vmatprep.subr.bf16.mxu0 0
        %3960 = vmatpush1.bf16.msra.mxu0 0
        %3961 = vmatprep.subr.bf16.mxu0 0
        %3962 = vmatpush1.bf16.msra.mxu0 0
        %3963 = vmatprep.subr.bf16.mxu0 0
        %3964 = vmatpush1.bf16.msra.mxu0 0
        %3965 = vmatprep.subr.bf16.mxu0 0
        %3966 = vmatpush1.bf16.msra.mxu0 0
        %3967 = vmatprep.subr.bf16.mxu0 0
        %3968 = vmatpush1.bf16.msra.mxu0 0
        %3969 = vmatprep.subr.bf16.mxu0 0
        %3970 = vmatpush1.bf16.msra.mxu0 0
        %3971 = vmatprep.subr.bf16.mxu0 0
        %3972 = vmatpush1.bf16.msra.mxu0 0
        %3973 = vmatprep.subr.bf16.mxu0 0
        %3974 = vmatpush1.bf16.msra.mxu0 0
        %3975 = vmatprep.subr.bf16.mxu0 0
        %3976 = vmatpush1.bf16.msra.mxu0 0
        %3977 = vmatprep.subr.bf16.mxu0 0
        %3978 = vmatpush1.bf16.msra.mxu0 0
        %3979 = vmatprep.subr.bf16.mxu0 0
        %3980 = vmatpush1.bf16.msra.mxu0 0
        %3981 = vmatprep.subr.bf16.mxu0 0
        %3982 = vmatpush1.bf16.msra.mxu0 0
        %3983 = vmatprep.mubr.bf16.mxu0 0
        %3984 = vmatmul.mubr.bf16.gmra.mrb[0].mxu0 %v3949
        %v3985 = vpop.f32.mrb[0].mxu0
        %v3986 = vadd.f32 0.0, %v3985
        %v3987 = vpop.f32.mrb[0].mxu0
        %v3988 = vpop.f32.mrb[0].mxu0
        %v3989 = vadd.f32 0.0, %v3988
        %v3990 = vpop.f32.mrb[0].mxu0
        %3991 = vdwg.mxu0
        %v3993 = vsel %vm3671, %v3937, 0
        %3995 = vmatprep.subr.bf16.mxu0 0
        %3996 = vmatpush1.bf16.msra.mxu0 %v3044
        %3997 = vmatprep.subr.bf16.mxu0 0
        %3998 = vmatpush1.bf16.msra.mxu0 0
        %3999 = vmatprep.subr.bf16.mxu0 0
        %4000 = vmatpush1.bf16.msra.mxu0 0
        %4001 = vmatprep.subr.bf16.mxu0 0
        %4002 = vmatpush1.bf16.msra.mxu0 0
        %4003 = vmatprep.subr.bf16.mxu0 0
        %4004 = vmatpush1.bf16.msra.mxu0 0
        %4005 = vmatprep.subr.bf16.mxu0 0
        %4006 = vmatpush1.bf16.msra.mxu0 0
        %4007 = vmatprep.subr.bf16.mxu0 0
        %4008 = vmatpush1.bf16.msra.mxu0 0
        %4009 = vmatprep.subr.bf16.mxu0 0
        %4010 = vmatpush1.bf16.msra.mxu0 0
        %4011 = vmatprep.subr.bf16.mxu0 0
        %4012 = vmatpush1.bf16.msra.mxu0 0
        %4013 = vmatprep.subr.bf16.mxu0 0
        %4014 = vmatpush1.bf16.msra.mxu0 0
        %4015 = vmatprep.subr.bf16.mxu0 0
        %4016 = vmatpush1.bf16.msra.mxu0 0
        %4017 = vmatprep.subr.bf16.mxu0 0
        %4018 = vmatpush1.bf16.msra.mxu0 0
        %4019 = vmatprep.subr.bf16.mxu0 0
        %4020 = vmatpush1.bf16.msra.mxu0 0
        %4021 = vmatprep.subr.bf16.mxu0 0
        %4022 = vmatpush1.bf16.msra.mxu0 0
        %4023 = vmatprep.subr.bf16.mxu0 0
        %4024 = vmatpush1.bf16.msra.mxu0 0
        %4025 = vmatprep.subr.bf16.mxu0 0
        %4026 = vmatpush1.bf16.msra.mxu0 0
        %4027 = vmatprep.mubr.bf16.mxu0 0
        %4028 = vmatmul.mubr.bf16.gmra.mrb[0].mxu0 %v3993
        %v4029 = vpop.f32.mrb[0].mxu0
        %v4030 = vadd.f32 0.0, %v4029
        %v4031 = vpop.f32.mrb[0].mxu0
        %v4032 = vpop.f32.mrb[0].mxu0
        %v4033 = vadd.f32 0.0, %v4032
        %v4034 = vpop.f32.mrb[0].mxu0
        %4035 = vdwg.mxu0
        %v4037 = vsel %vm3671, %v3938, 0
        %4039 = vmatprep.subr.bf16.mxu0 0
        %4040 = vmatpush1.bf16.msra.mxu0 %v3045
        %4041 = vmatprep.subr.bf16.mxu0 0
        %4042 = vmatpush1.bf16.msra.mxu0 0
        %4043 = vmatprep.subr.bf16.mxu0 0
        %4044 = vmatpush1.bf16.msra.mxu0 0
        %4045 = vmatprep.subr.bf16.mxu0 0
        %4046 = vmatpush1.bf16.msra.mxu0 0
        %4047 = vmatprep.subr.bf16.mxu0 0
        %4048 = vmatpush1.bf16.msra.mxu0 0
        %4049 = vmatprep.subr.bf16.mxu0 0
        %4050 = vmatpush1.bf16.msra.mxu0 0
        %4051 = vmatprep.subr.bf16.mxu0 0
        %4052 = vmatpush1.bf16.msra.mxu0 0
        %4053 = vmatprep.subr.bf16.mxu0 0
        %4054 = vmatpush1.bf16.msra.mxu0 0
        %4055 = vmatprep.subr.bf16.mxu0 0
        %4056 = vmatpush1.bf16.msra.mxu0 0
        %4057 = vmatprep.subr.bf16.mxu0 0
        %4058 = vmatpush1.bf16.msra.mxu0 0
        %4059 = vmatprep.subr.bf16.mxu0 0
        %4060 = vmatpush1.bf16.msra.mxu0 0
        %4061 = vmatprep.subr.bf16.mxu0 0
        %4062 = vmatpush1.bf16.msra.mxu0 0
        %4063 = vmatprep.subr.bf16.mxu0 0
        %4064 = vmatpush1.bf16.msra.mxu0 0
        %4065 = vmatprep.subr.bf16.mxu0 0
        %4066 = vmatpush1.bf16.msra.mxu0 0
        %4067 = vmatprep.subr.bf16.mxu0 0
        %4068 = vmatpush1.bf16.msra.mxu0 0
        %4069 = vmatprep.subr.bf16.mxu0 0
        %4070 = vmatpush1.bf16.msra.mxu0 0
        %4071 = vmatprep.mubr.bf16.mxu0 0
        %4072 = vmatmul.mubr.bf16.gmra.mrb[0].mxu0 %v4037
        %v4073 = vpop.f32.mrb[0].mxu0
        %v4074 = vadd.f32 0.0, %v4073
        %v4075 = vpop.f32.mrb[0].mxu0
        %v4076 = vpop.f32.mrb[0].mxu0
        %v4077 = vadd.f32 0.0, %v4076
        %v4078 = vpop.f32.mrb[0].mxu0
        %4079 = vdwg.mxu0
        %v4081 = vsel %vm3671, %v3939, 0
        %4083 = vmatprep.subr.bf16.mxu0 0
        %4084 = vmatpush1.bf16.msra.mxu0 %v3046
        %4085 = vmatprep.subr.bf16.mxu0 0
        %4086 = vmatpush1.bf16.msra.mxu0 0
        %4087 = vmatprep.subr.bf16.mxu0 0
        %4088 = vmatpush1.bf16.msra.mxu0 0
        %4089 = vmatprep.subr.bf16.mxu0 0
        %4090 = vmatpush1.bf16.msra.mxu0 0
        %4091 = vmatprep.subr.bf16.mxu0 0
        %4092 = vmatpush1.bf16.msra.mxu0 0
        %4093 = vmatprep.subr.bf16.mxu0 0
        %4094 = vmatpush1.bf16.msra.mxu0 0
        %4095 = vmatprep.subr.bf16.mxu0 0
        %4096 = vmatpush1.bf16.msra.mxu0 0
        %4097 = vmatprep.subr.bf16.mxu0 0
        %4098 = vmatpush1.bf16.msra.mxu0 0
        %4099 = vmatprep.subr.bf16.mxu0 0
        %4100 = vmatpush1.bf16.msra.mxu0 0
        %4101 = vmatprep.subr.bf16.mxu0 0
        %4102 = vmatpush1.bf16.msra.mxu0 0
        %4103 = vmatprep.subr.bf16.mxu0 0
        %4104 = vmatpush1.bf16.msra.mxu0 0
        %4105 = vmatprep.subr.bf16.mxu0 0
        %4106 = vmatpush1.bf16.msra.mxu0 0
        %4107 = vmatprep.subr.bf16.mxu0 0
        %4108 = vmatpush1.bf16.msra.mxu0 0
        %4109 = vmatprep.subr.bf16.mxu0 0
        %4110 = vmatpush1.bf16.msra.mxu0 0
        %4111 = vmatprep.subr.bf16.mxu0 0
        %4112 = vmatpush1.bf16.msra.mxu0 0
        %4113 = vmatprep.subr.bf16.mxu0 0
        %4114 = vmatpush1.bf16.msra.mxu0 0
        %4115 = vmatprep.mubr.bf16.mxu0 0
        %4116 = vmatmul.mubr.bf16.gmra.mrb[0].mxu0 %v4081
        %v4117 = vpop.f32.mrb[0].mxu0
        %v4118 = vadd.f32 0.0, %v4117
        %v4119 = vpop.f32.mrb[0].mxu0
        %v4120 = vpop.f32.mrb[0].mxu0
        %v4121 = vadd.f32 0.0, %v4120
        %v4122 = vpop.f32.mrb[0].mxu0
        %4123 = vdwg.mxu0
        %v4125 = vsel %vm3671, %v3940, 0
        %4127 = vmatprep.subr.bf16.mxu0 0
        %4128 = vmatpush1.bf16.msra.mxu0 %v3047
        %4129 = vmatprep.subr.bf16.mxu0 0
        %4130 = vmatpush1.bf16.msra.mxu0 0
        %4131 = vmatprep.subr.bf16.mxu0 0
        %4132 = vmatpush1.bf16.msra.mxu0 0
        %4133 = vmatprep.subr.bf16.mxu0 0
        %4134 = vmatpush1.bf16.msra.mxu0 0
        %4135 = vmatprep.subr.bf16.mxu0 0
        %4136 = vmatpush1.bf16.msra.mxu0 0
        %4137 = vmatprep.subr.bf16.mxu0 0
        %4138 = vmatpush1.bf16.msra.mxu0 0
        %4139 = vmatprep.subr.bf16.mxu0 0
        %4140 = vmatpush1.bf16.msra.mxu0 0
        %4141 = vmatprep.subr.bf16.mxu0 0
        %4142 = vmatpush1.bf16.msra.mxu0 0
        %4143 = vmatprep.subr.bf16.mxu0 0
        %4144 = vmatpush1.bf16.msra.mxu0 0
        %4145 = vmatprep.subr.bf16.mxu0 0
        %4146 = vmatpush1.bf16.msra.mxu0 0
        %4147 = vmatprep.subr.bf16.mxu0 0
        %4148 = vmatpush1.bf16.msra.mxu0 0
        %4149 = vmatprep.subr.bf16.mxu0 0
        %4150 = vmatpush1.bf16.msra.mxu0 0
        %4151 = vmatprep.subr.bf16.mxu0 0
        %4152 = vmatpush1.bf16.msra.mxu0 0
        %4153 = vmatprep.subr.bf16.mxu0 0
        %4154 = vmatpush1.bf16.msra.mxu0 0
        %4155 = vmatprep.subr.bf16.mxu0 0
        %4156 = vmatpush1.bf16.msra.mxu0 0
        %4157 = vmatprep.subr.bf16.mxu0 0
        %4158 = vmatpush1.bf16.msra.mxu0 0
        %4159 = vmatprep.mubr.bf16.mxu0 0
        %4160 = vmatmul.mubr.bf16.gmra.mrb[0].mxu0 %v4125
        %v4161 = vpop.f32.mrb[0].mxu0
        %v4162 = vadd.f32 0.0, %v4161
        %v4163 = vpop.f32.mrb[0].mxu0
        %v4164 = vpop.f32.mrb[0].mxu0
        %v4165 = vadd.f32 0.0, %v4164
        %v4166 = vpop.f32.mrb[0].mxu0
        %4167 = vdwg.mxu0
        %v4169 = vsel %vm3671, %v3941, 0
        %4171 = vmatprep.subr.bf16.mxu0 0
        %4172 = vmatpush1.bf16.msra.mxu0 %v3048
        %4173 = vmatprep.subr.bf16.mxu0 0
        %4174 = vmatpush1.bf16.msra.mxu0 0
        %4175 = vmatprep.subr.bf16.mxu0 0
        %4176 = vmatpush1.bf16.msra.mxu0 0
        %4177 = vmatprep.subr.bf16.mxu0 0
        %4178 = vmatpush1.bf16.msra.mxu0 0
        %4179 = vmatprep.subr.bf16.mxu0 0
        %4180 = vmatpush1.bf16.msra.mxu0 0
        %4181 = vmatprep.subr.bf16.mxu0 0
        %4182 = vmatpush1.bf16.msra.mxu0 0
        %4183 = vmatprep.subr.bf16.mxu0 0
        %4184 = vmatpush1.bf16.msra.mxu0 0
        %4185 = vmatprep.subr.bf16.mxu0 0
        %4186 = vmatpush1.bf16.msra.mxu0 0
        %4187 = vmatprep.subr.bf16.mxu0 0
        %4188 = vmatpush1.bf16.msra.mxu0 0
        %4189 = vmatprep.subr.bf16.mxu0 0
        %4190 = vmatpush1.bf16.msra.mxu0 0
        %4191 = vmatprep.subr.bf16.mxu0 0
        %4192 = vmatpush1.bf16.msra.mxu0 0
        %4193 = vmatprep.subr.bf16.mxu0 0
        %4194 = vmatpush1.bf16.msra.mxu0 0
        %4195 = vmatprep.subr.bf16.mxu0 0
        %4196 = vmatpush1.bf16.msra.mxu0 0
        %4197 = vmatprep.subr.bf16.mxu0 0
        %4198 = vmatpush1.bf16.msra.mxu0 0
        %4199 = vmatprep.subr.bf16.mxu0 0
        %4200 = vmatpush1.bf16.msra.mxu0 0
        %4201 = vmatprep.subr.bf16.mxu0 0
        %4202 = vmatpush1.bf16.msra.mxu0 0
        %4203 = vmatprep.mubr.bf16.mxu0 0
        %4204 = vmatmul.mubr.bf16.gmra.mrb[0].mxu0 %v4169
        %v4205 = vpop.f32.mrb[0].mxu0
        %v4206 = vadd.f32 0.0, %v4205
        %v4207 = vpop.f32.mrb[0].mxu0
        %v4208 = vpop.f32.mrb[0].mxu0
        %v4209 = vadd.f32 0.0, %v4208
        %v4210 = vpop.f32.mrb[0].mxu0
        %4211 = vdwg.mxu0
        %v4213 = vsel %vm3671, %v3942, 0
        %4215 = vmatprep.subr.bf16.mxu0 0
        %4216 = vmatpush1.bf16.msra.mxu0 %v3049
        %4217 = vmatprep.subr.bf16.mxu0 0
        %4218 = vmatpush1.bf16.msra.mxu0 0
        %4219 = vmatprep.subr.bf16.mxu0 0
        %4220 = vmatpush1.bf16.msra.mxu0 0
        %4221 = vmatprep.subr.bf16.mxu0 0
        %4222 = vmatpush1.bf16.msra.mxu0 0
        %4223 = vmatprep.subr.bf16.mxu0 0
        %4224 = vmatpush1.bf16.msra.mxu0 0
        %4225 = vmatprep.subr.bf16.mxu0 0
        %4226 = vmatpush1.bf16.msra.mxu0 0
        %4227 = vmatprep.subr.bf16.mxu0 0
        %4228 = vmatpush1.bf16.msra.mxu0 0
        %4229 = vmatprep.subr.bf16.mxu0 0
        %4230 = vmatpush1.bf16.msra.mxu0 0
        %4231 = vmatprep.subr.bf16.mxu0 0
        %4232 = vmatpush1.bf16.msra.mxu0 0
        %4233 = vmatprep.subr.bf16.mxu0 0
        %4234 = vmatpush1.bf16.msra.mxu0 0
        %4235 = vmatprep.subr.bf16.mxu0 0
        %4236 = vmatpush1.bf16.msra.mxu0 0
        %4237 = vmatprep.subr.bf16.mxu0 0
        %4238 = vmatpush1.bf16.msra.mxu0 0
        %4239 = vmatprep.subr.bf16.mxu0 0
        %4240 = vmatpush1.bf16.msra.mxu0 0
        %4241 = vmatprep.subr.bf16.mxu0 0
        %4242 = vmatpush1.bf16.msra.mxu0 0
        %4243 = vmatprep.subr.bf16.mxu0 0
        %4244 = vmatpush1.bf16.msra.mxu0 0
        %4245 = vmatprep.subr.bf16.mxu0 0
        %4246 = vmatpush1.bf16.msra.mxu0 0
        %4247 = vmatprep.mubr.bf16.mxu0 0
        %4248 = vmatmul.mubr.bf16.gmra.mrb[0].mxu0 %v4213
        %v4249 = vpop.f32.mrb[0].mxu0
        %v4250 = vadd.f32 0.0, %v4249
        %v4251 = vpop.f32.mrb[0].mxu0
        %v4252 = vpop.f32.mrb[0].mxu0
        %v4253 = vadd.f32 0.0, %v4252
        %v4254 = vpop.f32.mrb[0].mxu0
        %4255 = vdwg.mxu0
        %v4257 = vsel %vm3671, %v3943, 0
        %4259 = vmatprep.subr.bf16.mxu0 0
        %4260 = vmatpush1.bf16.msra.mxu0 %v3050
        %4261 = vmatprep.subr.bf16.mxu0 0
        %4262 = vmatpush1.bf16.msra.mxu0 0
        %4263 = vmatprep.subr.bf16.mxu0 0
        %4264 = vmatpush1.bf16.msra.mxu0 0
        %4265 = vmatprep.subr.bf16.mxu0 0
        %4266 = vmatpush1.bf16.msra.mxu0 0
        %4267 = vmatprep.subr.bf16.mxu0 0
        %4268 = vmatpush1.bf16.msra.mxu0 0
        %4269 = vmatprep.subr.bf16.mxu0 0
        %4270 = vmatpush1.bf16.msra.mxu0 0
        %4271 = vmatprep.subr.bf16.mxu0 0
        %4272 = vmatpush1.bf16.msra.mxu0 0
        %4273 = vmatprep.subr.bf16.mxu0 0
        %4274 = vmatpush1.bf16.msra.mxu0 0
        %4275 = vmatprep.subr.bf16.mxu0 0
        %4276 = vmatpush1.bf16.msra.mxu0 0
        %4277 = vmatprep.subr.bf16.mxu0 0
        %4278 = vmatpush1.bf16.msra.mxu0 0
        %4279 = vmatprep.subr.bf16.mxu0 0
        %4280 = vmatpush1.bf16.msra.mxu0 0
        %4281 = vmatprep.subr.bf16.mxu0 0
        %4282 = vmatpush1.bf16.msra.mxu0 0
        %4283 = vmatprep.subr.bf16.mxu0 0
        %4284 = vmatpush1.bf16.msra.mxu0 0
        %4285 = vmatprep.subr.bf16.mxu0 0
        %4286 = vmatpush1.bf16.msra.mxu0 0
        %4287 = vmatprep.subr.bf16.mxu0 0
        %4288 = vmatpush1.bf16.msra.mxu0 0
        %4289 = vmatprep.subr.bf16.mxu0 0
        %4290 = vmatpush1.bf16.msra.mxu0 0
        %4291 = vmatprep.mubr.bf16.mxu0 0
        %4292 = vmatmul.mubr.bf16.gmra.mrb[0].mxu0 %v4257
        %v4293 = vpop.f32.mrb[0].mxu0
        %v4294 = vadd.f32 0.0, %v4293
        %v4295 = vpop.f32.mrb[0].mxu0
        %v4296 = vpop.f32.mrb[0].mxu0
        %v4297 = vadd.f32 0.0, %v4296
        %v4298 = vpop.f32.mrb[0].mxu0
        %4299 = vdwg.mxu0
        %v4301 = vsel %vm3671, %v3944, 0
        %4303 = vmatprep.subr.bf16.mxu0 0
        %4304 = vmatpush1.bf16.msra.mxu0 %v3051
        %4305 = vmatprep.subr.bf16.mxu0 0
        %4306 = vmatpush1.bf16.msra.mxu0 0
        %4307 = vmatprep.subr.bf16.mxu0 0
        %4308 = vmatpush1.bf16.msra.mxu0 0
        %4309 = vmatprep.subr.bf16.mxu0 0
        %4310 = vmatpush1.bf16.msra.mxu0 0
        %4311 = vmatprep.subr.bf16.mxu0 0
        %4312 = vmatpush1.bf16.msra.mxu0 0
        %4313 = vmatprep.subr.bf16.mxu0 0
        %4314 = vmatpush1.bf16.msra.mxu0 0
        %4315 = vmatprep.subr.bf16.mxu0 0
        %4316 = vmatpush1.bf16.msra.mxu0 0
        %4317 = vmatprep.subr.bf16.mxu0 0
        %4318 = vmatpush1.bf16.msra.mxu0 0
        %4319 = vmatprep.subr.bf16.mxu0 0
        %4320 = vmatpush1.bf16.msra.mxu0 0
        %4321 = vmatprep.subr.bf16.mxu0 0
        %4322 = vmatpush1.bf16.msra.mxu0 0
        %4323 = vmatprep.subr.bf16.mxu0 0
        %4324 = vmatpush1.bf16.msra.mxu0 0
        %4325 = vmatprep.subr.bf16.mxu0 0
        %4326 = vmatpush1.bf16.msra.mxu0 0
        %4327 = vmatprep.subr.bf16.mxu0 0
        %4328 = vmatpush1.bf16.msra.mxu0 0
        %4329 = vmatprep.subr.bf16.mxu0 0
        %4330 = vmatpush1.bf16.msra.mxu0 0
        %4331 = vmatprep.subr.bf16.mxu0 0
        %4332 = vmatpush1.bf16.msra.mxu0 0
        %4333 = vmatprep.subr.bf16.mxu0 0
        %4334 = vmatpush1.bf16.msra.mxu0 0
        %4335 = vmatprep.mubr.bf16.mxu0 0
        %4336 = vmatmul.mubr.bf16.gmra.mrb[0].mxu0 %v4301
        %v4337 = vpop.f32.mrb[0].mxu0
        %v4338 = vadd.f32 0.0, %v4337
        %v4339 = vpop.f32.mrb[0].mxu0
        %v4340 = vpop.f32.mrb[0].mxu0
        %v4341 = vadd.f32 0.0, %v4340
        %v4342 = vpop.f32.mrb[0].mxu0
        %4343 = vdwg.mxu0
        %v4345 = vsel %vm3671, %v3945, 0
        %4347 = vmatprep.subr.bf16.mxu0 0
        %4348 = vmatpush1.bf16.msra.mxu0 %v3052
        %4349 = vmatprep.subr.bf16.mxu0 0
        %4350 = vmatpush1.bf16.msra.mxu0 0
        %4351 = vmatprep.subr.bf16.mxu0 0
        %4352 = vmatpush1.bf16.msra.mxu0 0
        %4353 = vmatprep.subr.bf16.mxu0 0
        %4354 = vmatpush1.bf16.msra.mxu0 0
        %4355 = vmatprep.subr.bf16.mxu0 0
        %4356 = vmatpush1.bf16.msra.mxu0 0
        %4357 = vmatprep.subr.bf16.mxu0 0
        %4358 = vmatpush1.bf16.msra.mxu0 0
        %4359 = vmatprep.subr.bf16.mxu0 0
        %4360 = vmatpush1.bf16.msra.mxu0 0
        %4361 = vmatprep.subr.bf16.mxu0 0
        %4362 = vmatpush1.bf16.msra.mxu0 0
        %4363 = vmatprep.subr.bf16.mxu0 0
        %4364 = vmatpush1.bf16.msra.mxu0 0
        %4365 = vmatprep.subr.bf16.mxu0 0
        %4366 = vmatpush1.bf16.msra.mxu0 0
        %4367 = vmatprep.subr.bf16.mxu0 0
        %4368 = vmatpush1.bf16.msra.mxu0 0
        %4369 = vmatprep.subr.bf16.mxu0 0
        %4370 = vmatpush1.bf16.msra.mxu0 0
        %4371 = vmatprep.subr.bf16.mxu0 0
        %4372 = vmatpush1.bf16.msra.mxu0 0
        %4373 = vmatprep.subr.bf16.mxu0 0
        %4374 = vmatpush1.bf16.msra.mxu0 0
        %4375 = vmatprep.subr.bf16.mxu0 0
        %4376 = vmatpush1.bf16.msra.mxu0 0
        %4377 = vmatprep.subr.bf16.mxu0 0
        %4378 = vmatpush1.bf16.msra.mxu0 0
        %4379 = vmatprep.mubr.bf16.mxu0 0
        %4380 = vmatmul.mubr.bf16.gmra.mrb[0].mxu0 %v4345
        %v4381 = vpop.f32.mrb[0].mxu0
        %v4382 = vadd.f32 0.0, %v4381
        %v4383 = vpop.f32.mrb[0].mxu0
        %v4384 = vpop.f32.mrb[0].mxu0
        %v4385 = vadd.f32 0.0, %v4384
        %v4386 = vpop.f32.mrb[0].mxu0
        %4387 = vdwg.mxu0
        %v4389 = vsel %vm3671, %v3946, 0
        %4391 = vmatprep.subr.bf16.mxu0 0
        %4392 = vmatpush1.bf16.msra.mxu0 %v3053
        %4393 = vmatprep.subr.bf16.mxu0 0
        %4394 = vmatpush1.bf16.msra.mxu0 0
        %4395 = vmatprep.subr.bf16.mxu0 0
        %4396 = vmatpush1.bf16.msra.mxu0 0
        %4397 = vmatprep.subr.bf16.mxu0 0
        %4398 = vmatpush1.bf16.msra.mxu0 0
        %4399 = vmatprep.subr.bf16.mxu0 0
        %4400 = vmatpush1.bf16.msra.mxu0 0
        %4401 = vmatprep.subr.bf16.mxu0 0
        %4402 = vmatpush1.bf16.msra.mxu0 0
        %4403 = vmatprep.subr.bf16.mxu0 0
        %4404 = vmatpush1.bf16.msra.mxu0 0
        %4405 = vmatprep.subr.bf16.mxu0 0
        %4406 = vmatpush1.bf16.msra.mxu0 0
        %4407 = vmatprep.subr.bf16.mxu0 0
        %4408 = vmatpush1.bf16.msra.mxu0 0
        %4409 = vmatprep.subr.bf16.mxu0 0
        %4410 = vmatpush1.bf16.msra.mxu0 0
        %4411 = vmatprep.subr.bf16.mxu0 0
        %4412 = vmatpush1.bf16.msra.mxu0 0
        %4413 = vmatprep.subr.bf16.mxu0 0
        %4414 = vmatpush1.bf16.msra.mxu0 0
        %4415 = vmatprep.subr.bf16.mxu0 0
        %4416 = vmatpush1.bf16.msra.mxu0 0
        %4417 = vmatprep.subr.bf16.mxu0 0
        %4418 = vmatpush1.bf16.msra.mxu0 0
        %4419 = vmatprep.subr.bf16.mxu0 0
        %4420 = vmatpush1.bf16.msra.mxu0 0
        %4421 = vmatprep.subr.bf16.mxu0 0
        %4422 = vmatpush1.bf16.msra.mxu0 0
        %4423 = vmatprep.mubr.bf16.mxu0 0
        %4424 = vmatmul.mubr.bf16.gmra.mrb[0].mxu0 %v4389
        %v4425 = vpop.f32.mrb[0].mxu0
        %v4426 = vadd.f32 0.0, %v4425
        %v4427 = vpop.f32.mrb[0].mxu0
        %v4428 = vpop.f32.mrb[0].mxu0
        %v4429 = vadd.f32 0.0, %v4428
        %v4430 = vpop.f32.mrb[0].mxu0
        %4431 = vdwg.mxu0
        %v4433 = vsel %vm3671, %v3947, 0
        %4435 = vmatprep.subr.bf16.mxu0 0
        %4436 = vmatpush1.bf16.msra.mxu0 %v3054
        %4437 = vmatprep.subr.bf16.mxu0 0
        %4438 = vmatpush1.bf16.msra.mxu0 0
        %4439 = vmatprep.subr.bf16.mxu0 0
        %4440 = vmatpush1.bf16.msra.mxu0 0
        %4441 = vmatprep.subr.bf16.mxu0 0
        %4442 = vmatpush1.bf16.msra.mxu0 0
        %4443 = vmatprep.subr.bf16.mxu0 0
        %4444 = vmatpush1.bf16.msra.mxu0 0
        %4445 = vmatprep.subr.bf16.mxu0 0
        %4446 = vmatpush1.bf16.msra.mxu0 0
        %4447 = vmatprep.subr.bf16.mxu0 0
        %4448 = vmatpush1.bf16.msra.mxu0 0
        %4449 = vmatprep.subr.bf16.mxu0 0
        %4450 = vmatpush1.bf16.msra.mxu0 0
        %4451 = vmatprep.subr.bf16.mxu0 0
        %4452 = vmatpush1.bf16.msra.mxu0 0
        %4453 = vmatprep.subr.bf16.mxu0 0
        %4454 = vmatpush1.bf16.msra.mxu0 0
        %4455 = vmatprep.subr.bf16.mxu0 0
        %4456 = vmatpush1.bf16.msra.mxu0 0
        %4457 = vmatprep.subr.bf16.mxu0 0
        %4458 = vmatpush1.bf16.msra.mxu0 0
        %4459 = vmatprep.subr.bf16.mxu0 0
        %4460 = vmatpush1.bf16.msra.mxu0 0
        %4461 = vmatprep.subr.bf16.mxu0 0
        %4462 = vmatpush1.bf16.msra.mxu0 0
        %4463 = vmatprep.subr.bf16.mxu0 0
        %4464 = vmatpush1.bf16.msra.mxu0 0
        %4465 = vmatprep.subr.bf16.mxu0 0
        %4466 = vmatpush1.bf16.msra.mxu0 0
        %4467 = vmatprep.mubr.bf16.mxu0 0
        %4468 = vmatmul.mubr.bf16.gmra.mrb[0].mxu0 %v4433
        %v4469 = vpop.f32.mrb[0].mxu0
        %v4470 = vadd.f32 0.0, %v4469
        %v4471 = vpop.f32.mrb[0].mxu0
        %v4472 = vpop.f32.mrb[0].mxu0
        %v4473 = vadd.f32 0.0, %v4472
        %v4474 = vpop.f32.mrb[0].mxu0
        %4475 = vdwg.mxu0
        %v4476 = vld [vmem:[#allocation2] sm:$0xff]
        %v4477 = vld [vmem:[#allocation2 + $0x8] sm:$0xff]
        %v4478 = vld [vmem:[#allocation2 + $0x10] sm:$0xff]
        %v4479 = vld [vmem:[#allocation2 + $0x18] sm:$0xff]
        %v4480 = vld [vmem:[#allocation2 + $0x20] sm:$0xff]
        %v4481 = vld [vmem:[#allocation2 + $0x28] sm:$0xff]
        %v4482 = vld [vmem:[#allocation2 + $0x30] sm:$0xff]
        %v4483 = vld [vmem:[#allocation2 + $0x38] sm:$0xff]
        %v4484 = vld [vmem:[#allocation2 + $0x40] sm:$0xff]
        %v4485 = vld [vmem:[#allocation2 + $0x48] sm:$0xff]
        %v4486 = vld [vmem:[#allocation2 + $0x50] sm:$0xff]
        %v4487 = vld [vmem:[#allocation2 + $0x58] sm:$0xff]
        %v4488 = vld [vmem:[#allocation2 + $0x60] sm:$0xff]
        %v4489 = vld [vmem:[#allocation2 + $0x68] sm:$0xff]
        %v4490 = vld [vmem:[#allocation2 + $0x70] sm:$0xff]
        %v4491 = vld [vmem:[#allocation2 + $0x78] sm:$0xff]
        %v4492 = vld [vmem:[#allocation2 + $0x80] sm:$0xff]
        %v4493 = vld [vmem:[#allocation2 + $0x88] sm:$0xff]
        %v4494 = vld [vmem:[#allocation2 + $0x90] sm:$0xff]
        %v4495 = vld [vmem:[#allocation2 + $0x98] sm:$0xff]
        %v4496 = vld [vmem:[#allocation2 + $0xa0] sm:$0xff]
        %v4497 = vld [vmem:[#allocation2 + $0xa8] sm:$0xff]
        %v4498 = vld [vmem:[#allocation2 + $0xb0] sm:$0xff]
        %v4499 = vld [vmem:[#allocation2 + $0xb8] sm:$0xff]
        %v4500 = vld [vmem:[#allocation2 + $0xc0] sm:$0xff]
        %v4501 = vld [vmem:[#allocation2 + $0xc8] sm:$0xff]
        %v4502 = vld [vmem:[#allocation2 + $0xd0] sm:$0xff]
        %v4503 = vld [vmem:[#allocation2 + $0xd8] sm:$0xff]
        %v4504 = vld [vmem:[#allocation2 + $0xe0] sm:$0xff]
        %v4505 = vld [vmem:[#allocation2 + $0xe8] sm:$0xff]
        %v4506 = vld [vmem:[#allocation2 + $0xf0] sm:$0xff]
        %v4507 = vld [vmem:[#allocation2 + $0xf8] sm:$0xff]
        %v4508 = vld [vmem:[#allocation2 + $0x100] sm:$0xff]
        %v4509 = vld [vmem:[#allocation2 + $0x108] sm:$0xff]
        %v4510 = vld [vmem:[#allocation2 + $0x110] sm:$0xff]
        %v4511 = vld [vmem:[#allocation2 + $0x118] sm:$0xff]
        %v4512 = vld [vmem:[#allocation2 + $0x120] sm:$0xff]
        %v4513 = vld [vmem:[#allocation2 + $0x128] sm:$0xff]
        %v4514 = vld [vmem:[#allocation2 + $0x130] sm:$0xff]
        %v4515 = vld [vmem:[#allocation2 + $0x138] sm:$0xff]
        %v4516 = vld [vmem:[#allocation2 + $0x140] sm:$0xff]
        %v4517 = vld [vmem:[#allocation2 + $0x148] sm:$0xff]
        %v4518 = vld [vmem:[#allocation2 + $0x150] sm:$0xff]
        %v4519 = vld [vmem:[#allocation2 + $0x158] sm:$0xff]
        %v4520 = vld [vmem:[#allocation2 + $0x160] sm:$0xff]
        %v4521 = vld [vmem:[#allocation2 + $0x168] sm:$0xff]
        %v4522 = vld [vmem:[#allocation2 + $0x170] sm:$0xff]
        %v4523 = vld [vmem:[#allocation2 + $0x178] sm:$0xff]
        %v4524 = vld [vmem:[#allocation2 + $0x180] sm:$0xff]
        %v4525 = vld [vmem:[#allocation2 + $0x188] sm:$0xff]
        %v4526 = vld [vmem:[#allocation2 + $0x190] sm:$0xff]
        %v4527 = vld [vmem:[#allocation2 + $0x198] sm:$0xff]
        %v4528 = vld [vmem:[#allocation2 + $0x1a0] sm:$0xff]
        %v4529 = vld [vmem:[#allocation2 + $0x1a8] sm:$0xff]
        %v4530 = vld [vmem:[#allocation2 + $0x1b0] sm:$0xff]
        %v4531 = vld [vmem:[#allocation2 + $0x1b8] sm:$0xff]
        %v4532 = vld [vmem:[#allocation2 + $0x1c0] sm:$0xff]
        %v4533 = vld [vmem:[#allocation2 + $0x1c8] sm:$0xff]
        %v4534 = vld [vmem:[#allocation2 + $0x1d0] sm:$0xff]
        %v4535 = vld [vmem:[#allocation2 + $0x1d8] sm:$0xff]
        %v4536 = vld [vmem:[#allocation2 + $0x1e0] sm:$0xff]
        %v4537 = vld [vmem:[#allocation2 + $0x1e8] sm:$0xff]
        %v4538 = vld [vmem:[#allocation2 + $0x1f0] sm:$0xff]
        %v4539 = vld [vmem:[#allocation2 + $0x1f8] sm:$0xff]
        %v4540 = vld [vmem:[#allocation2 + $0x200] sm:$0xff]
        %v4541 = vld [vmem:[#allocation2 + $0x208] sm:$0xff]
        %v4542 = vld [vmem:[#allocation2 + $0x210] sm:$0xff]
        %v4543 = vld [vmem:[#allocation2 + $0x218] sm:$0xff]
        %v4544 = vld [vmem:[#allocation2 + $0x220] sm:$0xff]
        %v4545 = vld [vmem:[#allocation2 + $0x228] sm:$0xff]
        %v4546 = vld [vmem:[#allocation2 + $0x230] sm:$0xff]
        %v4547 = vld [vmem:[#allocation2 + $0x238] sm:$0xff]
        %v4548 = vld [vmem:[#allocation2 + $0x240] sm:$0xff]
        %v4549 = vld [vmem:[#allocation2 + $0x248] sm:$0xff]
        %v4550 = vld [vmem:[#allocation2 + $0x250] sm:$0xff]
        %v4551 = vld [vmem:[#allocation2 + $0x258] sm:$0xff]
        %v4552 = vld [vmem:[#allocation2 + $0x260] sm:$0xff]
        %v4553 = vld [vmem:[#allocation2 + $0x268] sm:$0xff]
        %v4554 = vld [vmem:[#allocation2 + $0x270] sm:$0xff]
        %v4555 = vld [vmem:[#allocation2 + $0x278] sm:$0xff]
        %v4556 = vld [vmem:[#allocation2 + $0x280] sm:$0xff]
        %v4557 = vld [vmem:[#allocation2 + $0x288] sm:$0xff]
        %v4558 = vld [vmem:[#allocation2 + $0x290] sm:$0xff]
        %v4559 = vld [vmem:[#allocation2 + $0x298] sm:$0xff]
        %v4560 = vld [vmem:[#allocation2 + $0x2a0] sm:$0xff]
        %v4561 = vld [vmem:[#allocation2 + $0x2a8] sm:$0xff]
        %v4562 = vld [vmem:[#allocation2 + $0x2b0] sm:$0xff]
        %v4563 = vld [vmem:[#allocation2 + $0x2b8] sm:$0xff]
        %v4564 = vld [vmem:[#allocation2 + $0x2c0] sm:$0xff]
        %v4565 = vld [vmem:[#allocation2 + $0x2c8] sm:$0xff]
        %v4566 = vld [vmem:[#allocation2 + $0x2d0] sm:$0xff]
        %v4567 = vld [vmem:[#allocation2 + $0x2d8] sm:$0xff]
        %v4568 = vld [vmem:[#allocation2 + $0x2e0] sm:$0xff]
        %v4569 = vld [vmem:[#allocation2 + $0x2e8] sm:$0xff]
        %v4570 = vld [vmem:[#allocation2 + $0x2f0] sm:$0xff]
        %v4571 = vld [vmem:[#allocation2 + $0x2f8] sm:$0xff]
        %v4572 = vpack.c.bf16 %v3989, %v3986
        %v4573 = vpack.c.bf16 %v4033, %v4030
        %v4574 = vpack.c.bf16 %v4077, %v4074
        %v4575 = vpack.c.bf16 %v4121, %v4118
        %v4576 = vpack.c.bf16 %v4165, %v4162
        %v4577 = vpack.c.bf16 %v4209, %v4206
        %v4578 = vpack.c.bf16 %v4253, %v4250
        %v4579 = vpack.c.bf16 %v4297, %v4294
        %v4580 = vpack.c.bf16 %v4341, %v4338
        %v4581 = vpack.c.bf16 %v4385, %v4382
        %v4582 = vpack.c.bf16 %v4429, %v4426
        %v4583 = vpack.c.bf16 %v4473, %v4470
        %v4600 = vunpack.c.l.b16 %v768
        %v4601 = vunpack.c.h.b16 %v768
        %v4602 = vunpack.c.l.b16 %v769
        %v4603 = vunpack.c.h.b16 %v769
        %v4604 = vunpack.c.l.b16 %v770
        %v4605 = vunpack.c.h.b16 %v770
        %v4606 = vunpack.c.l.b16 %v771
        %v4607 = vunpack.c.h.b16 %v771
        %v4608 = vunpack.c.l.b16 %v772
        %v4609 = vunpack.c.h.b16 %v772
        %v4610 = vunpack.c.l.b16 %v773
        %v4611 = vunpack.c.h.b16 %v773
        %v4612 = vunpack.c.l.b16 %v774
        %v4613 = vunpack.c.h.b16 %v774
        %v4614 = vunpack.c.l.b16 %v775
        %v4615 = vunpack.c.h.b16 %v775
        %v4616 = vunpack.c.l.b16 %v776
        %v4617 = vunpack.c.h.b16 %v776
        %v4618 = vunpack.c.l.b16 %v777
        %v4619 = vunpack.c.h.b16 %v777
        %v4620 = vunpack.c.l.b16 %v778
        %v4621 = vunpack.c.h.b16 %v778
        %v4622 = vunpack.c.l.b16 %v779
        %v4623 = vunpack.c.h.b16 %v779
        %v4624 = vunpack.c.l.b16 %v780
        %v4625 = vunpack.c.h.b16 %v780
        %v4626 = vunpack.c.l.b16 %v781
        %v4627 = vunpack.c.h.b16 %v781
        %v4628 = vunpack.c.l.b16 %v782
        %v4629 = vunpack.c.h.b16 %v782
        %v4630 = vunpack.c.l.b16 %v783
        %v4631 = vunpack.c.h.b16 %v783
        %v4632 = vpack.c.b16 %v4604, %v4600
        %v4633 = vpack.c.b16 %v4605, %v4601
        %v4634 = vpack.c.b16 %v4606, %v4602
        %v4635 = vpack.c.b16 %v4607, %v4603
        %v4636 = vpack.c.b16 %v4612, %v4608
        %v4637 = vpack.c.b16 %v4613, %v4609
        %v4638 = vpack.c.b16 %v4614, %v4610
        %v4639 = vpack.c.b16 %v4615, %v4611
        %v4640 = vpack.c.b16 %v4620, %v4616
        %v4641 = vpack.c.b16 %v4621, %v4617
        %v4642 = vpack.c.b16 %v4622, %v4618
        %v4643 = vpack.c.b16 %v4623, %v4619
        %v4644 = vpack.c.b16 %v4628, %v4624
        %v4645 = vpack.c.b16 %v4629, %v4625
        %v4646 = vpack.c.b16 %v4630, %v4626
        %v4647 = vpack.c.b16 %v4631, %v4627
        %v4665 = vsel %vm3055, %v4572, 0
        %v4668 = vsel %vm3055, %v4573, 0
        %v4671 = vsel %vm3055, %v4574, 0
        %v4674 = vsel %vm3055, %v4575, 0
        %v4677 = vsel %vm3055, %v4576, 0
        %v4680 = vsel %vm3055, %v4577, 0
        %v4683 = vsel %vm3055, %v4578, 0
        %v4686 = vsel %vm3055, %v4579, 0
        %v4689 = vsel %vm3055, %v4580, 0
        %v4692 = vsel %vm3055, %v4581, 0
        %v4695 = vsel %vm3055, %v4582, 0
        %v4698 = vsel %vm3055, %v4583, 0
        %4700 = vmatprep.subr.bf16.mxu0 %v4633
        %4701 = vmatpush1.bf16.msra.mxu0 %v4632
        %4702 = vmatprep.subr.bf16.mxu0 %v4637
        %4703 = vmatpush1.bf16.msra.mxu0 %v4636
        %4704 = vmatprep.subr.bf16.mxu0 %v4641
        %4705 = vmatpush1.bf16.msra.mxu0 %v4640
        %4706 = vmatprep.subr.bf16.mxu0 %v4645
        %4707 = vmatpush1.bf16.msra.mxu0 %v4644
        %4708 = vmatprep.subr.bf16.mxu0 0
        %4709 = vmatpush1.bf16.msra.mxu0 0
        %4710 = vmatprep.subr.bf16.mxu0 0
        %4711 = vmatpush1.bf16.msra.mxu0 0
        %4712 = vmatprep.subr.bf16.mxu0 0
        %4713 = vmatpush1.bf16.msra.mxu0 0
        %4714 = vmatprep.subr.bf16.mxu0 0
        %4715 = vmatpush1.bf16.msra.mxu0 0
        %4716 = vmatprep.subr.bf16.mxu0 0
        %4717 = vmatpush1.bf16.msra.mxu0 0
        %4718 = vmatprep.subr.bf16.mxu0 0
        %4719 = vmatpush1.bf16.msra.mxu0 0
        %4720 = vmatprep.subr.bf16.mxu0 0
        %4721 = vmatpush1.bf16.msra.mxu0 0
        %4722 = vmatprep.subr.bf16.mxu0 0
        %4723 = vmatpush1.bf16.msra.mxu0 0
        %4724 = vmatprep.subr.bf16.mxu0 0
        %4725 = vmatpush1.bf16.msra.mxu0 0
        %4726 = vmatprep.subr.bf16.mxu0 0
        %4727 = vmatpush1.bf16.msra.mxu0 0
        %4728 = vmatprep.subr.bf16.mxu0 0
        %4729 = vmatpush1.bf16.msra.mxu0 0
        %4730 = vmatprep.subr.bf16.mxu0 0
        %4731 = vmatpush1.bf16.msra.mxu0 0
        %4732 = vmatprep.mubr.bf16.mxu0 0
        %4733 = vmatmul.mubr.bf16.gmra.mrb[0].mxu0 %v4665
        %v4734 = vpop.f32.mrb[0].mxu0
        %v4735 = vadd.f32 0.0, %v4734
        %v4736 = vpop.f32.mrb[0].mxu0
        %v4737 = vadd.f32 0.0, %v4736
        %v4738 = vpop.f32.mrb[0].mxu0
        %v4739 = vadd.f32 0.0, %v4738
        %v4740 = vpop.f32.mrb[0].mxu0
        %v4741 = vadd.f32 0.0, %v4740
        %4742 = vmatprep.mubr.bf16.mxu0 0
        %4743 = vmatmul.mubr.bf16.gmra.mrb[0].mxu0 %v4668
        %v4744 = vpop.f32.mrb[0].mxu0
        %v4745 = vadd.f32 0.0, %v4744
        %v4746 = vpop.f32.mrb[0].mxu0
        %v4747 = vadd.f32 0.0, %v4746
        %v4748 = vpop.f32.mrb[0].mxu0
        %v4749 = vadd.f32 0.0, %v4748
        %v4750 = vpop.f32.mrb[0].mxu0
        %v4751 = vadd.f32 0.0, %v4750
        %4752 = vmatprep.mubr.bf16.mxu0 0
        %4753 = vmatmul.mubr.bf16.gmra.mrb[0].mxu0 %v4671
        %v4754 = vpop.f32.mrb[0].mxu0
        %v4755 = vadd.f32 0.0, %v4754
        %v4756 = vpop.f32.mrb[0].mxu0
        %v4757 = vadd.f32 0.0, %v4756
        %v4758 = vpop.f32.mrb[0].mxu0
        %v4759 = vadd.f32 0.0, %v4758
        %v4760 = vpop.f32.mrb[0].mxu0
        %v4761 = vadd.f32 0.0, %v4760
        %4762 = vmatprep.mubr.bf16.mxu0 0
        %4763 = vmatmul.mubr.bf16.gmra.mrb[0].mxu0 %v4674
        %v4764 = vpop.f32.mrb[0].mxu0
        %v4765 = vadd.f32 0.0, %v4764
        %v4766 = vpop.f32.mrb[0].mxu0
        %v4767 = vadd.f32 0.0, %v4766
        %v4768 = vpop.f32.mrb[0].mxu0
        %v4769 = vadd.f32 0.0, %v4768
        %v4770 = vpop.f32.mrb[0].mxu0
        %v4771 = vadd.f32 0.0, %v4770
        %4772 = vmatprep.mubr.bf16.mxu0 0
        %4773 = vmatmul.mubr.bf16.gmra.mrb[0].mxu0 %v4677
        %v4774 = vpop.f32.mrb[0].mxu0
        %v4775 = vadd.f32 0.0, %v4774
        %v4776 = vpop.f32.mrb[0].mxu0
        %v4777 = vadd.f32 0.0, %v4776
        %v4778 = vpop.f32.mrb[0].mxu0
        %v4779 = vadd.f32 0.0, %v4778
        %v4780 = vpop.f32.mrb[0].mxu0
        %v4781 = vadd.f32 0.0, %v4780
        %4782 = vmatprep.mubr.bf16.mxu0 0
        %4783 = vmatmul.mubr.bf16.gmra.mrb[0].mxu0 %v4680
        %v4784 = vpop.f32.mrb[0].mxu0
        %v4785 = vadd.f32 0.0, %v4784
        %v4786 = vpop.f32.mrb[0].mxu0
        %v4787 = vadd.f32 0.0, %v4786
        %v4788 = vpop.f32.mrb[0].mxu0
        %v4789 = vadd.f32 0.0, %v4788
        %v4790 = vpop.f32.mrb[0].mxu0
        %v4791 = vadd.f32 0.0, %v4790
        %4792 = vmatprep.mubr.bf16.mxu0 0
        %4793 = vmatmul.mubr.bf16.gmra.mrb[0].mxu0 %v4683
        %v4794 = vpop.f32.mrb[0].mxu0
        %v4795 = vadd.f32 0.0, %v4794
        %v4796 = vpop.f32.mrb[0].mxu0
        %v4797 = vadd.f32 0.0, %v4796
        %v4798 = vpop.f32.mrb[0].mxu0
        %v4799 = vadd.f32 0.0, %v4798
        %v4800 = vpop.f32.mrb[0].mxu0
        %v4801 = vadd.f32 0.0, %v4800
        %4802 = vmatprep.mubr.bf16.mxu0 0
        %4803 = vmatmul.mubr.bf16.gmra.mrb[0].mxu0 %v4686
        %v4804 = vpop.f32.mrb[0].mxu0
        %v4805 = vadd.f32 0.0, %v4804
        %v4806 = vpop.f32.mrb[0].mxu0
        %v4807 = vadd.f32 0.0, %v4806
        %v4808 = vpop.f32.mrb[0].mxu0
        %v4809 = vadd.f32 0.0, %v4808
        %v4810 = vpop.f32.mrb[0].mxu0
        %v4811 = vadd.f32 0.0, %v4810
        %4812 = vmatprep.mubr.bf16.mxu0 0
        %4813 = vmatmul.mubr.bf16.gmra.mrb[0].mxu0 %v4689
        %v4814 = vpop.f32.mrb[0].mxu0
        %v4815 = vadd.f32 0.0, %v4814
        %v4816 = vpop.f32.mrb[0].mxu0
        %v4817 = vadd.f32 0.0, %v4816
        %v4818 = vpop.f32.mrb[0].mxu0
        %v4819 = vadd.f32 0.0, %v4818
        %v4820 = vpop.f32.mrb[0].mxu0
        %v4821 = vadd.f32 0.0, %v4820
        %4822 = vmatprep.mubr.bf16.mxu0 0
        %4823 = vmatmul.mubr.bf16.gmra.mrb[0].mxu0 %v4692
        %v4824 = vpop.f32.mrb[0].mxu0
        %v4825 = vadd.f32 0.0, %v4824
        %v4826 = vpop.f32.mrb[0].mxu0
        %v4827 = vadd.f32 0.0, %v4826
        %v4828 = vpop.f32.mrb[0].mxu0
        %v4829 = vadd.f32 0.0, %v4828
        %v4830 = vpop.f32.mrb[0].mxu0
        %v4831 = vadd.f32 0.0, %v4830
        %4832 = vmatprep.mubr.bf16.mxu0 0
        %4833 = vmatmul.mubr.bf16.gmra.mrb[0].mxu0 %v4695
        %v4834 = vpop.f32.mrb[0].mxu0
        %v4835 = vadd.f32 0.0, %v4834
        %v4836 = vpop.f32.mrb[0].mxu0
        %v4837 = vadd.f32 0.0, %v4836
        %v4838 = vpop.f32.mrb[0].mxu0
        %v4839 = vadd.f32 0.0, %v4838
        %v4840 = vpop.f32.mrb[0].mxu0
        %v4841 = vadd.f32 0.0, %v4840
        %4842 = vmatprep.mubr.bf16.mxu0 0
        %4843 = vmatmul.mubr.bf16.gmra.mrb[0].mxu0 %v4698
        %v4844 = vpop.f32.mrb[0].mxu0
        %v4845 = vadd.f32 0.0, %v4844
        %v4846 = vpop.f32.mrb[0].mxu0
        %v4847 = vadd.f32 0.0, %v4846
        %v4848 = vpop.f32.mrb[0].mxu0
        %v4849 = vadd.f32 0.0, %v4848
        %v4850 = vpop.f32.mrb[0].mxu0
        %v4851 = vadd.f32 0.0, %v4850
        %4852 = vdwg.mxu0
        %4853 = vmatprep.subr.bf16.mxu0 %v4635
        %4854 = vmatpush1.bf16.msra.mxu0 %v4634
        %4855 = vmatprep.subr.bf16.mxu0 %v4639
        %4856 = vmatpush1.bf16.msra.mxu0 %v4638
        %4857 = vmatprep.subr.bf16.mxu0 %v4643
        %4858 = vmatpush1.bf16.msra.mxu0 %v4642
        %4859 = vmatprep.subr.bf16.mxu0 %v4647
        %4860 = vmatpush1.bf16.msra.mxu0 %v4646
        %4861 = vmatprep.subr.bf16.mxu0 0
        %4862 = vmatpush1.bf16.msra.mxu0 0
        %4863 = vmatprep.subr.bf16.mxu0 0
        %4864 = vmatpush1.bf16.msra.mxu0 0
        %4865 = vmatprep.subr.bf16.mxu0 0
        %4866 = vmatpush1.bf16.msra.mxu0 0
        %4867 = vmatprep.subr.bf16.mxu0 0
        %4868 = vmatpush1.bf16.msra.mxu0 0
        %4869 = vmatprep.subr.bf16.mxu0 0
        %4870 = vmatpush1.bf16.msra.mxu0 0
        %4871 = vmatprep.subr.bf16.mxu0 0
        %4872 = vmatpush1.bf16.msra.mxu0 0
        %4873 = vmatprep.subr.bf16.mxu0 0
        %4874 = vmatpush1.bf16.msra.mxu0 0
        %4875 = vmatprep.subr.bf16.mxu0 0
        %4876 = vmatpush1.bf16.msra.mxu0 0
        %4877 = vmatprep.subr.bf16.mxu0 0
        %4878 = vmatpush1.bf16.msra.mxu0 0
        %4879 = vmatprep.subr.bf16.mxu0 0
        %4880 = vmatpush1.bf16.msra.mxu0 0
        %4881 = vmatprep.subr.bf16.mxu0 0
        %4882 = vmatpush1.bf16.msra.mxu0 0
        %4883 = vmatprep.subr.bf16.mxu0 0
        %4884 = vmatpush1.bf16.msra.mxu0 0
        %4885 = vmatprep.mubr.bf16.mxu0 0
        %4886 = vmatmul.mubr.bf16.gmra.mrb[0].mxu0 %v4665
        %v4887 = vpop.f32.mrb[0].mxu0
        %v4888 = vadd.f32 0.0, %v4887
        %v4889 = vpop.f32.mrb[0].mxu0
        %v4890 = vadd.f32 0.0, %v4889
        %v4891 = vpop.f32.mrb[0].mxu0
        %v4892 = vadd.f32 0.0, %v4891
        %v4893 = vpop.f32.mrb[0].mxu0
        %v4894 = vadd.f32 0.0, %v4893
        %4895 = vmatprep.mubr.bf16.mxu0 0
        %4896 = vmatmul.mubr.bf16.gmra.mrb[0].mxu0 %v4668
        %v4897 = vpop.f32.mrb[0].mxu0
        %v4898 = vadd.f32 0.0, %v4897
        %v4899 = vpop.f32.mrb[0].mxu0
        %v4900 = vadd.f32 0.0, %v4899
        %v4901 = vpop.f32.mrb[0].mxu0
        %v4902 = vadd.f32 0.0, %v4901
        %v4903 = vpop.f32.mrb[0].mxu0
        %v4904 = vadd.f32 0.0, %v4903
        %4905 = vmatprep.mubr.bf16.mxu0 0
        %4906 = vmatmul.mubr.bf16.gmra.mrb[0].mxu0 %v4671
        %v4907 = vpop.f32.mrb[0].mxu0
        %v4908 = vadd.f32 0.0, %v4907
        %v4909 = vpop.f32.mrb[0].mxu0
        %v4910 = vadd.f32 0.0, %v4909
        %v4911 = vpop.f32.mrb[0].mxu0
        %v4912 = vadd.f32 0.0, %v4911
        %v4913 = vpop.f32.mrb[0].mxu0
        %v4914 = vadd.f32 0.0, %v4913
        %4915 = vmatprep.mubr.bf16.mxu0 0
        %4916 = vmatmul.mubr.bf16.gmra.mrb[0].mxu0 %v4674
        %v4917 = vpop.f32.mrb[0].mxu0
        %v4918 = vadd.f32 0.0, %v4917
        %v4919 = vpop.f32.mrb[0].mxu0
        %v4920 = vadd.f32 0.0, %v4919
        %v4921 = vpop.f32.mrb[0].mxu0
        %v4922 = vadd.f32 0.0, %v4921
        %v4923 = vpop.f32.mrb[0].mxu0
        %v4924 = vadd.f32 0.0, %v4923
        %4925 = vmatprep.mubr.bf16.mxu0 0
        %4926 = vmatmul.mubr.bf16.gmra.mrb[0].mxu0 %v4677
        %v4927 = vpop.f32.mrb[0].mxu0
        %v4928 = vadd.f32 0.0, %v4927
        %v4929 = vpop.f32.mrb[0].mxu0
        %v4930 = vadd.f32 0.0, %v4929
        %v4931 = vpop.f32.mrb[0].mxu0
        %v4932 = vadd.f32 0.0, %v4931
        %v4933 = vpop.f32.mrb[0].mxu0
        %v4934 = vadd.f32 0.0, %v4933
        %4935 = vmatprep.mubr.bf16.mxu0 0
        %4936 = vmatmul.mubr.bf16.gmra.mrb[0].mxu0 %v4680
        %v4937 = vpop.f32.mrb[0].mxu0
        %v4938 = vadd.f32 0.0, %v4937
        %v4939 = vpop.f32.mrb[0].mxu0
        %v4940 = vadd.f32 0.0, %v4939
        %v4941 = vpop.f32.mrb[0].mxu0
        %v4942 = vadd.f32 0.0, %v4941
        %v4943 = vpop.f32.mrb[0].mxu0
        %v4944 = vadd.f32 0.0, %v4943
        %4945 = vmatprep.mubr.bf16.mxu0 0
        %4946 = vmatmul.mubr.bf16.gmra.mrb[0].mxu0 %v4683
        %v4947 = vpop.f32.mrb[0].mxu0
        %v4948 = vadd.f32 0.0, %v4947
        %v4949 = vpop.f32.mrb[0].mxu0
        %v4950 = vadd.f32 0.0, %v4949
        %v4951 = vpop.f32.mrb[0].mxu0
        %v4952 = vadd.f32 0.0, %v4951
        %v4953 = vpop.f32.mrb[0].mxu0
        %v4954 = vadd.f32 0.0, %v4953
        %4955 = vmatprep.mubr.bf16.mxu0 0
        %4956 = vmatmul.mubr.bf16.gmra.mrb[0].mxu0 %v4686
        %v4957 = vpop.f32.mrb[0].mxu0
        %v4958 = vadd.f32 0.0, %v4957
        %v4959 = vpop.f32.mrb[0].mxu0
        %v4960 = vadd.f32 0.0, %v4959
        %v4961 = vpop.f32.mrb[0].mxu0
        %v4962 = vadd.f32 0.0, %v4961
        %v4963 = vpop.f32.mrb[0].mxu0
        %v4964 = vadd.f32 0.0, %v4963
        %4965 = vmatprep.mubr.bf16.mxu0 0
        %4966 = vmatmul.mubr.bf16.gmra.mrb[0].mxu0 %v4689
        %v4967 = vpop.f32.mrb[0].mxu0
        %v4968 = vadd.f32 0.0, %v4967
        %v4969 = vpop.f32.mrb[0].mxu0
        %v4970 = vadd.f32 0.0, %v4969
        %v4971 = vpop.f32.mrb[0].mxu0
        %v4972 = vadd.f32 0.0, %v4971
        %v4973 = vpop.f32.mrb[0].mxu0
        %v4974 = vadd.f32 0.0, %v4973
        %4975 = vmatprep.mubr.bf16.mxu0 0
        %4976 = vmatmul.mubr.bf16.gmra.mrb[0].mxu0 %v4692
        %v4977 = vpop.f32.mrb[0].mxu0
        %v4978 = vadd.f32 0.0, %v4977
        %v4979 = vpop.f32.mrb[0].mxu0
        %v4980 = vadd.f32 0.0, %v4979
        %v4981 = vpop.f32.mrb[0].mxu0
        %v4982 = vadd.f32 0.0, %v4981
        %v4983 = vpop.f32.mrb[0].mxu0
        %v4984 = vadd.f32 0.0, %v4983
        %4985 = vmatprep.mubr.bf16.mxu0 0
        %4986 = vmatmul.mubr.bf16.gmra.mrb[0].mxu0 %v4695
        %v4987 = vpop.f32.mrb[0].mxu0
        %v4988 = vadd.f32 0.0, %v4987
        %v4989 = vpop.f32.mrb[0].mxu0
        %v4990 = vadd.f32 0.0, %v4989
        %v4991 = vpop.f32.mrb[0].mxu0
        %v4992 = vadd.f32 0.0, %v4991
        %v4993 = vpop.f32.mrb[0].mxu0
        %v4994 = vadd.f32 0.0, %v4993
        %4995 = vmatprep.mubr.bf16.mxu0 0
        %4996 = vmatmul.mubr.bf16.gmra.mrb[0].mxu0 %v4698
        %v4997 = vpop.f32.mrb[0].mxu0
        %v4998 = vadd.f32 0.0, %v4997
        %v4999 = vpop.f32.mrb[0].mxu0
        %v5000 = vadd.f32 0.0, %v4999
        %v5001 = vpop.f32.mrb[0].mxu0
        %v5002 = vadd.f32 0.0, %v5001
        %v5003 = vpop.f32.mrb[0].mxu0
        %v5004 = vadd.f32 0.0, %v5003
        %5005 = vdwg.mxu0
        %v5006 = vadd.f32 %v4476, %v4735
        %v5007 = vadd.f32 %v4477, %v4737
        %v5008 = vadd.f32 %v4478, %v4888
        %v5009 = vadd.f32 %v4479, %v4890
        %v5010 = vadd.f32 %v4480, %v4739
        %v5011 = vadd.f32 %v4481, %v4741
        %v5012 = vadd.f32 %v4482, %v4892
        %v5013 = vadd.f32 %v4483, %v4894
        %v5014 = vadd.f32 %v4484, %v4745
        %v5015 = vadd.f32 %v4485, %v4747
        %v5016 = vadd.f32 %v4486, %v4898
        %v5017 = vadd.f32 %v4487, %v4900
        %v5018 = vadd.f32 %v4488, %v4749
        %v5019 = vadd.f32 %v4489, %v4751
        %v5020 = vadd.f32 %v4490, %v4902
        %v5021 = vadd.f32 %v4491, %v4904
        %v5022 = vadd.f32 %v4492, %v4755
        %v5023 = vadd.f32 %v4493, %v4757
        %v5024 = vadd.f32 %v4494, %v4908
        %v5025 = vadd.f32 %v4495, %v4910
        %v5026 = vadd.f32 %v4496, %v4759
        %v5027 = vadd.f32 %v4497, %v4761
        %v5028 = vadd.f32 %v4498, %v4912
        %v5029 = vadd.f32 %v4499, %v4914
        %v5030 = vadd.f32 %v4500, %v4765
        %v5031 = vadd.f32 %v4501, %v4767
        %v5032 = vadd.f32 %v4502, %v4918
        %v5033 = vadd.f32 %v4503, %v4920
        %v5034 = vadd.f32 %v4504, %v4769
        %v5035 = vadd.f32 %v4505, %v4771
        %v5036 = vadd.f32 %v4506, %v4922
        %v5037 = vadd.f32 %v4507, %v4924
        %v5038 = vadd.f32 %v4508, %v4775
        %v5039 = vadd.f32 %v4509, %v4777
        %v5040 = vadd.f32 %v4510, %v4928
        %v5041 = vadd.f32 %v4511, %v4930
        %v5042 = vadd.f32 %v4512, %v4779
        %v5043 = vadd.f32 %v4513, %v4781
        %v5044 = vadd.f32 %v4514, %v4932
        %v5045 = vadd.f32 %v4515, %v4934
        %v5046 = vadd.f32 %v4516, %v4785
        %v5047 = vadd.f32 %v4517, %v4787
        %v5048 = vadd.f32 %v4518, %v4938
        %v5049 = vadd.f32 %v4519, %v4940
        %v5050 = vadd.f32 %v4520, %v4789
        %v5051 = vadd.f32 %v4521, %v4791
        %v5052 = vadd.f32 %v4522, %v4942
        %v5053 = vadd.f32 %v4523, %v4944
        %v5054 = vadd.f32 %v4524, %v4795
        %v5055 = vadd.f32 %v4525, %v4797
        %v5056 = vadd.f32 %v4526, %v4948
        %v5057 = vadd.f32 %v4527, %v4950
        %v5058 = vadd.f32 %v4528, %v4799
        %v5059 = vadd.f32 %v4529, %v4801
        %v5060 = vadd.f32 %v4530, %v4952
        %v5061 = vadd.f32 %v4531, %v4954
        %v5062 = vadd.f32 %v4532, %v4805
        %v5063 = vadd.f32 %v4533, %v4807
        %v5064 = vadd.f32 %v4534, %v4958
        %v5065 = vadd.f32 %v4535, %v4960
        %v5066 = vadd.f32 %v4536, %v4809
        %v5067 = vadd.f32 %v4537, %v4811
        %v5068 = vadd.f32 %v4538, %v4962
        %v5069 = vadd.f32 %v4539, %v4964
        %v5070 = vadd.f32 %v4540, %v4815
        %v5071 = vadd.f32 %v4541, %v4817
        %v5072 = vadd.f32 %v4542, %v4968
        %v5073 = vadd.f32 %v4543, %v4970
        %v5074 = vadd.f32 %v4544, %v4819
        %v5075 = vadd.f32 %v4545, %v4821
        %v5076 = vadd.f32 %v4546, %v4972
        %v5077 = vadd.f32 %v4547, %v4974
        %v5078 = vadd.f32 %v4548, %v4825
        %v5079 = vadd.f32 %v4549, %v4827
        %v5080 = vadd.f32 %v4550, %v4978
        %v5081 = vadd.f32 %v4551, %v4980
        %v5082 = vadd.f32 %v4552, %v4829
        %v5083 = vadd.f32 %v4553, %v4831
        %v5084 = vadd.f32 %v4554, %v4982
        %v5085 = vadd.f32 %v4555, %v4984
        %v5086 = vadd.f32 %v4556, %v4835
        %v5087 = vadd.f32 %v4557, %v4837
        %v5088 = vadd.f32 %v4558, %v4988
        %v5089 = vadd.f32 %v4559, %v4990
        %v5090 = vadd.f32 %v4560, %v4839
        %v5091 = vadd.f32 %v4561, %v4841
        %v5092 = vadd.f32 %v4562, %v4992
        %v5093 = vadd.f32 %v4563, %v4994
        %v5094 = vadd.f32 %v4564, %v4845
        %v5095 = vadd.f32 %v4565, %v4847
        %v5096 = vadd.f32 %v4566, %v4998
        %v5097 = vadd.f32 %v4567, %v5000
        %v5098 = vadd.f32 %v4568, %v4849
        %v5099 = vadd.f32 %v4569, %v4851
        %v5100 = vadd.f32 %v4570, %v5002
        %v5101 = vadd.f32 %v4571, %v5004
        %5102 = vst [vmem:[#allocation2] sm:$0xff] %v5006
        %5103 = vst [vmem:[#allocation2 + $0x8] sm:$0xff] %v5007
        %5104 = vst [vmem:[#allocation2 + $0x10] sm:$0xff] %v5008
        %5105 = vst [vmem:[#allocation2 + $0x18] sm:$0xff] %v5009
        %5106 = vst [vmem:[#allocation2 + $0x20] sm:$0xff] %v5010
        %5107 = vst [vmem:[#allocation2 + $0x28] sm:$0xff] %v5011
        %5108 = vst [vmem:[#allocation2 + $0x30] sm:$0xff] %v5012
        %5109 = vst [vmem:[#allocation2 + $0x38] sm:$0xff] %v5013
        %5110 = vst [vmem:[#allocation2 + $0x40] sm:$0xff] %v5014
        %5111 = vst [vmem:[#allocation2 + $0x48] sm:$0xff] %v5015
        %5112 = vst [vmem:[#allocation2 + $0x50] sm:$0xff] %v5016
        %5113 = vst [vmem:[#allocation2 + $0x58] sm:$0xff] %v5017
        %5114 = vst [vmem:[#allocation2 + $0x60] sm:$0xff] %v5018
        %5115 = vst [vmem:[#allocation2 + $0x68] sm:$0xff] %v5019
        %5116 = vst [vmem:[#allocation2 + $0x70] sm:$0xff] %v5020
        %5117 = vst [vmem:[#allocation2 + $0x78] sm:$0xff] %v5021
        %5118 = vst [vmem:[#allocation2 + $0x80] sm:$0xff] %v5022
        %5119 = vst [vmem:[#allocation2 + $0x88] sm:$0xff] %v5023
        %5120 = vst [vmem:[#allocation2 + $0x90] sm:$0xff] %v5024
        %5121 = vst [vmem:[#allocation2 + $0x98] sm:$0xff] %v5025
        %5122 = vst [vmem:[#allocation2 + $0xa0] sm:$0xff] %v5026
        %5123 = vst [vmem:[#allocation2 + $0xa8] sm:$0xff] %v5027
        %5124 = vst [vmem:[#allocation2 + $0xb0] sm:$0xff] %v5028
        %5125 = vst [vmem:[#allocation2 + $0xb8] sm:$0xff] %v5029
        %5126 = vst [vmem:[#allocation2 + $0xc0] sm:$0xff] %v5030
        %5127 = vst [vmem:[#allocation2 + $0xc8] sm:$0xff] %v5031
        %5128 = vst [vmem:[#allocation2 + $0xd0] sm:$0xff] %v5032
        %5129 = vst [vmem:[#allocation2 + $0xd8] sm:$0xff] %v5033
        %5130 = vst [vmem:[#allocation2 + $0xe0] sm:$0xff] %v5034
        %5131 = vst [vmem:[#allocation2 + $0xe8] sm:$0xff] %v5035
        %5132 = vst [vmem:[#allocation2 + $0xf0] sm:$0xff] %v5036
        %5133 = vst [vmem:[#allocation2 + $0xf8] sm:$0xff] %v5037
        %5134 = vst [vmem:[#allocation2 + $0x100] sm:$0xff] %v5038
        %5135 = vst [vmem:[#allocation2 + $0x108] sm:$0xff] %v5039
        %5136 = vst [vmem:[#allocation2 + $0x110] sm:$0xff] %v5040
        %5137 = vst [vmem:[#allocation2 + $0x118] sm:$0xff] %v5041
        %5138 = vst [vmem:[#allocation2 + $0x120] sm:$0xff] %v5042
        %5139 = vst [vmem:[#allocation2 + $0x128] sm:$0xff] %v5043
        %5140 = vst [vmem:[#allocation2 + $0x130] sm:$0xff] %v5044
        %5141 = vst [vmem:[#allocation2 + $0x138] sm:$0xff] %v5045
        %5142 = vst [vmem:[#allocation2 + $0x140] sm:$0xff] %v5046
        %5143 = vst [vmem:[#allocation2 + $0x148] sm:$0xff] %v5047
        %5144 = vst [vmem:[#allocation2 + $0x150] sm:$0xff] %v5048
        %5145 = vst [vmem:[#allocation2 + $0x158] sm:$0xff] %v5049
        %5146 = vst [vmem:[#allocation2 + $0x160] sm:$0xff] %v5050
        %5147 = vst [vmem:[#allocation2 + $0x168] sm:$0xff] %v5051
        %5148 = vst [vmem:[#allocation2 + $0x170] sm:$0xff] %v5052
        %5149 = vst [vmem:[#allocation2 + $0x178] sm:$0xff] %v5053
        %5150 = vst [vmem:[#allocation2 + $0x180] sm:$0xff] %v5054
        %5151 = vst [vmem:[#allocation2 + $0x188] sm:$0xff] %v5055
        %5152 = vst [vmem:[#allocation2 + $0x190] sm:$0xff] %v5056
        %5153 = vst [vmem:[#allocation2 + $0x198] sm:$0xff] %v5057
        %5154 = vst [vmem:[#allocation2 + $0x1a0] sm:$0xff] %v5058
        %5155 = vst [vmem:[#allocation2 + $0x1a8] sm:$0xff] %v5059
        %5156 = vst [vmem:[#allocation2 + $0x1b0] sm:$0xff] %v5060
        %5157 = vst [vmem:[#allocation2 + $0x1b8] sm:$0xff] %v5061
        %5158 = vst [vmem:[#allocation2 + $0x1c0] sm:$0xff] %v5062
        %5159 = vst [vmem:[#allocation2 + $0x1c8] sm:$0xff] %v5063
        %5160 = vst [vmem:[#allocation2 + $0x1d0] sm:$0xff] %v5064
        %5161 = vst [vmem:[#allocation2 + $0x1d8] sm:$0xff] %v5065
        %5162 = vst [vmem:[#allocation2 + $0x1e0] sm:$0xff] %v5066
        %5163 = vst [vmem:[#allocation2 + $0x1e8] sm:$0xff] %v5067
        %5164 = vst [vmem:[#allocation2 + $0x1f0] sm:$0xff] %v5068
        %5165 = vst [vmem:[#allocation2 + $0x1f8] sm:$0xff] %v5069
        %5166 = vst [vmem:[#allocation2 + $0x200] sm:$0xff] %v5070
        %5167 = vst [vmem:[#allocation2 + $0x208] sm:$0xff] %v5071
        %5168 = vst [vmem:[#allocation2 + $0x210] sm:$0xff] %v5072
        %5169 = vst [vmem:[#allocation2 + $0x218] sm:$0xff] %v5073
        %5170 = vst [vmem:[#allocation2 + $0x220] sm:$0xff] %v5074
        %5171 = vst [vmem:[#allocation2 + $0x228] sm:$0xff] %v5075
        %5172 = vst [vmem:[#allocation2 + $0x230] sm:$0xff] %v5076
        %5173 = vst [vmem:[#allocation2 + $0x238] sm:$0xff] %v5077
        %5174 = vst [vmem:[#allocation2 + $0x240] sm:$0xff] %v5078
        %5175 = vst [vmem:[#allocation2 + $0x248] sm:$0xff] %v5079
        %5176 = vst [vmem:[#allocation2 + $0x250] sm:$0xff] %v5080
        %5177 = vst [vmem:[#allocation2 + $0x258] sm:$0xff] %v5081
        %5178 = vst [vmem:[#allocation2 + $0x260] sm:$0xff] %v5082
        %5179 = vst [vmem:[#allocation2 + $0x268] sm:$0xff] %v5083
        %5180 = vst [vmem:[#allocation2 + $0x270] sm:$0xff] %v5084
        %5181 = vst [vmem:[#allocation2 + $0x278] sm:$0xff] %v5085
        %5182 = vst [vmem:[#allocation2 + $0x280] sm:$0xff] %v5086
        %5183 = vst [vmem:[#allocation2 + $0x288] sm:$0xff] %v5087
        %5184 = vst [vmem:[#allocation2 + $0x290] sm:$0xff] %v5088
        %5185 = vst [vmem:[#allocation2 + $0x298] sm:$0xff] %v5089
        %5186 = vst [vmem:[#allocation2 + $0x2a0] sm:$0xff] %v5090
        %5187 = vst [vmem:[#allocation2 + $0x2a8] sm:$0xff] %v5091
        %5188 = vst [vmem:[#allocation2 + $0x2b0] sm:$0xff] %v5092
        %5189 = vst [vmem:[#allocation2 + $0x2b8] sm:$0xff] %v5093
        %5190 = vst [vmem:[#allocation2 + $0x2c0] sm:$0xff] %v5094
        %5191 = vst [vmem:[#allocation2 + $0x2c8] sm:$0xff] %v5095
        %5192 = vst [vmem:[#allocation2 + $0x2d0] sm:$0xff] %v5096
        %5193 = vst [vmem:[#allocation2 + $0x2d8] sm:$0xff] %v5097
        %5194 = vst [vmem:[#allocation2 + $0x2e0] sm:$0xff] %v5098
        %5195 = vst [vmem:[#allocation2 + $0x2e8] sm:$0xff] %v5099
        %5196 = vst [vmem:[#allocation2 + $0x2f0] sm:$0xff] %v5100
        %5197 = vst [vmem:[#allocation2 + $0x2f8] sm:$0xff] %v5101
        %p5198 = scmp.eq.s32.totalorder %s23, 7
        // Predicated region
        $region69: #{tpu_custom_call.1} parent=63 // pred_check
          %p5199 = pneg %p5198
        $region70: #{tpu_custom_call.1} parent=63 // pred_check_branch
          %5201 = sbr.rel (%p5199) target = $region72
        $region71: #{tpu_custom_call.1} parent=63 // pred_region
          %v5202 = vld [vmem:[#allocation2] sm:$0xff]
          %v5203 = vld [vmem:[#allocation2 + $0x8] sm:$0xff]
          %v5204 = vld [vmem:[#allocation2 + $0x10] sm:$0xff]
          %v5205 = vld [vmem:[#allocation2 + $0x18] sm:$0xff]
          %v5206 = vld [vmem:[#allocation2 + $0x20] sm:$0xff]
          %v5207 = vld [vmem:[#allocation2 + $0x28] sm:$0xff]
          %v5208 = vld [vmem:[#allocation2 + $0x30] sm:$0xff]
          %v5209 = vld [vmem:[#allocation2 + $0x38] sm:$0xff]
          %v5210 = vld [vmem:[#allocation2 + $0x40] sm:$0xff]
          %v5211 = vld [vmem:[#allocation2 + $0x48] sm:$0xff]
          %v5212 = vld [vmem:[#allocation2 + $0x50] sm:$0xff]
          %v5213 = vld [vmem:[#allocation2 + $0x58] sm:$0xff]
          %v5214 = vld [vmem:[#allocation2 + $0x60] sm:$0xff]
          %v5215 = vld [vmem:[#allocation2 + $0x68] sm:$0xff]
          %v5216 = vld [vmem:[#allocation2 + $0x70] sm:$0xff]
          %v5217 = vld [vmem:[#allocation2 + $0x78] sm:$0xff]
          %v5218 = vld [vmem:[#allocation2 + $0x80] sm:$0xff]
          %v5219 = vld [vmem:[#allocation2 + $0x88] sm:$0xff]
          %v5220 = vld [vmem:[#allocation2 + $0x90] sm:$0xff]
          %v5221 = vld [vmem:[#allocation2 + $0x98] sm:$0xff]
          %v5222 = vld [vmem:[#allocation2 + $0xa0] sm:$0xff]
          %v5223 = vld [vmem:[#allocation2 + $0xa8] sm:$0xff]
          %v5224 = vld [vmem:[#allocation2 + $0xb0] sm:$0xff]
          %v5225 = vld [vmem:[#allocation2 + $0xb8] sm:$0xff]
          %v5226 = vld [vmem:[#allocation2 + $0xc0] sm:$0xff]
          %v5227 = vld [vmem:[#allocation2 + $0xc8] sm:$0xff]
          %v5228 = vld [vmem:[#allocation2 + $0xd0] sm:$0xff]
          %v5229 = vld [vmem:[#allocation2 + $0xd8] sm:$0xff]
          %v5230 = vld [vmem:[#allocation2 + $0xe0] sm:$0xff]
          %v5231 = vld [vmem:[#allocation2 + $0xe8] sm:$0xff]
          %v5232 = vld [vmem:[#allocation2 + $0xf0] sm:$0xff]
          %v5233 = vld [vmem:[#allocation2 + $0xf8] sm:$0xff]
          %v5234 = vld [vmem:[#allocation2 + $0x100] sm:$0xff]
          %v5235 = vld [vmem:[#allocation2 + $0x108] sm:$0xff]
          %v5236 = vld [vmem:[#allocation2 + $0x110] sm:$0xff]
          %v5237 = vld [vmem:[#allocation2 + $0x118] sm:$0xff]
          %v5238 = vld [vmem:[#allocation2 + $0x120] sm:$0xff]
          %v5239 = vld [vmem:[#allocation2 + $0x128] sm:$0xff]
          %v5240 = vld [vmem:[#allocation2 + $0x130] sm:$0xff]
          %v5241 = vld [vmem:[#allocation2 + $0x138] sm:$0xff]
          %v5242 = vld [vmem:[#allocation2 + $0x140] sm:$0xff]
          %v5243 = vld [vmem:[#allocation2 + $0x148] sm:$0xff]
          %v5244 = vld [vmem:[#allocation2 + $0x150] sm:$0xff]
          %v5245 = vld [vmem:[#allocation2 + $0x158] sm:$0xff]
          %v5246 = vld [vmem:[#allocation2 + $0x160] sm:$0xff]
          %v5247 = vld [vmem:[#allocation2 + $0x168] sm:$0xff]
          %v5248 = vld [vmem:[#allocation2 + $0x170] sm:$0xff]
          %v5249 = vld [vmem:[#allocation2 + $0x178] sm:$0xff]
          %v5250 = vld [vmem:[#allocation2 + $0x180] sm:$0xff]
          %v5251 = vld [vmem:[#allocation2 + $0x188] sm:$0xff]
          %v5252 = vld [vmem:[#allocation2 + $0x190] sm:$0xff]
          %v5253 = vld [vmem:[#allocation2 + $0x198] sm:$0xff]
          %v5254 = vld [vmem:[#allocation2 + $0x1a0] sm:$0xff]
          %v5255 = vld [vmem:[#allocation2 + $0x1a8] sm:$0xff]
          %v5256 = vld [vmem:[#allocation2 + $0x1b0] sm:$0xff]
          %v5257 = vld [vmem:[#allocation2 + $0x1b8] sm:$0xff]
          %v5258 = vld [vmem:[#allocation2 + $0x1c0] sm:$0xff]
          %v5259 = vld [vmem:[#allocation2 + $0x1c8] sm:$0xff]
          %v5260 = vld [vmem:[#allocation2 + $0x1d0] sm:$0xff]
          %v5261 = vld [vmem:[#allocation2 + $0x1d8] sm:$0xff]
          %v5262 = vld [vmem:[#allocation2 + $0x1e0] sm:$0xff]
          %v5263 = vld [vmem:[#allocation2 + $0x1e8] sm:$0xff]
          %v5264 = vld [vmem:[#allocation2 + $0x1f0] sm:$0xff]
          %v5265 = vld [vmem:[#allocation2 + $0x1f8] sm:$0xff]
          %v5266 = vld [vmem:[#allocation2 + $0x200] sm:$0xff]
          %v5267 = vld [vmem:[#allocation2 + $0x208] sm:$0xff]
          %v5268 = vld [vmem:[#allocation2 + $0x210] sm:$0xff]
          %v5269 = vld [vmem:[#allocation2 + $0x218] sm:$0xff]
          %v5270 = vld [vmem:[#allocation2 + $0x220] sm:$0xff]
          %v5271 = vld [vmem:[#allocation2 + $0x228] sm:$0xff]
          %v5272 = vld [vmem:[#allocation2 + $0x230] sm:$0xff]
          %v5273 = vld [vmem:[#allocation2 + $0x238] sm:$0xff]
          %v5274 = vld [vmem:[#allocation2 + $0x240] sm:$0xff]
          %v5275 = vld [vmem:[#allocation2 + $0x248] sm:$0xff]
          %v5276 = vld [vmem:[#allocation2 + $0x250] sm:$0xff]
          %v5277 = vld [vmem:[#allocation2 + $0x258] sm:$0xff]
          %v5278 = vld [vmem:[#allocation2 + $0x260] sm:$0xff]
          %v5279 = vld [vmem:[#allocation2 + $0x268] sm:$0xff]
          %v5280 = vld [vmem:[#allocation2 + $0x270] sm:$0xff]
          %v5281 = vld [vmem:[#allocation2 + $0x278] sm:$0xff]
          %v5282 = vld [vmem:[#allocation2 + $0x280] sm:$0xff]
          %v5283 = vld [vmem:[#allocation2 + $0x288] sm:$0xff]
          %v5284 = vld [vmem:[#allocation2 + $0x290] sm:$0xff]
          %v5285 = vld [vmem:[#allocation2 + $0x298] sm:$0xff]
          %v5286 = vld [vmem:[#allocation2 + $0x2a0] sm:$0xff]
          %v5287 = vld [vmem:[#allocation2 + $0x2a8] sm:$0xff]
          %v5288 = vld [vmem:[#allocation2 + $0x2b0] sm:$0xff]
          %v5289 = vld [vmem:[#allocation2 + $0x2b8] sm:$0xff]
          %v5290 = vld [vmem:[#allocation2 + $0x2c0] sm:$0xff]
          %v5291 = vld [vmem:[#allocation2 + $0x2c8] sm:$0xff]
          %v5292 = vld [vmem:[#allocation2 + $0x2d0] sm:$0xff]
          %v5293 = vld [vmem:[#allocation2 + $0x2d8] sm:$0xff]
          %v5294 = vld [vmem:[#allocation2 + $0x2e0] sm:$0xff]
          %v5295 = vld [vmem:[#allocation2 + $0x2e8] sm:$0xff]
          %v5296 = vld [vmem:[#allocation2 + $0x2f0] sm:$0xff]
          %v5297 = vld [vmem:[#allocation2 + $0x2f8] sm:$0xff]
          %v5298 = vld [vmem:[%s10] sm:$0xf]
          %v5300 = vlaneseq
          %v5301 = vshrl.u32 %v5300, 7
          %v5302 = vsub.s32 0, %v5301
          %v5303 = vrot.slane %v5298, %v5302
          %v5304 = vlaneseq
          %v5305 = vshrl.u32 %v5304, 7
          %v5306 = vsub.s32 1, %v5305
          %v5307 = vrot.slane %v5298, %v5306
          %v5308 = vlaneseq
          %v5309 = vshrl.u32 %v5308, 7
          %v5310 = vsub.s32 2, %v5309
          %v5311 = vrot.slane %v5298, %v5310
          %v5312 = vlaneseq
          %v5313 = vshrl.u32 %v5312, 7
          %v5314 = vsub.s32 3, %v5313
          %v5315 = vrot.slane %v5298, %v5314
          %v5320 = vadd.f32 %v5202, %v5303
          %v5321 = vadd.f32 %v5203, %v5307
          %v5322 = vadd.f32 %v5204, %v5311
          %v5323 = vadd.f32 %v5205, %v5315
          %v5324 = vadd.f32 %v5206, %v5303
          %v5325 = vadd.f32 %v5207, %v5307
          %v5326 = vadd.f32 %v5208, %v5311
          %v5327 = vadd.f32 %v5209, %v5315
          %v5328 = vadd.f32 %v5210, %v5303
          %v5329 = vadd.f32 %v5211, %v5307
          %v5330 = vadd.f32 %v5212, %v5311
          %v5331 = vadd.f32 %v5213, %v5315
          %v5332 = vadd.f32 %v5214, %v5303
          %v5333 = vadd.f32 %v5215, %v5307
          %v5334 = vadd.f32 %v5216, %v5311
          %v5335 = vadd.f32 %v5217, %v5315
          %v5336 = vadd.f32 %v5218, %v5303
          %v5337 = vadd.f32 %v5219, %v5307
          %v5338 = vadd.f32 %v5220, %v5311
          %v5339 = vadd.f32 %v5221, %v5315
          %v5340 = vadd.f32 %v5222, %v5303
          %v5341 = vadd.f32 %v5223, %v5307
          %v5342 = vadd.f32 %v5224, %v5311
          %v5343 = vadd.f32 %v5225, %v5315
          %v5344 = vadd.f32 %v5226, %v5303
          %v5345 = vadd.f32 %v5227, %v5307
          %v5346 = vadd.f32 %v5228, %v5311
          %v5347 = vadd.f32 %v5229, %v5315
          %v5348 = vadd.f32 %v5230, %v5303
          %v5349 = vadd.f32 %v5231, %v5307
          %v5350 = vadd.f32 %v5232, %v5311
          %v5351 = vadd.f32 %v5233, %v5315
          %v5352 = vadd.f32 %v5234, %v5303
          %v5353 = vadd.f32 %v5235, %v5307
          %v5354 = vadd.f32 %v5236, %v5311
          %v5355 = vadd.f32 %v5237, %v5315
          %v5356 = vadd.f32 %v5238, %v5303
          %v5357 = vadd.f32 %v5239, %v5307
          %v5358 = vadd.f32 %v5240, %v5311
          %v5359 = vadd.f32 %v5241, %v5315
          %v5360 = vadd.f32 %v5242, %v5303
          %v5361 = vadd.f32 %v5243, %v5307
          %v5362 = vadd.f32 %v5244, %v5311
          %v5363 = vadd.f32 %v5245, %v5315
          %v5364 = vadd.f32 %v5246, %v5303
          %v5365 = vadd.f32 %v5247, %v5307
          %v5366 = vadd.f32 %v5248, %v5311
          %v5367 = vadd.f32 %v5249, %v5315
          %v5368 = vadd.f32 %v5250, %v5303
          %v5369 = vadd.f32 %v5251, %v5307
          %v5370 = vadd.f32 %v5252, %v5311
          %v5371 = vadd.f32 %v5253, %v5315
          %v5372 = vadd.f32 %v5254, %v5303
          %v5373 = vadd.f32 %v5255, %v5307
          %v5374 = vadd.f32 %v5256, %v5311
          %v5375 = vadd.f32 %v5257, %v5315
          %v5376 = vadd.f32 %v5258, %v5303
          %v5377 = vadd.f32 %v5259, %v5307
          %v5378 = vadd.f32 %v5260, %v5311
          %v5379 = vadd.f32 %v5261, %v5315
          %v5380 = vadd.f32 %v5262, %v5303
          %v5381 = vadd.f32 %v5263, %v5307
          %v5382 = vadd.f32 %v5264, %v5311
          %v5383 = vadd.f32 %v5265, %v5315
          %v5384 = vadd.f32 %v5266, %v5303
          %v5385 = vadd.f32 %v5267, %v5307
          %v5386 = vadd.f32 %v5268, %v5311
          %v5387 = vadd.f32 %v5269, %v5315
          %v5388 = vadd.f32 %v5270, %v5303
          %v5389 = vadd.f32 %v5271, %v5307
          %v5390 = vadd.f32 %v5272, %v5311
          %v5391 = vadd.f32 %v5273, %v5315
          %v5392 = vadd.f32 %v5274, %v5303
          %v5393 = vadd.f32 %v5275, %v5307
          %v5394 = vadd.f32 %v5276, %v5311
          %v5395 = vadd.f32 %v5277, %v5315
          %v5396 = vadd.f32 %v5278, %v5303
          %v5397 = vadd.f32 %v5279, %v5307
          %v5398 = vadd.f32 %v5280, %v5311
          %v5399 = vadd.f32 %v5281, %v5315
          %v5400 = vadd.f32 %v5282, %v5303
          %v5401 = vadd.f32 %v5283, %v5307
          %v5402 = vadd.f32 %v5284, %v5311
          %v5403 = vadd.f32 %v5285, %v5315
          %v5404 = vadd.f32 %v5286, %v5303
          %v5405 = vadd.f32 %v5287, %v5307
          %v5406 = vadd.f32 %v5288, %v5311
          %v5407 = vadd.f32 %v5289, %v5315
          %v5408 = vadd.f32 %v5290, %v5303
          %v5409 = vadd.f32 %v5291, %v5307
          %v5410 = vadd.f32 %v5292, %v5311
          %v5411 = vadd.f32 %v5293, %v5315
          %v5412 = vadd.f32 %v5294, %v5303
          %v5413 = vadd.f32 %v5295, %v5307
          %v5414 = vadd.f32 %v5296, %v5311
          %v5415 = vadd.f32 %v5297, %v5315
          %5416 = vst [vmem:[#allocation3] sm:$0xff] %v5320
          %5417 = vst [vmem:[#allocation3 + $0x8] sm:$0xff] %v5321
          %5418 = vst [vmem:[#allocation3 + $0x10] sm:$0xff] %v5322
          %5419 = vst [vmem:[#allocation3 + $0x18] sm:$0xff] %v5323
          %5420 = vst [vmem:[#allocation3 + $0x20] sm:$0xff] %v5324
          %5421 = vst [vmem:[#allocation3 + $0x28] sm:$0xff] %v5325
          %5422 = vst [vmem:[#allocation3 + $0x30] sm:$0xff] %v5326
          %5423 = vst [vmem:[#allocation3 + $0x38] sm:$0xff] %v5327
          %5424 = vst [vmem:[#allocation3 + $0x40] sm:$0xff] %v5328
          %5425 = vst [vmem:[#allocation3 + $0x48] sm:$0xff] %v5329
          %5426 = vst [vmem:[#allocation3 + $0x50] sm:$0xff] %v5330
          %5427 = vst [vmem:[#allocation3 + $0x58] sm:$0xff] %v5331
          %5428 = vst [vmem:[#allocation3 + $0x60] sm:$0xff] %v5332
          %5429 = vst [vmem:[#allocation3 + $0x68] sm:$0xff] %v5333
          %5430 = vst [vmem:[#allocation3 + $0x70] sm:$0xff] %v5334
          %5431 = vst [vmem:[#allocation3 + $0x78] sm:$0xff] %v5335
          %5432 = vst [vmem:[#allocation3 + $0x80] sm:$0xff] %v5336
          %5433 = vst [vmem:[#allocation3 + $0x88] sm:$0xff] %v5337
          %5434 = vst [vmem:[#allocation3 + $0x90] sm:$0xff] %v5338
          %5435 = vst [vmem:[#allocation3 + $0x98] sm:$0xff] %v5339
          %5436 = vst [vmem:[#allocation3 + $0xa0] sm:$0xff] %v5340
          %5437 = vst [vmem:[#allocation3 + $0xa8] sm:$0xff] %v5341
          %5438 = vst [vmem:[#allocation3 + $0xb0] sm:$0xff] %v5342
          %5439 = vst [vmem:[#allocation3 + $0xb8] sm:$0xff] %v5343
          %5440 = vst [vmem:[#allocation3 + $0xc0] sm:$0xff] %v5344
          %5441 = vst [vmem:[#allocation3 + $0xc8] sm:$0xff] %v5345
          %5442 = vst [vmem:[#allocation3 + $0xd0] sm:$0xff] %v5346
          %5443 = vst [vmem:[#allocation3 + $0xd8] sm:$0xff] %v5347
          %5444 = vst [vmem:[#allocation3 + $0xe0] sm:$0xff] %v5348
          %5445 = vst [vmem:[#allocation3 + $0xe8] sm:$0xff] %v5349
          %5446 = vst [vmem:[#allocation3 + $0xf0] sm:$0xff] %v5350
          %5447 = vst [vmem:[#allocation3 + $0xf8] sm:$0xff] %v5351
          %5448 = vst [vmem:[#allocation3 + $0x100] sm:$0xff] %v5352
          %5449 = vst [vmem:[#allocation3 + $0x108] sm:$0xff] %v5353
          %5450 = vst [vmem:[#allocation3 + $0x110] sm:$0xff] %v5354
          %5451 = vst [vmem:[#allocation3 + $0x118] sm:$0xff] %v5355
          %5452 = vst [vmem:[#allocation3 + $0x120] sm:$0xff] %v5356
          %5453 = vst [vmem:[#allocation3 + $0x128] sm:$0xff] %v5357
          %5454 = vst [vmem:[#allocation3 + $0x130] sm:$0xff] %v5358
          %5455 = vst [vmem:[#allocation3 + $0x138] sm:$0xff] %v5359
          %5456 = vst [vmem:[#allocation3 + $0x140] sm:$0xff] %v5360
          %5457 = vst [vmem:[#allocation3 + $0x148] sm:$0xff] %v5361
          %5458 = vst [vmem:[#allocation3 + $0x150] sm:$0xff] %v5362
          %5459 = vst [vmem:[#allocation3 + $0x158] sm:$0xff] %v5363
          %5460 = vst [vmem:[#allocation3 + $0x160] sm:$0xff] %v5364
          %5461 = vst [vmem:[#allocation3 + $0x168] sm:$0xff] %v5365
          %5462 = vst [vmem:[#allocation3 + $0x170] sm:$0xff] %v5366
          %5463 = vst [vmem:[#allocation3 + $0x178] sm:$0xff] %v5367
          %5464 = vst [vmem:[#allocation3 + $0x180] sm:$0xff] %v5368
          %5465 = vst [vmem:[#allocation3 + $0x188] sm:$0xff] %v5369
          %5466 = vst [vmem:[#allocation3 + $0x190] sm:$0xff] %v5370
          %5467 = vst [vmem:[#allocation3 + $0x198] sm:$0xff] %v5371
          %5468 = vst [vmem:[#allocation3 + $0x1a0] sm:$0xff] %v5372
          %5469 = vst [vmem:[#allocation3 + $0x1a8] sm:$0xff] %v5373
          %5470 = vst [vmem:[#allocation3 + $0x1b0] sm:$0xff] %v5374
          %5471 = vst [vmem:[#allocation3 + $0x1b8] sm:$0xff] %v5375
          %5472 = vst [vmem:[#allocation3 + $0x1c0] sm:$0xff] %v5376
          %5473 = vst [vmem:[#allocation3 + $0x1c8] sm:$0xff] %v5377
          %5474 = vst [vmem:[#allocation3 + $0x1d0] sm:$0xff] %v5378
          %5475 = vst [vmem:[#allocation3 + $0x1d8] sm:$0xff] %v5379
          %5476 = vst [vmem:[#allocation3 + $0x1e0] sm:$0xff] %v5380
          %5477 = vst [vmem:[#allocation3 + $0x1e8] sm:$0xff] %v5381
          %5478 = vst [vmem:[#allocation3 + $0x1f0] sm:$0xff] %v5382
          %5479 = vst [vmem:[#allocation3 + $0x1f8] sm:$0xff] %v5383
          %5480 = vst [vmem:[#allocation3 + $0x200] sm:$0xff] %v5384
          %5481 = vst [vmem:[#allocation3 + $0x208] sm:$0xff] %v5385
          %5482 = vst [vmem:[#allocation3 + $0x210] sm:$0xff] %v5386
          %5483 = vst [vmem:[#allocation3 + $0x218] sm:$0xff] %v5387
          %5484 = vst [vmem:[#allocation3 + $0x220] sm:$0xff] %v5388
          %5485 = vst [vmem:[#allocation3 + $0x228] sm:$0xff] %v5389
          %5486 = vst [vmem:[#allocation3 + $0x230] sm:$0xff] %v5390
          %5487 = vst [vmem:[#allocation3 + $0x238] sm:$0xff] %v5391
          %5488 = vst [vmem:[#allocation3 + $0x240] sm:$0xff] %v5392
          %5489 = vst [vmem:[#allocation3 + $0x248] sm:$0xff] %v5393
          %5490 = vst [vmem:[#allocation3 + $0x250] sm:$0xff] %v5394
          %5491 = vst [vmem:[#allocation3 + $0x258] sm:$0xff] %v5395
          %5492 = vst [vmem:[#allocation3 + $0x260] sm:$0xff] %v5396
          %5493 = vst [vmem:[#allocation3 + $0x268] sm:$0xff] %v5397
          %5494 = vst [vmem:[#allocation3 + $0x270] sm:$0xff] %v5398
          %5495 = vst [vmem:[#allocation3 + $0x278] sm:$0xff] %v5399
          %5496 = vst [vmem:[#allocation3 + $0x280] sm:$0xff] %v5400
          %5497 = vst [vmem:[#allocation3 + $0x288] sm:$0xff] %v5401
          %5498 = vst [vmem:[#allocation3 + $0x290] sm:$0xff] %v5402
          %5499 = vst [vmem:[#allocation3 + $0x298] sm:$0xff] %v5403
          %5500 = vst [vmem:[#allocation3 + $0x2a0] sm:$0xff] %v5404
          %5501 = vst [vmem:[#allocation3 + $0x2a8] sm:$0xff] %v5405
          %5502 = vst [vmem:[#allocation3 + $0x2b0] sm:$0xff] %v5406
          %5503 = vst [vmem:[#allocation3 + $0x2b8] sm:$0xff] %v5407
          %5504 = vst [vmem:[#allocation3 + $0x2c0] sm:$0xff] %v5408
          %5505 = vst [vmem:[#allocation3 + $0x2c8] sm:$0xff] %v5409
          %5506 = vst [vmem:[#allocation3 + $0x2d0] sm:$0xff] %v5410
          %5507 = vst [vmem:[#allocation3 + $0x2d8] sm:$0xff] %v5411
          %5508 = vst [vmem:[#allocation3 + $0x2e0] sm:$0xff] %v5412
          %5509 = vst [vmem:[#allocation3 + $0x2e8] sm:$0xff] %v5413
          %5510 = vst [vmem:[#allocation3 + $0x2f0] sm:$0xff] %v5414
          %5511 = vst [vmem:[#allocation3 + $0x2f8] sm:$0xff] %v5415
        $region72: #{tpu_custom_call.1} parent=63 // pred_fallthru
          _
        // Predicated region
        $region73: #{tpu_custom_call.1} parent=63 // pred_check
          %p5512 = pneg %p302
        $region74: #{tpu_custom_call.1} parent=63 // pred_check_branch
          %5514 = sbr.rel (%p5512) target = $region76
        $region75: #{tpu_custom_call.1} parent=63 // pred_region
          %s5516 = ssub.s32 12288, 12288
          %5517 = vsyncadd [#allocation4], %s5516
          %s5518 = sshll.u32 [#allocation3], 4
          %s5519 = int_to_ptr.vmem [resolvable:$true] %s5518
          %5524 = dma.vmem_to_hbm [thread:$0]  %s5519, 12288, %s11, [#allocation4], 512, 512, 32
        $region76: #{tpu_custom_call.1} parent=63 // pred_fallthru
          _
        // Predicated region
        $region77: #{tpu_custom_call.1} parent=63 // pred_check
          %p5525 = pneg %p302
        $region78: #{tpu_custom_call.1} parent=63 // pred_check_branch
          %5527 = sbr.rel (%p5525) target = $region80
        $region79: #{tpu_custom_call.1} parent=63 // pred_region
          %5528 = dma.done [#allocation4], 12288
        $region80: #{tpu_custom_call.1} parent=63 // pred_fallthru
          _
      $region64: #{tpu_custom_call.1} parent=5 // pred_fallthru
        _
      %p5529 = scmp.le.s32.totalorder 2, %s18
      // Predicated region
      $region81: #{tpu_custom_call.1} parent=5 // pred_check
        %p5530 = pneg %p5529
      $region82: #{tpu_custom_call.1} parent=5 // pred_check_branch
        %5532 = sbr.rel (%p5530) target = $region84
      $region83: #{tpu_custom_call.1} parent=5 // pred_region
        %s5533 = ssub.s32 %s18, 2
      $region84: #{tpu_custom_call.1} parent=5 // pred_fallthru
        _
    $region6: #{tpu_custom_call.1} parent=1 // loop_footer
      %s22 = sadd.s32 1, %s18
    $region7: #{tpu_custom_call.1} parent=1 // loop_footer_branch
      %17 = sbr.rel target = $region3
    $region8: #{tpu_custom_call.1} parent=1 // loop_exit
      _
    %5534 = vsyncpa [#allocation4], 1
    %s5535 = scalar_lea.sflag [#allocation4], 1
    %5536 = vsyncpa %s5535, 1

</llo_original>
